<compile_context>
chip_gen: v7x
topology: tpu7x:2x2x1
jax: 0.10.0
libtpu: 0.0.40
codegen_flags: <defaults>
</compile_context>

<pallas_src>
import jax
import jax.numpy as jnp
from jax.experimental import pallas as pl
from jax.experimental.pallas import tpu as pltpu

COURSE_EMB = 5
VIDEO_EMB = 15
FEATURE = COURSE_EMB + VIDEO_EMB + 13        # 33
HIDDEN = 64
NB_COURSES = 706 + 1
NB_VIDEOS = 38181 + 1

N_CHAINS = 2          # independent batch sub-blocks interleaved in the time loop
OUT_LANES = 128       # lane-dense padded MLP / output width
USE_BF16_MXU = True   # bf16 operands for the recurrent MXU dot (f32 carry/accum)
MAX_UNROLL = 8        # bound the in-kernel time-loop unroll


def gru_kernel(gi_ref, whh_ref, bhn_ref,
               w1_ref, b1_ref, w2_ref, b2_ref, w3_ref, b3_ref,
               out_ref):
    """Whole GRU recurrence + MLP head for one batch block (one grid step).

    gi_ref  : (S, BLOCK, 3H)  precomputed x @ W_ih^T + b_ih (+ b_hh for r,z),
                              gate order r|z|n, possibly bf16.
    whh_ref : (H, 3H)         packed recurrent weights W_hh^T, same gate order.
    bhn_ref : (1, H)          recurrent bias of the n gate (must stay inside r*()).
    """
    S = gi_ref.shape[0]
    BLOCK = gi_ref.shape[1]
    H = whh_ref.shape[0]
    SUB = BLOCK // N_CHAINS

    # Grid-invariant weights: load once, reuse across the unrolled loop.
    whh = whh_ref[...]                                        # (H, 3H) bf16/f32
    # Hoisted pre-broadcast of b_hn (JAX doesn't CSE broadcast_in_dim).
    bhn = jnp.broadcast_to(bhn_ref[...].astype(jnp.float32), (SUB, H))

    def step(t, hs):
        g_full = gi_ref[t]                                    # (BLOCK, 3H)
        new_hs = []
        for c in range(N_CHAINS):                             # 2 independent chains
            h = hs[c]                                         # (SUB, H) f32
            g = g_full[c * SUB:(c + 1) * SUB]                 # (SUB, 3H)
            # Single fused recurrent dot for all three gates (bf16 MXU, f32 acc).
            gh = jnp.dot(h.astype(whh.dtype), whh,
                         preferred_element_type=jnp.float32)  # (SUB, 3H) f32
            # r|z share one lane-dense 128-wide sigmoid (b_hh r,z already folded
            # into gi in the wrapper).
            rz = jax.nn.sigmoid(g[:, :2 * H].astype(jnp.float32) + gh[:, :2 * H])
            r = rz[:, :H]
            z = rz[:, H:2 * H]
            n = jnp.tanh(g[:, 2 * H:].astype(jnp.float32)
                         + r * (gh[:, 2 * H:] + bhn))
            new_hs.append((1.0 - z) * n + z * h)
        return tuple(new_hs)

    h0 = tuple(jnp.zeros((SUB, H), jnp.float32) for _ in range(N_CHAINS))
    hs = jax.lax.fori_loop(0, S, step, h0, unroll=min(S, MAX_UNROLL))
    h_last = jnp.concatenate(hs, axis=0)                      # (BLOCK, H)

    # MLP head (runs once per block): fc1 -> tanh -> fc2 -> tanh -> fc3 -> sigmoid,
    # all weights zero-padded to 128 lanes so every vreg is full.
    a1 = jnp.tanh(jnp.dot(h_last, w1_ref[...],
                          preferred_element_type=jnp.float32) + b1_ref[...])
    a2 = jnp.tanh(jnp.dot(a1, w2_ref[...],
                          preferred_element_type=jnp.float32) + b2_ref[...])
    logit = jnp.dot(a2, w3_ref[...],
                    preferred_element_type=jnp.float32) + b3_ref[...]
    out_ref[...] = jax.nn.sigmoid(logit)


def init_params(key):
    ks = jax.random.split(key, 12)
    scale = 0.1
    p = {
        "course_emb": jax.random.normal(ks[0], (NB_COURSES, COURSE_EMB), jnp.float32) * scale,
        "video_emb":  jax.random.normal(ks[1], (NB_VIDEOS, VIDEO_EMB), jnp.float32) * scale,
        # nn.GRU weights, gate order (r, z, n)
        "w_ih": jax.random.normal(ks[2], (3 * HIDDEN, FEATURE), jnp.float32) * scale,
        "w_hh": jax.random.normal(ks[3], (3 * HIDDEN, HIDDEN), jnp.float32) * scale,
        "b_ih": jax.random.normal(ks[4], (3 * HIDDEN,), jnp.float32) * scale,
        "b_hh": jax.random.normal(ks[5], (3 * HIDDEN,), jnp.float32) * scale,
        "fc1_w": jax.random.normal(ks[6], (16, HIDDEN), jnp.float32) * scale,
        "fc1_b": jax.random.normal(ks[7], (16,), jnp.float32) * scale,
        "fc2_w": jax.random.normal(ks[8], (8, 16), jnp.float32) * scale,
        "fc2_b": jax.random.normal(ks[9], (8,), jnp.float32) * scale,
        "fc3_w": jax.random.normal(ks[10], (1, 8), jnp.float32) * scale,
        "fc3_b": jax.random.normal(ks[11], (1,), jnp.float32) * scale,
    }
    return p


def gru_forward(params, course_id, video_id, continues):
    H = HIDDEN
    # --- glue (plain JAX): embedding gathers + concat + permute(1,0,2) ---
    emb1 = params["course_emb"][course_id]                     # (B, S, 5)
    emb2 = params["video_emb"][video_id]                       # (B, S, 15)
    x = jnp.concatenate([emb1, emb2, continues.astype(jnp.float32)], axis=2)
    x = jnp.transpose(x, (1, 0, 2))                            # (S, B, F) time-major
    S, B, F = x.shape

    # Hoisted input projection: one (S*B, F) @ (F, 3H) matmul, done once.
    # Fold b_hh[r], b_hh[z] in here as well (b_hh[n] must stay inside r*(...)).
    b_fold = params["b_ih"] + jnp.concatenate(
        [params["b_hh"][:2 * H], jnp.zeros((H,), jnp.float32)])
    gi = jnp.dot(x.reshape(S * B, F), params["w_ih"].T) + b_fold
    gi = gi.reshape(S, B, 3 * H)

    # Batch block: 2 interleaved chains; 2x128 rows when B is large (fills the
    # 256-wide v6e/v7x MXU), 2x64 otherwise.
    sub = 128 if B >= 256 else 64
    block = sub * N_CHAINS
    nb = pl.cdiv(B, block)
    Bp = nb * block
    if Bp != B:
        gi = jnp.pad(gi, ((0, 0), (0, Bp - B), (0, 0)))

    mxu_dtype = jnp.bfloat16 if USE_BF16_MXU else jnp.float32
    gi = gi.astype(mxu_dtype)

    # Packed recurrent weights: h @ W_hh^T gives [h W_hr^T | h W_hz^T | h W_hn^T].
    whh = params["w_hh"].T.astype(mxu_dtype)                   # (H, 3H)
    bhn = params["b_hh"][2 * H:3 * H].reshape(1, H)            # stays f32

    # Lane-dense MLP head (zero-padded to 128 lanes; only the real rows/cols matter).
    w1 = jnp.zeros((H, OUT_LANES), jnp.float32).at[:, :16].set(params["fc1_w"].T)
    b1 = jnp.zeros((1, OUT_LANES), jnp.float32).at[0, :16].set(params["fc1_b"])
    w2 = jnp.zeros((OUT_LANES, OUT_LANES), jnp.float32).at[:16, :8].set(params["fc2_w"].T)
    b2 = jnp.zeros((1, OUT_LANES), jnp.float32).at[0, :8].set(params["fc2_b"])
    w3 = jnp.zeros((OUT_LANES, OUT_LANES), jnp.float32).at[:8, 0].set(params["fc3_w"][0])
    b3 = jnp.zeros((1, OUT_LANES), jnp.float32).at[0, 0].set(params["fc3_b"][0])

    def rep_spec(arr):
        nd = arr.ndim
        return pl.BlockSpec(arr.shape, lambda b, _nd=nd: (0,) * _nd)

    gi_spec = pl.BlockSpec((S, block, 3 * H), lambda b: (0, b, 0))

    out = pl.pallas_call(
        gru_kernel,
        out_shape=jax.ShapeDtypeStruct((Bp, OUT_LANES), jnp.float32),
        grid_spec=pltpu.PrefetchScalarGridSpec(
            num_scalar_prefetch=0,
            grid=(nb,),                       # batch blocks only; time is in-kernel
            in_specs=[
                gi_spec,
                rep_spec(whh), rep_spec(bhn),
                rep_spec(w1), rep_spec(b1),
                rep_spec(w2), rep_spec(b2),
                rep_spec(w3), rep_spec(b3),
            ],
            out_specs=pl.BlockSpec((block, OUT_LANES), lambda b: (b, 0)),
        ),
        compiler_params=pltpu.CompilerParams(
            dimension_semantics=("parallel",),          # independent batch blocks
            vmem_limit_bytes=32 * 1024 * 1024),
    )(gi, whh, bhn, w1, b1, w2, b2, w3, b3)

    return out[:B, :1]


def gru_forward_ref(params, course_id, video_id, continues):
    """Pure-JAX reference mirroring PyTorch semantics, for correctness check."""
    emb1 = params["course_emb"][course_id]
    emb2 = params["video_emb"][video_id]
    x = jnp.concatenate([emb1, emb2, continues.astype(jnp.float32)], axis=2)
    x = jnp.transpose(x, (1, 0, 2))                 # (S, B, F)
    S, B, _ = x.shape
    H = HIDDEN
    h = jnp.zeros((B, H), jnp.float32)

    def step(h, x_t):
        gi = x_t @ params["w_ih"].T + params["b_ih"]
        gh = h @ params["w_hh"].T + params["b_hh"]
        i_r, i_z, i_n = gi[:, :H], gi[:, H:2 * H], gi[:, 2 * H:]
        h_r, h_z, h_n = gh[:, :H], gh[:, H:2 * H], gh[:, 2 * H:]
        r = jax.nn.sigmoid(i_r + h_r)
        z = jax.nn.sigmoid(i_z + h_z)
        n = jnp.tanh(i_n + r * h_n)
        h_new = (1.0 - z) * n + z * h
        return h_new, None

    h_last, _ = jax.lax.scan(step, h, x)
    a1 = jnp.tanh(h_last @ params["fc1_w"].T + params["fc1_b"])
    a2 = jnp.tanh(a1 @ params["fc2_w"].T + params["fc2_b"])
    return jax.nn.sigmoid(a2 @ params["fc3_w"].T + params["fc3_b"])


if __name__ == "__main__":
    key = jax.random.PRNGKey(0)
    pkey, k1, k2, k3 = jax.random.split(key, 4)
    params = init_params(pkey)

    B, S = 2, 8
    course_id = jax.random.randint(k1, (B, S), 0, NB_COURSES, dtype=jnp.int32)
    video_id = jax.random.randint(k2, (B, S), 0, NB_VIDEOS, dtype=jnp.int32)
    continues = jax.random.normal(k3, (B, S, 13), jnp.float32)

    out = gru_forward(params, course_id, video_id, continues)
    out = jax.block_until_ready(out)

    ref = jax.block_until_ready(gru_forward_ref(params, course_id, video_id, continues))
    assert out.shape == (B, 1), out.shape
    tol = 2e-2 if USE_BF16_MXU else 1e-4
    assert jnp.allclose(out, ref, rtol=tol, atol=tol), (out, ref)

    print("KERNEL_OK")
</pallas_src>

<mosaic_0001>
module attributes {stable_mosaic.version = 11 : i64} {
  func.func @gru_kernel(%arg0: i32, %arg1: memref<8x128x192xbf16, #tpu.memory_space<vmem>>, %arg2: memref<64x192xbf16, #tpu.memory_space<vmem>>, %arg3: memref<1x64xf32, #tpu.memory_space<vmem>>, %arg4: memref<64x128xf32, #tpu.memory_space<vmem>>, %arg5: memref<1x128xf32, #tpu.memory_space<vmem>>, %arg6: memref<128x128xf32, #tpu.memory_space<vmem>>, %arg7: memref<1x128xf32, #tpu.memory_space<vmem>>, %arg8: memref<128x128xf32, #tpu.memory_space<vmem>>, %arg9: memref<1x128xf32, #tpu.memory_space<vmem>>, %arg10: memref<128x128xf32, #tpu.memory_space<vmem>>) attributes {dimension_semantics = [#tpu.dimension_semantics<parallel>], iteration_bounds = array<i64: 1>, scalar_prefetch = 0 : i64, scratch_operands = 0 : i64, tpu.core_type = #tpu.core_type<tc>, window_params = [{transform_indices = @transform_0, window_bounds = array<i64: 8, 128, 192>}, {pipeline_mode = #tpu.pipeline_mode<synchronous>, transform_indices = @transform_1, window_bounds = array<i64: 64, 192>}, {pipeline_mode = #tpu.pipeline_mode<synchronous>, transform_indices = @transform_2, window_bounds = array<i64: 1, 64>}, {pipeline_mode = #tpu.pipeline_mode<synchronous>, transform_indices = @transform_3, window_bounds = array<i64: 64, 128>}, {pipeline_mode = #tpu.pipeline_mode<synchronous>, transform_indices = @transform_4, window_bounds = array<i64: 1, 128>}, {pipeline_mode = #tpu.pipeline_mode<synchronous>, transform_indices = @transform_5, window_bounds = array<i64: 128, 128>}, {pipeline_mode = #tpu.pipeline_mode<synchronous>, transform_indices = @transform_6, window_bounds = array<i64: 1, 128>}, {pipeline_mode = #tpu.pipeline_mode<synchronous>, transform_indices = @transform_7, window_bounds = array<i64: 128, 128>}, {pipeline_mode = #tpu.pipeline_mode<synchronous>, transform_indices = @transform_8, window_bounds = array<i64: 1, 128>}, {transform_indices = @transform_9, window_bounds = array<i64: 128, 128>}]} {
    %c0 = arith.constant 0 : index
    %c0_0 = arith.constant 0 : index
    %0 = vector.load %arg2[%c0, %c0_0] : memref<64x192xbf16, #tpu.memory_space<vmem>>, vector<64x192xbf16>
    %c0_1 = arith.constant 0 : index
    %c0_2 = arith.constant 0 : index
    %1 = vector.load %arg3[%c0_1, %c0_2] : memref<1x64xf32, #tpu.memory_space<vmem>>, vector<1x64xf32>
    %2 = vector.shape_cast %1 : vector<1x64xf32> to vector<1x64xf32>
    %3 = vector.broadcast %2 : vector<1x64xf32> to vector<64x64xf32>
    %cst = arith.constant 0.000000e+00 : f32
    %4 = vector.broadcast %cst : f32 to vector<64x64xf32>
    %cst_3 = arith.constant 0.000000e+00 : f32
    %5 = vector.broadcast %cst_3 : f32 to vector<64x64xf32>
    %c0_i32 = arith.constant 0 : i32
    %6 = arith.index_cast %c0_i32 : i32 to index
    %c0_4 = arith.constant 0 : index
    %c0_5 = arith.constant 0 : index
    %7 = vector.load %arg1[%6, %c0_4, %c0_5] : memref<8x128x192xbf16, #tpu.memory_space<vmem>>, vector<1x128x192xbf16>
    %8 = vector.shape_cast %7 : vector<1x128x192xbf16> to vector<128x192xbf16>
    %9 = vector.extract_strided_slice %8 {offsets = [0, 0], sizes = [64, 192], strides = [1, 1]} : vector<128x192xbf16> to vector<64x192xbf16>
    %10 = arith.truncf %4 : vector<64x64xf32> to vector<64x64xbf16>
    %cst_6 = arith.constant dense<0.000000e+00> : vector<64x192xf32>
    %11 = tpu.matmul %10, %0, %cst_6 {dimension_numbers = #tpu.dot_dimension_numbers<[1], [0], [0], [1], [0, 0, 1, 1], [], []>} : vector<64x64xbf16>, vector<64x192xbf16>, vector<64x192xf32> -> vector<64x192xf32>
    %12 = vector.extract_strided_slice %9 {offsets = [0, 0], sizes = [64, 128], strides = [1, 1]} : vector<64x192xbf16> to vector<64x128xbf16>
    %13 = arith.extf %12 : vector<64x128xbf16> to vector<64x128xf32>
    %14 = vector.extract_strided_slice %11 {offsets = [0, 0], sizes = [64, 128], strides = [1, 1]} : vector<64x192xf32> to vector<64x128xf32>
    %15 = arith.addf %13, %14 : vector<64x128xf32>
    %16 = arith.negf %15 : vector<64x128xf32>
    %17 = math.exp %16 : vector<64x128xf32>
    %cst_7 = arith.constant 1.000000e+00 : f32
    %18 = vector.broadcast %cst_7 : f32 to vector<64x128xf32>
    %19 = arith.addf %18, %17 : vector<64x128xf32>
    %20 = arith.divf %18, %19 : vector<64x128xf32>
    %21 = vector.extract_strided_slice %20 {offsets = [0, 0], sizes = [64, 64], strides = [1, 1]} : vector<64x128xf32> to vector<64x64xf32>
    %22 = vector.extract_strided_slice %20 {offsets = [0, 64], sizes = [64, 64], strides = [1, 1]} : vector<64x128xf32> to vector<64x64xf32>
    %23 = vector.extract_strided_slice %9 {offsets = [0, 128], sizes = [64, 64], strides = [1, 1]} : vector<64x192xbf16> to vector<64x64xbf16>
    %24 = arith.extf %23 : vector<64x64xbf16> to vector<64x64xf32>
    %25 = vector.extract_strided_slice %11 {offsets = [0, 128], sizes = [64, 64], strides = [1, 1]} : vector<64x192xf32> to vector<64x64xf32>
    %26 = arith.addf %25, %3 : vector<64x64xf32>
    %27 = arith.mulf %21, %26 : vector<64x64xf32>
    %28 = arith.addf %24, %27 : vector<64x64xf32>
    %29 = math.tanh %28 : vector<64x64xf32>
    %cst_8 = arith.constant 1.000000e+00 : f32
    %30 = vector.broadcast %cst_8 : f32 to vector<64x64xf32>
    %31 = arith.subf %30, %22 : vector<64x64xf32>
    %32 = arith.mulf %31, %29 : vector<64x64xf32>
    %33 = arith.mulf %22, %4 : vector<64x64xf32>
    %34 = arith.addf %32, %33 : vector<64x64xf32>
    %35 = vector.extract_strided_slice %8 {offsets = [64, 0], sizes = [64, 192], strides = [1, 1]} : vector<128x192xbf16> to vector<64x192xbf16>
    %36 = arith.truncf %5 : vector<64x64xf32> to vector<64x64xbf16>
    %cst_9 = arith.constant dense<0.000000e+00> : vector<64x192xf32>
    %37 = tpu.matmul %36, %0, %cst_9 {dimension_numbers = #tpu.dot_dimension_numbers<[1], [0], [0], [1], [0, 0, 1, 1], [], []>} : vector<64x64xbf16>, vector<64x192xbf16>, vector<64x192xf32> -> vector<64x192xf32>
    %38 = vector.extract_strided_slice %35 {offsets = [0, 0], sizes = [64, 128], strides = [1, 1]} : vector<64x192xbf16> to vector<64x128xbf16>
    %39 = arith.extf %38 : vector<64x128xbf16> to vector<64x128xf32>
    %40 = vector.extract_strided_slice %37 {offsets = [0, 0], sizes = [64, 128], strides = [1, 1]} : vector<64x192xf32> to vector<64x128xf32>
    %41 = arith.addf %39, %40 : vector<64x128xf32>
    %42 = arith.negf %41 : vector<64x128xf32>
    %43 = math.exp %42 : vector<64x128xf32>
    %cst_10 = arith.constant 1.000000e+00 : f32
    %44 = vector.broadcast %cst_10 : f32 to vector<64x128xf32>
    %45 = arith.addf %44, %43 : vector<64x128xf32>
    %46 = arith.divf %44, %45 : vector<64x128xf32>
    %47 = vector.extract_strided_slice %46 {offsets = [0, 0], sizes = [64, 64], strides = [1, 1]} : vector<64x128xf32> to vector<64x64xf32>
    %48 = vector.extract_strided_slice %46 {offsets = [0, 64], sizes = [64, 64], strides = [1, 1]} : vector<64x128xf32> to vector<64x64xf32>
    %49 = vector.extract_strided_slice %35 {offsets = [0, 128], sizes = [64, 64], strides = [1, 1]} : vector<64x192xbf16> to vector<64x64xbf16>
    %50 = arith.extf %49 : vector<64x64xbf16> to vector<64x64xf32>
    %51 = vector.extract_strided_slice %37 {offsets = [0, 128], sizes = [64, 64], strides = [1, 1]} : vector<64x192xf32> to vector<64x64xf32>
    %52 = arith.addf %51, %3 : vector<64x64xf32>
    %53 = arith.mulf %47, %52 : vector<64x64xf32>
    %54 = arith.addf %50, %53 : vector<64x64xf32>
    %55 = math.tanh %54 : vector<64x64xf32>
    %cst_11 = arith.constant 1.000000e+00 : f32
    %56 = vector.broadcast %cst_11 : f32 to vector<64x64xf32>
    %57 = arith.subf %56, %48 : vector<64x64xf32>
    %58 = arith.mulf %57, %55 : vector<64x64xf32>
    %59 = arith.mulf %48, %5 : vector<64x64xf32>
    %60 = arith.addf %58, %59 : vector<64x64xf32>
    %c1_i32 = arith.constant 1 : i32
    %61 = arith.index_cast %c1_i32 : i32 to index
    %c0_12 = arith.constant 0 : index
    %c0_13 = arith.constant 0 : index
    %62 = vector.load %arg1[%61, %c0_12, %c0_13] : memref<8x128x192xbf16, #tpu.memory_space<vmem>>, vector<1x128x192xbf16>
    %63 = vector.shape_cast %62 : vector<1x128x192xbf16> to vector<128x192xbf16>
    %64 = vector.extract_strided_slice %63 {offsets = [0, 0], sizes = [64, 192], strides = [1, 1]} : vector<128x192xbf16> to vector<64x192xbf16>
    %65 = arith.truncf %34 : vector<64x64xf32> to vector<64x64xbf16>
    %cst_14 = arith.constant dense<0.000000e+00> : vector<64x192xf32>
    %66 = tpu.matmul %65, %0, %cst_14 {dimension_numbers = #tpu.dot_dimension_numbers<[1], [0], [0], [1], [0, 0, 1, 1], [], []>} : vector<64x64xbf16>, vector<64x192xbf16>, vector<64x192xf32> -> vector<64x192xf32>
    %67 = vector.extract_strided_slice %64 {offsets = [0, 0], sizes = [64, 128], strides = [1, 1]} : vector<64x192xbf16> to vector<64x128xbf16>
    %68 = arith.extf %67 : vector<64x128xbf16> to vector<64x128xf32>
    %69 = vector.extract_strided_slice %66 {offsets = [0, 0], sizes = [64, 128], strides = [1, 1]} : vector<64x192xf32> to vector<64x128xf32>
    %70 = arith.addf %68, %69 : vector<64x128xf32>
    %71 = arith.negf %70 : vector<64x128xf32>
    %72 = math.exp %71 : vector<64x128xf32>
    %cst_15 = arith.constant 1.000000e+00 : f32
    %73 = vector.broadcast %cst_15 : f32 to vector<64x128xf32>
    %74 = arith.addf %73, %72 : vector<64x128xf32>
    %75 = arith.divf %73, %74 : vector<64x128xf32>
    %76 = vector.extract_strided_slice %75 {offsets = [0, 0], sizes = [64, 64], strides = [1, 1]} : vector<64x128xf32> to vector<64x64xf32>
    %77 = vector.extract_strided_slice %75 {offsets = [0, 64], sizes = [64, 64], strides = [1, 1]} : vector<64x128xf32> to vector<64x64xf32>
    %78 = vector.extract_strided_slice %64 {offsets = [0, 128], sizes = [64, 64], strides = [1, 1]} : vector<64x192xbf16> to vector<64x64xbf16>
    %79 = arith.extf %78 : vector<64x64xbf16> to vector<64x64xf32>
    %80 = vector.extract_strided_slice %66 {offsets = [0, 128], sizes = [64, 64], strides = [1, 1]} : vector<64x192xf32> to vector<64x64xf32>
    %81 = arith.addf %80, %3 : vector<64x64xf32>
    %82 = arith.mulf %76, %81 : vector<64x64xf32>
    %83 = arith.addf %79, %82 : vector<64x64xf32>
    %84 = math.tanh %83 : vector<64x64xf32>
    %cst_16 = arith.constant 1.000000e+00 : f32
    %85 = vector.broadcast %cst_16 : f32 to vector<64x64xf32>
    %86 = arith.subf %85, %77 : vector<64x64xf32>
    %87 = arith.mulf %86, %84 : vector<64x64xf32>
    %88 = arith.mulf %77, %34 : vector<64x64xf32>
    %89 = arith.addf %87, %88 : vector<64x64xf32>
    %90 = vector.extract_strided_slice %63 {offsets = [64, 0], sizes = [64, 192], strides = [1, 1]} : vector<128x192xbf16> to vector<64x192xbf16>
    %91 = arith.truncf %60 : vector<64x64xf32> to vector<64x64xbf16>
    %cst_17 = arith.constant dense<0.000000e+00> : vector<64x192xf32>
    %92 = tpu.matmul %91, %0, %cst_17 {dimension_numbers = #tpu.dot_dimension_numbers<[1], [0], [0], [1], [0, 0, 1, 1], [], []>} : vector<64x64xbf16>, vector<64x192xbf16>, vector<64x192xf32> -> vector<64x192xf32>
    %93 = vector.extract_strided_slice %90 {offsets = [0, 0], sizes = [64, 128], strides = [1, 1]} : vector<64x192xbf16> to vector<64x128xbf16>
    %94 = arith.extf %93 : vector<64x128xbf16> to vector<64x128xf32>
    %95 = vector.extract_strided_slice %92 {offsets = [0, 0], sizes = [64, 128], strides = [1, 1]} : vector<64x192xf32> to vector<64x128xf32>
    %96 = arith.addf %94, %95 : vector<64x128xf32>
    %97 = arith.negf %96 : vector<64x128xf32>
    %98 = math.exp %97 : vector<64x128xf32>
    %cst_18 = arith.constant 1.000000e+00 : f32
    %99 = vector.broadcast %cst_18 : f32 to vector<64x128xf32>
    %100 = arith.addf %99, %98 : vector<64x128xf32>
    %101 = arith.divf %99, %100 : vector<64x128xf32>
    %102 = vector.extract_strided_slice %101 {offsets = [0, 0], sizes = [64, 64], strides = [1, 1]} : vector<64x128xf32> to vector<64x64xf32>
    %103 = vector.extract_strided_slice %101 {offsets = [0, 64], sizes = [64, 64], strides = [1, 1]} : vector<64x128xf32> to vector<64x64xf32>
    %104 = vector.extract_strided_slice %90 {offsets = [0, 128], sizes = [64, 64], strides = [1, 1]} : vector<64x192xbf16> to vector<64x64xbf16>
    %105 = arith.extf %104 : vector<64x64xbf16> to vector<64x64xf32>
    %106 = vector.extract_strided_slice %92 {offsets = [0, 128], sizes = [64, 64], strides = [1, 1]} : vector<64x192xf32> to vector<64x64xf32>
    %107 = arith.addf %106, %3 : vector<64x64xf32>
    %108 = arith.mulf %102, %107 : vector<64x64xf32>
    %109 = arith.addf %105, %108 : vector<64x64xf32>
    %110 = math.tanh %109 : vector<64x64xf32>
    %cst_19 = arith.constant 1.000000e+00 : f32
    %111 = vector.broadcast %cst_19 : f32 to vector<64x64xf32>
    %112 = arith.subf %111, %103 : vector<64x64xf32>
    %113 = arith.mulf %112, %110 : vector<64x64xf32>
    %114 = arith.mulf %103, %60 : vector<64x64xf32>
    %115 = arith.addf %113, %114 : vector<64x64xf32>
    %c2_i32 = arith.constant 2 : i32
    %116 = arith.index_cast %c2_i32 : i32 to index
    %c0_20 = arith.constant 0 : index
    %c0_21 = arith.constant 0 : index
    %117 = vector.load %arg1[%116, %c0_20, %c0_21] : memref<8x128x192xbf16, #tpu.memory_space<vmem>>, vector<1x128x192xbf16>
    %118 = vector.shape_cast %117 : vector<1x128x192xbf16> to vector<128x192xbf16>
    %119 = vector.extract_strided_slice %118 {offsets = [0, 0], sizes = [64, 192], strides = [1, 1]} : vector<128x192xbf16> to vector<64x192xbf16>
    %120 = arith.truncf %89 : vector<64x64xf32> to vector<64x64xbf16>
    %cst_22 = arith.constant dense<0.000000e+00> : vector<64x192xf32>
    %121 = tpu.matmul %120, %0, %cst_22 {dimension_numbers = #tpu.dot_dimension_numbers<[1], [0], [0], [1], [0, 0, 1, 1], [], []>} : vector<64x64xbf16>, vector<64x192xbf16>, vector<64x192xf32> -> vector<64x192xf32>
    %122 = vector.extract_strided_slice %119 {offsets = [0, 0], sizes = [64, 128], strides = [1, 1]} : vector<64x192xbf16> to vector<64x128xbf16>
    %123 = arith.extf %122 : vector<64x128xbf16> to vector<64x128xf32>
    %124 = vector.extract_strided_slice %121 {offsets = [0, 0], sizes = [64, 128], strides = [1, 1]} : vector<64x192xf32> to vector<64x128xf32>
    %125 = arith.addf %123, %124 : vector<64x128xf32>
    %126 = arith.negf %125 : vector<64x128xf32>
    %127 = math.exp %126 : vector<64x128xf32>
    %cst_23 = arith.constant 1.000000e+00 : f32
    %128 = vector.broadcast %cst_23 : f32 to vector<64x128xf32>
    %129 = arith.addf %128, %127 : vector<64x128xf32>
    %130 = arith.divf %128, %129 : vector<64x128xf32>
    %131 = vector.extract_strided_slice %130 {offsets = [0, 0], sizes = [64, 64], strides = [1, 1]} : vector<64x128xf32> to vector<64x64xf32>
    %132 = vector.extract_strided_slice %130 {offsets = [0, 64], sizes = [64, 64], strides = [1, 1]} : vector<64x128xf32> to vector<64x64xf32>
    %133 = vector.extract_strided_slice %119 {offsets = [0, 128], sizes = [64, 64], strides = [1, 1]} : vector<64x192xbf16> to vector<64x64xbf16>
    %134 = arith.extf %133 : vector<64x64xbf16> to vector<64x64xf32>
    %135 = vector.extract_strided_slice %121 {offsets = [0, 128], sizes = [64, 64], strides = [1, 1]} : vector<64x192xf32> to vector<64x64xf32>
    %136 = arith.addf %135, %3 : vector<64x64xf32>
    %137 = arith.mulf %131, %136 : vector<64x64xf32>
    %138 = arith.addf %134, %137 : vector<64x64xf32>
    %139 = math.tanh %138 : vector<64x64xf32>
    %cst_24 = arith.constant 1.000000e+00 : f32
    %140 = vector.broadcast %cst_24 : f32 to vector<64x64xf32>
    %141 = arith.subf %140, %132 : vector<64x64xf32>
    %142 = arith.mulf %141, %139 : vector<64x64xf32>
    %143 = arith.mulf %132, %89 : vector<64x64xf32>
    %144 = arith.addf %142, %143 : vector<64x64xf32>
    %145 = vector.extract_strided_slice %118 {offsets = [64, 0], sizes = [64, 192], strides = [1, 1]} : vector<128x192xbf16> to vector<64x192xbf16>
    %146 = arith.truncf %115 : vector<64x64xf32> to vector<64x64xbf16>
    %cst_25 = arith.constant dense<0.000000e+00> : vector<64x192xf32>
    %147 = tpu.matmul %146, %0, %cst_25 {dimension_numbers = #tpu.dot_dimension_numbers<[1], [0], [0], [1], [0, 0, 1, 1], [], []>} : vector<64x64xbf16>, vector<64x192xbf16>, vector<64x192xf32> -> vector<64x192xf32>
    %148 = vector.extract_strided_slice %145 {offsets = [0, 0], sizes = [64, 128], strides = [1, 1]} : vector<64x192xbf16> to vector<64x128xbf16>
    %149 = arith.extf %148 : vector<64x128xbf16> to vector<64x128xf32>
    %150 = vector.extract_strided_slice %147 {offsets = [0, 0], sizes = [64, 128], strides = [1, 1]} : vector<64x192xf32> to vector<64x128xf32>
    %151 = arith.addf %149, %150 : vector<64x128xf32>
    %152 = arith.negf %151 : vector<64x128xf32>
    %153 = math.exp %152 : vector<64x128xf32>
    %cst_26 = arith.constant 1.000000e+00 : f32
    %154 = vector.broadcast %cst_26 : f32 to vector<64x128xf32>
    %155 = arith.addf %154, %153 : vector<64x128xf32>
    %156 = arith.divf %154, %155 : vector<64x128xf32>
    %157 = vector.extract_strided_slice %156 {offsets = [0, 0], sizes = [64, 64], strides = [1, 1]} : vector<64x128xf32> to vector<64x64xf32>
    %158 = vector.extract_strided_slice %156 {offsets = [0, 64], sizes = [64, 64], strides = [1, 1]} : vector<64x128xf32> to vector<64x64xf32>
    %159 = vector.extract_strided_slice %145 {offsets = [0, 128], sizes = [64, 64], strides = [1, 1]} : vector<64x192xbf16> to vector<64x64xbf16>
    %160 = arith.extf %159 : vector<64x64xbf16> to vector<64x64xf32>
    %161 = vector.extract_strided_slice %147 {offsets = [0, 128], sizes = [64, 64], strides = [1, 1]} : vector<64x192xf32> to vector<64x64xf32>
    %162 = arith.addf %161, %3 : vector<64x64xf32>
    %163 = arith.mulf %157, %162 : vector<64x64xf32>
    %164 = arith.addf %160, %163 : vector<64x64xf32>
    %165 = math.tanh %164 : vector<64x64xf32>
    %cst_27 = arith.constant 1.000000e+00 : f32
    %166 = vector.broadcast %cst_27 : f32 to vector<64x64xf32>
    %167 = arith.subf %166, %158 : vector<64x64xf32>
    %168 = arith.mulf %167, %165 : vector<64x64xf32>
    %169 = arith.mulf %158, %115 : vector<64x64xf32>
    %170 = arith.addf %168, %169 : vector<64x64xf32>
    %c3_i32 = arith.constant 3 : i32
    %171 = arith.index_cast %c3_i32 : i32 to index
    %c0_28 = arith.constant 0 : index
    %c0_29 = arith.constant 0 : index
    %172 = vector.load %arg1[%171, %c0_28, %c0_29] : memref<8x128x192xbf16, #tpu.memory_space<vmem>>, vector<1x128x192xbf16>
    %173 = vector.shape_cast %172 : vector<1x128x192xbf16> to vector<128x192xbf16>
    %174 = vector.extract_strided_slice %173 {offsets = [0, 0], sizes = [64, 192], strides = [1, 1]} : vector<128x192xbf16> to vector<64x192xbf16>
    %175 = arith.truncf %144 : vector<64x64xf32> to vector<64x64xbf16>
    %cst_30 = arith.constant dense<0.000000e+00> : vector<64x192xf32>
    %176 = tpu.matmul %175, %0, %cst_30 {dimension_numbers = #tpu.dot_dimension_numbers<[1], [0], [0], [1], [0, 0, 1, 1], [], []>} : vector<64x64xbf16>, vector<64x192xbf16>, vector<64x192xf32> -> vector<64x192xf32>
    %177 = vector.extract_strided_slice %174 {offsets = [0, 0], sizes = [64, 128], strides = [1, 1]} : vector<64x192xbf16> to vector<64x128xbf16>
    %178 = arith.extf %177 : vector<64x128xbf16> to vector<64x128xf32>
    %179 = vector.extract_strided_slice %176 {offsets = [0, 0], sizes = [64, 128], strides = [1, 1]} : vector<64x192xf32> to vector<64x128xf32>
    %180 = arith.addf %178, %179 : vector<64x128xf32>
    %181 = arith.negf %180 : vector<64x128xf32>
    %182 = math.exp %181 : vector<64x128xf32>
    %cst_31 = arith.constant 1.000000e+00 : f32
    %183 = vector.broadcast %cst_31 : f32 to vector<64x128xf32>
    %184 = arith.addf %183, %182 : vector<64x128xf32>
    %185 = arith.divf %183, %184 : vector<64x128xf32>
    %186 = vector.extract_strided_slice %185 {offsets = [0, 0], sizes = [64, 64], strides = [1, 1]} : vector<64x128xf32> to vector<64x64xf32>
    %187 = vector.extract_strided_slice %185 {offsets = [0, 64], sizes = [64, 64], strides = [1, 1]} : vector<64x128xf32> to vector<64x64xf32>
    %188 = vector.extract_strided_slice %174 {offsets = [0, 128], sizes = [64, 64], strides = [1, 1]} : vector<64x192xbf16> to vector<64x64xbf16>
    %189 = arith.extf %188 : vector<64x64xbf16> to vector<64x64xf32>
    %190 = vector.extract_strided_slice %176 {offsets = [0, 128], sizes = [64, 64], strides = [1, 1]} : vector<64x192xf32> to vector<64x64xf32>
    %191 = arith.addf %190, %3 : vector<64x64xf32>
    %192 = arith.mulf %186, %191 : vector<64x64xf32>
    %193 = arith.addf %189, %192 : vector<64x64xf32>
    %194 = math.tanh %193 : vector<64x64xf32>
    %cst_32 = arith.constant 1.000000e+00 : f32
    %195 = vector.broadcast %cst_32 : f32 to vector<64x64xf32>
    %196 = arith.subf %195, %187 : vector<64x64xf32>
    %197 = arith.mulf %196, %194 : vector<64x64xf32>
    %198 = arith.mulf %187, %144 : vector<64x64xf32>
    %199 = arith.addf %197, %198 : vector<64x64xf32>
    %200 = vector.extract_strided_slice %173 {offsets = [64, 0], sizes = [64, 192], strides = [1, 1]} : vector<128x192xbf16> to vector<64x192xbf16>
    %201 = arith.truncf %170 : vector<64x64xf32> to vector<64x64xbf16>
    %cst_33 = arith.constant dense<0.000000e+00> : vector<64x192xf32>
    %202 = tpu.matmul %201, %0, %cst_33 {dimension_numbers = #tpu.dot_dimension_numbers<[1], [0], [0], [1], [0, 0, 1, 1], [], []>} : vector<64x64xbf16>, vector<64x192xbf16>, vector<64x192xf32> -> vector<64x192xf32>
    %203 = vector.extract_strided_slice %200 {offsets = [0, 0], sizes = [64, 128], strides = [1, 1]} : vector<64x192xbf16> to vector<64x128xbf16>
    %204 = arith.extf %203 : vector<64x128xbf16> to vector<64x128xf32>
    %205 = vector.extract_strided_slice %202 {offsets = [0, 0], sizes = [64, 128], strides = [1, 1]} : vector<64x192xf32> to vector<64x128xf32>
    %206 = arith.addf %204, %205 : vector<64x128xf32>
    %207 = arith.negf %206 : vector<64x128xf32>
    %208 = math.exp %207 : vector<64x128xf32>
    %cst_34 = arith.constant 1.000000e+00 : f32
    %209 = vector.broadcast %cst_34 : f32 to vector<64x128xf32>
    %210 = arith.addf %209, %208 : vector<64x128xf32>
    %211 = arith.divf %209, %210 : vector<64x128xf32>
    %212 = vector.extract_strided_slice %211 {offsets = [0, 0], sizes = [64, 64], strides = [1, 1]} : vector<64x128xf32> to vector<64x64xf32>
    %213 = vector.extract_strided_slice %211 {offsets = [0, 64], sizes = [64, 64], strides = [1, 1]} : vector<64x128xf32> to vector<64x64xf32>
    %214 = vector.extract_strided_slice %200 {offsets = [0, 128], sizes = [64, 64], strides = [1, 1]} : vector<64x192xbf16> to vector<64x64xbf16>
    %215 = arith.extf %214 : vector<64x64xbf16> to vector<64x64xf32>
    %216 = vector.extract_strided_slice %202 {offsets = [0, 128], sizes = [64, 64], strides = [1, 1]} : vector<64x192xf32> to vector<64x64xf32>
    %217 = arith.addf %216, %3 : vector<64x64xf32>
    %218 = arith.mulf %212, %217 : vector<64x64xf32>
    %219 = arith.addf %215, %218 : vector<64x64xf32>
    %220 = math.tanh %219 : vector<64x64xf32>
    %cst_35 = arith.constant 1.000000e+00 : f32
    %221 = vector.broadcast %cst_35 : f32 to vector<64x64xf32>
    %222 = arith.subf %221, %213 : vector<64x64xf32>
    %223 = arith.mulf %222, %220 : vector<64x64xf32>
    %224 = arith.mulf %213, %170 : vector<64x64xf32>
    %225 = arith.addf %223, %224 : vector<64x64xf32>
    %c4_i32 = arith.constant 4 : i32
    %226 = arith.index_cast %c4_i32 : i32 to index
    %c0_36 = arith.constant 0 : index
    %c0_37 = arith.constant 0 : index
    %227 = vector.load %arg1[%226, %c0_36, %c0_37] : memref<8x128x192xbf16, #tpu.memory_space<vmem>>, vector<1x128x192xbf16>
    %228 = vector.shape_cast %227 : vector<1x128x192xbf16> to vector<128x192xbf16>
    %229 = vector.extract_strided_slice %228 {offsets = [0, 0], sizes = [64, 192], strides = [1, 1]} : vector<128x192xbf16> to vector<64x192xbf16>
    %230 = arith.truncf %199 : vector<64x64xf32> to vector<64x64xbf16>
    %cst_38 = arith.constant dense<0.000000e+00> : vector<64x192xf32>
    %231 = tpu.matmul %230, %0, %cst_38 {dimension_numbers = #tpu.dot_dimension_numbers<[1], [0], [0], [1], [0, 0, 1, 1], [], []>} : vector<64x64xbf16>, vector<64x192xbf16>, vector<64x192xf32> -> vector<64x192xf32>
    %232 = vector.extract_strided_slice %229 {offsets = [0, 0], sizes = [64, 128], strides = [1, 1]} : vector<64x192xbf16> to vector<64x128xbf16>
    %233 = arith.extf %232 : vector<64x128xbf16> to vector<64x128xf32>
    %234 = vector.extract_strided_slice %231 {offsets = [0, 0], sizes = [64, 128], strides = [1, 1]} : vector<64x192xf32> to vector<64x128xf32>
    %235 = arith.addf %233, %234 : vector<64x128xf32>
    %236 = arith.negf %235 : vector<64x128xf32>
    %237 = math.exp %236 : vector<64x128xf32>
    %cst_39 = arith.constant 1.000000e+00 : f32
    %238 = vector.broadcast %cst_39 : f32 to vector<64x128xf32>
    %239 = arith.addf %238, %237 : vector<64x128xf32>
    %240 = arith.divf %238, %239 : vector<64x128xf32>
    %241 = vector.extract_strided_slice %240 {offsets = [0, 0], sizes = [64, 64], strides = [1, 1]} : vector<64x128xf32> to vector<64x64xf32>
    %242 = vector.extract_strided_slice %240 {offsets = [0, 64], sizes = [64, 64], strides = [1, 1]} : vector<64x128xf32> to vector<64x64xf32>
    %243 = vector.extract_strided_slice %229 {offsets = [0, 128], sizes = [64, 64], strides = [1, 1]} : vector<64x192xbf16> to vector<64x64xbf16>
    %244 = arith.extf %243 : vector<64x64xbf16> to vector<64x64xf32>
    %245 = vector.extract_strided_slice %231 {offsets = [0, 128], sizes = [64, 64], strides = [1, 1]} : vector<64x192xf32> to vector<64x64xf32>
    %246 = arith.addf %245, %3 : vector<64x64xf32>
    %247 = arith.mulf %241, %246 : vector<64x64xf32>
    %248 = arith.addf %244, %247 : vector<64x64xf32>
    %249 = math.tanh %248 : vector<64x64xf32>
    %cst_40 = arith.constant 1.000000e+00 : f32
    %250 = vector.broadcast %cst_40 : f32 to vector<64x64xf32>
    %251 = arith.subf %250, %242 : vector<64x64xf32>
    %252 = arith.mulf %251, %249 : vector<64x64xf32>
    %253 = arith.mulf %242, %199 : vector<64x64xf32>
    %254 = arith.addf %252, %253 : vector<64x64xf32>
    %255 = vector.extract_strided_slice %228 {offsets = [64, 0], sizes = [64, 192], strides = [1, 1]} : vector<128x192xbf16> to vector<64x192xbf16>
    %256 = arith.truncf %225 : vector<64x64xf32> to vector<64x64xbf16>
    %cst_41 = arith.constant dense<0.000000e+00> : vector<64x192xf32>
    %257 = tpu.matmul %256, %0, %cst_41 {dimension_numbers = #tpu.dot_dimension_numbers<[1], [0], [0], [1], [0, 0, 1, 1], [], []>} : vector<64x64xbf16>, vector<64x192xbf16>, vector<64x192xf32> -> vector<64x192xf32>
    %258 = vector.extract_strided_slice %255 {offsets = [0, 0], sizes = [64, 128], strides = [1, 1]} : vector<64x192xbf16> to vector<64x128xbf16>
    %259 = arith.extf %258 : vector<64x128xbf16> to vector<64x128xf32>
    %260 = vector.extract_strided_slice %257 {offsets = [0, 0], sizes = [64, 128], strides = [1, 1]} : vector<64x192xf32> to vector<64x128xf32>
    %261 = arith.addf %259, %260 : vector<64x128xf32>
    %262 = arith.negf %261 : vector<64x128xf32>
    %263 = math.exp %262 : vector<64x128xf32>
    %cst_42 = arith.constant 1.000000e+00 : f32
    %264 = vector.broadcast %cst_42 : f32 to vector<64x128xf32>
    %265 = arith.addf %264, %263 : vector<64x128xf32>
    %266 = arith.divf %264, %265 : vector<64x128xf32>
    %267 = vector.extract_strided_slice %266 {offsets = [0, 0], sizes = [64, 64], strides = [1, 1]} : vector<64x128xf32> to vector<64x64xf32>
    %268 = vector.extract_strided_slice %266 {offsets = [0, 64], sizes = [64, 64], strides = [1, 1]} : vector<64x128xf32> to vector<64x64xf32>
    %269 = vector.extract_strided_slice %255 {offsets = [0, 128], sizes = [64, 64], strides = [1, 1]} : vector<64x192xbf16> to vector<64x64xbf16>
    %270 = arith.extf %269 : vector<64x64xbf16> to vector<64x64xf32>
    %271 = vector.extract_strided_slice %257 {offsets = [0, 128], sizes = [64, 64], strides = [1, 1]} : vector<64x192xf32> to vector<64x64xf32>
    %272 = arith.addf %271, %3 : vector<64x64xf32>
    %273 = arith.mulf %267, %272 : vector<64x64xf32>
    %274 = arith.addf %270, %273 : vector<64x64xf32>
    %275 = math.tanh %274 : vector<64x64xf32>
    %cst_43 = arith.constant 1.000000e+00 : f32
    %276 = vector.broadcast %cst_43 : f32 to vector<64x64xf32>
    %277 = arith.subf %276, %268 : vector<64x64xf32>
    %278 = arith.mulf %277, %275 : vector<64x64xf32>
    %279 = arith.mulf %268, %225 : vector<64x64xf32>
    %280 = arith.addf %278, %279 : vector<64x64xf32>
    %c5_i32 = arith.constant 5 : i32
    %281 = arith.index_cast %c5_i32 : i32 to index
    %c0_44 = arith.constant 0 : index
    %c0_45 = arith.constant 0 : index
    %282 = vector.load %arg1[%281, %c0_44, %c0_45] : memref<8x128x192xbf16, #tpu.memory_space<vmem>>, vector<1x128x192xbf16>
    %283 = vector.shape_cast %282 : vector<1x128x192xbf16> to vector<128x192xbf16>
    %284 = vector.extract_strided_slice %283 {offsets = [0, 0], sizes = [64, 192], strides = [1, 1]} : vector<128x192xbf16> to vector<64x192xbf16>
    %285 = arith.truncf %254 : vector<64x64xf32> to vector<64x64xbf16>
    %cst_46 = arith.constant dense<0.000000e+00> : vector<64x192xf32>
    %286 = tpu.matmul %285, %0, %cst_46 {dimension_numbers = #tpu.dot_dimension_numbers<[1], [0], [0], [1], [0, 0, 1, 1], [], []>} : vector<64x64xbf16>, vector<64x192xbf16>, vector<64x192xf32> -> vector<64x192xf32>
    %287 = vector.extract_strided_slice %284 {offsets = [0, 0], sizes = [64, 128], strides = [1, 1]} : vector<64x192xbf16> to vector<64x128xbf16>
    %288 = arith.extf %287 : vector<64x128xbf16> to vector<64x128xf32>
    %289 = vector.extract_strided_slice %286 {offsets = [0, 0], sizes = [64, 128], strides = [1, 1]} : vector<64x192xf32> to vector<64x128xf32>
    %290 = arith.addf %288, %289 : vector<64x128xf32>
    %291 = arith.negf %290 : vector<64x128xf32>
    %292 = math.exp %291 : vector<64x128xf32>
    %cst_47 = arith.constant 1.000000e+00 : f32
    %293 = vector.broadcast %cst_47 : f32 to vector<64x128xf32>
    %294 = arith.addf %293, %292 : vector<64x128xf32>
    %295 = arith.divf %293, %294 : vector<64x128xf32>
    %296 = vector.extract_strided_slice %295 {offsets = [0, 0], sizes = [64, 64], strides = [1, 1]} : vector<64x128xf32> to vector<64x64xf32>
    %297 = vector.extract_strided_slice %295 {offsets = [0, 64], sizes = [64, 64], strides = [1, 1]} : vector<64x128xf32> to vector<64x64xf32>
    %298 = vector.extract_strided_slice %284 {offsets = [0, 128], sizes = [64, 64], strides = [1, 1]} : vector<64x192xbf16> to vector<64x64xbf16>
    %299 = arith.extf %298 : vector<64x64xbf16> to vector<64x64xf32>
    %300 = vector.extract_strided_slice %286 {offsets = [0, 128], sizes = [64, 64], strides = [1, 1]} : vector<64x192xf32> to vector<64x64xf32>
    %301 = arith.addf %300, %3 : vector<64x64xf32>
    %302 = arith.mulf %296, %301 : vector<64x64xf32>
    %303 = arith.addf %299, %302 : vector<64x64xf32>
    %304 = math.tanh %303 : vector<64x64xf32>
    %cst_48 = arith.constant 1.000000e+00 : f32
    %305 = vector.broadcast %cst_48 : f32 to vector<64x64xf32>
    %306 = arith.subf %305, %297 : vector<64x64xf32>
    %307 = arith.mulf %306, %304 : vector<64x64xf32>
    %308 = arith.mulf %297, %254 : vector<64x64xf32>
    %309 = arith.addf %307, %308 : vector<64x64xf32>
    %310 = vector.extract_strided_slice %283 {offsets = [64, 0], sizes = [64, 192], strides = [1, 1]} : vector<128x192xbf16> to vector<64x192xbf16>
    %311 = arith.truncf %280 : vector<64x64xf32> to vector<64x64xbf16>
    %cst_49 = arith.constant dense<0.000000e+00> : vector<64x192xf32>
    %312 = tpu.matmul %311, %0, %cst_49 {dimension_numbers = #tpu.dot_dimension_numbers<[1], [0], [0], [1], [0, 0, 1, 1], [], []>} : vector<64x64xbf16>, vector<64x192xbf16>, vector<64x192xf32> -> vector<64x192xf32>
    %313 = vector.extract_strided_slice %310 {offsets = [0, 0], sizes = [64, 128], strides = [1, 1]} : vector<64x192xbf16> to vector<64x128xbf16>
    %314 = arith.extf %313 : vector<64x128xbf16> to vector<64x128xf32>
    %315 = vector.extract_strided_slice %312 {offsets = [0, 0], sizes = [64, 128], strides = [1, 1]} : vector<64x192xf32> to vector<64x128xf32>
    %316 = arith.addf %314, %315 : vector<64x128xf32>
    %317 = arith.negf %316 : vector<64x128xf32>
    %318 = math.exp %317 : vector<64x128xf32>
    %cst_50 = arith.constant 1.000000e+00 : f32
    %319 = vector.broadcast %cst_50 : f32 to vector<64x128xf32>
    %320 = arith.addf %319, %318 : vector<64x128xf32>
    %321 = arith.divf %319, %320 : vector<64x128xf32>
    %322 = vector.extract_strided_slice %321 {offsets = [0, 0], sizes = [64, 64], strides = [1, 1]} : vector<64x128xf32> to vector<64x64xf32>
    %323 = vector.extract_strided_slice %321 {offsets = [0, 64], sizes = [64, 64], strides = [1, 1]} : vector<64x128xf32> to vector<64x64xf32>
    %324 = vector.extract_strided_slice %310 {offsets = [0, 128], sizes = [64, 64], strides = [1, 1]} : vector<64x192xbf16> to vector<64x64xbf16>
    %325 = arith.extf %324 : vector<64x64xbf16> to vector<64x64xf32>
    %326 = vector.extract_strided_slice %312 {offsets = [0, 128], sizes = [64, 64], strides = [1, 1]} : vector<64x192xf32> to vector<64x64xf32>
    %327 = arith.addf %326, %3 : vector<64x64xf32>
    %328 = arith.mulf %322, %327 : vector<64x64xf32>
    %329 = arith.addf %325, %328 : vector<64x64xf32>
    %330 = math.tanh %329 : vector<64x64xf32>
    %cst_51 = arith.constant 1.000000e+00 : f32
    %331 = vector.broadcast %cst_51 : f32 to vector<64x64xf32>
    %332 = arith.subf %331, %323 : vector<64x64xf32>
    %333 = arith.mulf %332, %330 : vector<64x64xf32>
    %334 = arith.mulf %323, %280 : vector<64x64xf32>
    %335 = arith.addf %333, %334 : vector<64x64xf32>
    %c6_i32 = arith.constant 6 : i32
    %336 = arith.index_cast %c6_i32 : i32 to index
    %c0_52 = arith.constant 0 : index
    %c0_53 = arith.constant 0 : index
    %337 = vector.load %arg1[%336, %c0_52, %c0_53] : memref<8x128x192xbf16, #tpu.memory_space<vmem>>, vector<1x128x192xbf16>
    %338 = vector.shape_cast %337 : vector<1x128x192xbf16> to vector<128x192xbf16>
    %339 = vector.extract_strided_slice %338 {offsets = [0, 0], sizes = [64, 192], strides = [1, 1]} : vector<128x192xbf16> to vector<64x192xbf16>
    %340 = arith.truncf %309 : vector<64x64xf32> to vector<64x64xbf16>
    %cst_54 = arith.constant dense<0.000000e+00> : vector<64x192xf32>
    %341 = tpu.matmul %340, %0, %cst_54 {dimension_numbers = #tpu.dot_dimension_numbers<[1], [0], [0], [1], [0, 0, 1, 1], [], []>} : vector<64x64xbf16>, vector<64x192xbf16>, vector<64x192xf32> -> vector<64x192xf32>
    %342 = vector.extract_strided_slice %339 {offsets = [0, 0], sizes = [64, 128], strides = [1, 1]} : vector<64x192xbf16> to vector<64x128xbf16>
    %343 = arith.extf %342 : vector<64x128xbf16> to vector<64x128xf32>
    %344 = vector.extract_strided_slice %341 {offsets = [0, 0], sizes = [64, 128], strides = [1, 1]} : vector<64x192xf32> to vector<64x128xf32>
    %345 = arith.addf %343, %344 : vector<64x128xf32>
    %346 = arith.negf %345 : vector<64x128xf32>
    %347 = math.exp %346 : vector<64x128xf32>
    %cst_55 = arith.constant 1.000000e+00 : f32
    %348 = vector.broadcast %cst_55 : f32 to vector<64x128xf32>
    %349 = arith.addf %348, %347 : vector<64x128xf32>
    %350 = arith.divf %348, %349 : vector<64x128xf32>
    %351 = vector.extract_strided_slice %350 {offsets = [0, 0], sizes = [64, 64], strides = [1, 1]} : vector<64x128xf32> to vector<64x64xf32>
    %352 = vector.extract_strided_slice %350 {offsets = [0, 64], sizes = [64, 64], strides = [1, 1]} : vector<64x128xf32> to vector<64x64xf32>
    %353 = vector.extract_strided_slice %339 {offsets = [0, 128], sizes = [64, 64], strides = [1, 1]} : vector<64x192xbf16> to vector<64x64xbf16>
    %354 = arith.extf %353 : vector<64x64xbf16> to vector<64x64xf32>
    %355 = vector.extract_strided_slice %341 {offsets = [0, 128], sizes = [64, 64], strides = [1, 1]} : vector<64x192xf32> to vector<64x64xf32>
    %356 = arith.addf %355, %3 : vector<64x64xf32>
    %357 = arith.mulf %351, %356 : vector<64x64xf32>
    %358 = arith.addf %354, %357 : vector<64x64xf32>
    %359 = math.tanh %358 : vector<64x64xf32>
    %cst_56 = arith.constant 1.000000e+00 : f32
    %360 = vector.broadcast %cst_56 : f32 to vector<64x64xf32>
    %361 = arith.subf %360, %352 : vector<64x64xf32>
    %362 = arith.mulf %361, %359 : vector<64x64xf32>
    %363 = arith.mulf %352, %309 : vector<64x64xf32>
    %364 = arith.addf %362, %363 : vector<64x64xf32>
    %365 = vector.extract_strided_slice %338 {offsets = [64, 0], sizes = [64, 192], strides = [1, 1]} : vector<128x192xbf16> to vector<64x192xbf16>
    %366 = arith.truncf %335 : vector<64x64xf32> to vector<64x64xbf16>
    %cst_57 = arith.constant dense<0.000000e+00> : vector<64x192xf32>
    %367 = tpu.matmul %366, %0, %cst_57 {dimension_numbers = #tpu.dot_dimension_numbers<[1], [0], [0], [1], [0, 0, 1, 1], [], []>} : vector<64x64xbf16>, vector<64x192xbf16>, vector<64x192xf32> -> vector<64x192xf32>
    %368 = vector.extract_strided_slice %365 {offsets = [0, 0], sizes = [64, 128], strides = [1, 1]} : vector<64x192xbf16> to vector<64x128xbf16>
    %369 = arith.extf %368 : vector<64x128xbf16> to vector<64x128xf32>
    %370 = vector.extract_strided_slice %367 {offsets = [0, 0], sizes = [64, 128], strides = [1, 1]} : vector<64x192xf32> to vector<64x128xf32>
    %371 = arith.addf %369, %370 : vector<64x128xf32>
    %372 = arith.negf %371 : vector<64x128xf32>
    %373 = math.exp %372 : vector<64x128xf32>
    %cst_58 = arith.constant 1.000000e+00 : f32
    %374 = vector.broadcast %cst_58 : f32 to vector<64x128xf32>
    %375 = arith.addf %374, %373 : vector<64x128xf32>
    %376 = arith.divf %374, %375 : vector<64x128xf32>
    %377 = vector.extract_strided_slice %376 {offsets = [0, 0], sizes = [64, 64], strides = [1, 1]} : vector<64x128xf32> to vector<64x64xf32>
    %378 = vector.extract_strided_slice %376 {offsets = [0, 64], sizes = [64, 64], strides = [1, 1]} : vector<64x128xf32> to vector<64x64xf32>
    %379 = vector.extract_strided_slice %365 {offsets = [0, 128], sizes = [64, 64], strides = [1, 1]} : vector<64x192xbf16> to vector<64x64xbf16>
    %380 = arith.extf %379 : vector<64x64xbf16> to vector<64x64xf32>
    %381 = vector.extract_strided_slice %367 {offsets = [0, 128], sizes = [64, 64], strides = [1, 1]} : vector<64x192xf32> to vector<64x64xf32>
    %382 = arith.addf %381, %3 : vector<64x64xf32>
    %383 = arith.mulf %377, %382 : vector<64x64xf32>
    %384 = arith.addf %380, %383 : vector<64x64xf32>
    %385 = math.tanh %384 : vector<64x64xf32>
    %cst_59 = arith.constant 1.000000e+00 : f32
    %386 = vector.broadcast %cst_59 : f32 to vector<64x64xf32>
    %387 = arith.subf %386, %378 : vector<64x64xf32>
    %388 = arith.mulf %387, %385 : vector<64x64xf32>
    %389 = arith.mulf %378, %335 : vector<64x64xf32>
    %390 = arith.addf %388, %389 : vector<64x64xf32>
    %c7_i32 = arith.constant 7 : i32
    %391 = arith.index_cast %c7_i32 : i32 to index
    %c0_60 = arith.constant 0 : index
    %c0_61 = arith.constant 0 : index
    %392 = vector.load %arg1[%391, %c0_60, %c0_61] : memref<8x128x192xbf16, #tpu.memory_space<vmem>>, vector<1x128x192xbf16>
    %393 = vector.shape_cast %392 : vector<1x128x192xbf16> to vector<128x192xbf16>
    %394 = vector.extract_strided_slice %393 {offsets = [0, 0], sizes = [64, 192], strides = [1, 1]} : vector<128x192xbf16> to vector<64x192xbf16>
    %395 = arith.truncf %364 : vector<64x64xf32> to vector<64x64xbf16>
    %cst_62 = arith.constant dense<0.000000e+00> : vector<64x192xf32>
    %396 = tpu.matmul %395, %0, %cst_62 {dimension_numbers = #tpu.dot_dimension_numbers<[1], [0], [0], [1], [0, 0, 1, 1], [], []>} : vector<64x64xbf16>, vector<64x192xbf16>, vector<64x192xf32> -> vector<64x192xf32>
    %397 = vector.extract_strided_slice %394 {offsets = [0, 0], sizes = [64, 128], strides = [1, 1]} : vector<64x192xbf16> to vector<64x128xbf16>
    %398 = arith.extf %397 : vector<64x128xbf16> to vector<64x128xf32>
    %399 = vector.extract_strided_slice %396 {offsets = [0, 0], sizes = [64, 128], strides = [1, 1]} : vector<64x192xf32> to vector<64x128xf32>
    %400 = arith.addf %398, %399 : vector<64x128xf32>
    %401 = arith.negf %400 : vector<64x128xf32>
    %402 = math.exp %401 : vector<64x128xf32>
    %cst_63 = arith.constant 1.000000e+00 : f32
    %403 = vector.broadcast %cst_63 : f32 to vector<64x128xf32>
    %404 = arith.addf %403, %402 : vector<64x128xf32>
    %405 = arith.divf %403, %404 : vector<64x128xf32>
    %406 = vector.extract_strided_slice %405 {offsets = [0, 0], sizes = [64, 64], strides = [1, 1]} : vector<64x128xf32> to vector<64x64xf32>
    %407 = vector.extract_strided_slice %405 {offsets = [0, 64], sizes = [64, 64], strides = [1, 1]} : vector<64x128xf32> to vector<64x64xf32>
    %408 = vector.extract_strided_slice %394 {offsets = [0, 128], sizes = [64, 64], strides = [1, 1]} : vector<64x192xbf16> to vector<64x64xbf16>
    %409 = arith.extf %408 : vector<64x64xbf16> to vector<64x64xf32>
    %410 = vector.extract_strided_slice %396 {offsets = [0, 128], sizes = [64, 64], strides = [1, 1]} : vector<64x192xf32> to vector<64x64xf32>
    %411 = arith.addf %410, %3 : vector<64x64xf32>
    %412 = arith.mulf %406, %411 : vector<64x64xf32>
    %413 = arith.addf %409, %412 : vector<64x64xf32>
    %414 = math.tanh %413 : vector<64x64xf32>
    %cst_64 = arith.constant 1.000000e+00 : f32
    %415 = vector.broadcast %cst_64 : f32 to vector<64x64xf32>
    %416 = arith.subf %415, %407 : vector<64x64xf32>
    %417 = arith.mulf %416, %414 : vector<64x64xf32>
    %418 = arith.mulf %407, %364 : vector<64x64xf32>
    %419 = arith.addf %417, %418 : vector<64x64xf32>
    %420 = vector.extract_strided_slice %393 {offsets = [64, 0], sizes = [64, 192], strides = [1, 1]} : vector<128x192xbf16> to vector<64x192xbf16>
    %421 = arith.truncf %390 : vector<64x64xf32> to vector<64x64xbf16>
    %cst_65 = arith.constant dense<0.000000e+00> : vector<64x192xf32>
    %422 = tpu.matmul %421, %0, %cst_65 {dimension_numbers = #tpu.dot_dimension_numbers<[1], [0], [0], [1], [0, 0, 1, 1], [], []>} : vector<64x64xbf16>, vector<64x192xbf16>, vector<64x192xf32> -> vector<64x192xf32>
    %423 = vector.extract_strided_slice %420 {offsets = [0, 0], sizes = [64, 128], strides = [1, 1]} : vector<64x192xbf16> to vector<64x128xbf16>
    %424 = arith.extf %423 : vector<64x128xbf16> to vector<64x128xf32>
    %425 = vector.extract_strided_slice %422 {offsets = [0, 0], sizes = [64, 128], strides = [1, 1]} : vector<64x192xf32> to vector<64x128xf32>
    %426 = arith.addf %424, %425 : vector<64x128xf32>
    %427 = arith.negf %426 : vector<64x128xf32>
    %428 = math.exp %427 : vector<64x128xf32>
    %cst_66 = arith.constant 1.000000e+00 : f32
    %429 = vector.broadcast %cst_66 : f32 to vector<64x128xf32>
    %430 = arith.addf %429, %428 : vector<64x128xf32>
    %431 = arith.divf %429, %430 : vector<64x128xf32>
    %432 = vector.extract_strided_slice %431 {offsets = [0, 0], sizes = [64, 64], strides = [1, 1]} : vector<64x128xf32> to vector<64x64xf32>
    %433 = vector.extract_strided_slice %431 {offsets = [0, 64], sizes = [64, 64], strides = [1, 1]} : vector<64x128xf32> to vector<64x64xf32>
    %434 = vector.extract_strided_slice %420 {offsets = [0, 128], sizes = [64, 64], strides = [1, 1]} : vector<64x192xbf16> to vector<64x64xbf16>
    %435 = arith.extf %434 : vector<64x64xbf16> to vector<64x64xf32>
    %436 = vector.extract_strided_slice %422 {offsets = [0, 128], sizes = [64, 64], strides = [1, 1]} : vector<64x192xf32> to vector<64x64xf32>
    %437 = arith.addf %436, %3 : vector<64x64xf32>
    %438 = arith.mulf %432, %437 : vector<64x64xf32>
    %439 = arith.addf %435, %438 : vector<64x64xf32>
    %440 = math.tanh %439 : vector<64x64xf32>
    %cst_67 = arith.constant 1.000000e+00 : f32
    %441 = vector.broadcast %cst_67 : f32 to vector<64x64xf32>
    %442 = arith.subf %441, %433 : vector<64x64xf32>
    %443 = arith.mulf %442, %440 : vector<64x64xf32>
    %444 = arith.mulf %433, %390 : vector<64x64xf32>
    %445 = arith.addf %443, %444 : vector<64x64xf32>
    %c8_i32 = arith.constant 8 : i32
    %446 = tpu.concatenate %419, %445 in 0 : vector<64x64xf32>, vector<64x64xf32> -> vector<128x64xf32>
    %c0_68 = arith.constant 0 : index
    %c0_69 = arith.constant 0 : index
    %447 = vector.load %arg4[%c0_68, %c0_69] : memref<64x128xf32, #tpu.memory_space<vmem>>, vector<64x128xf32>
    %cst_70 = arith.constant dense<0.000000e+00> : vector<128x128xf32>
    %448 = tpu.matmul %446, %447, %cst_70 {dimension_numbers = #tpu.dot_dimension_numbers<[1], [0], [0], [1], [0, 0, 1, 1], [], []>} : vector<128x64xf32>, vector<64x128xf32>, vector<128x128xf32> -> vector<128x128xf32>
    %c0_71 = arith.constant 0 : index
    %c0_72 = arith.constant 0 : index
    %449 = vector.load %arg5[%c0_71, %c0_72] : memref<1x128xf32, #tpu.memory_space<vmem>>, vector<1x128xf32>
    %450 = vector.broadcast %449 : vector<1x128xf32> to vector<128x128xf32>
    %451 = arith.addf %448, %450 : vector<128x128xf32>
    %452 = math.tanh %451 : vector<128x128xf32>
    %c0_73 = arith.constant 0 : index
    %c0_74 = arith.constant 0 : index
    %453 = vector.load %arg6[%c0_73, %c0_74] : memref<128x128xf32, #tpu.memory_space<vmem>>, vector<128x128xf32>
    %cst_75 = arith.constant dense<0.000000e+00> : vector<128x128xf32>
    %454 = tpu.matmul %452, %453, %cst_75 {dimension_numbers = #tpu.dot_dimension_numbers<[1], [0], [0], [1], [0, 0, 1, 1], [], []>} : vector<128x128xf32>, vector<128x128xf32>, vector<128x128xf32> -> vector<128x128xf32>
    %c0_76 = arith.constant 0 : index
    %c0_77 = arith.constant 0 : index
    %455 = vector.load %arg7[%c0_76, %c0_77] : memref<1x128xf32, #tpu.memory_space<vmem>>, vector<1x128xf32>
    %456 = vector.broadcast %455 : vector<1x128xf32> to vector<128x128xf32>
    %457 = arith.addf %454, %456 : vector<128x128xf32>
    %458 = math.tanh %457 : vector<128x128xf32>
    %c0_78 = arith.constant 0 : index
    %c0_79 = arith.constant 0 : index
    %459 = vector.load %arg8[%c0_78, %c0_79] : memref<128x128xf32, #tpu.memory_space<vmem>>, vector<128x128xf32>
    %cst_80 = arith.constant dense<0.000000e+00> : vector<128x128xf32>
    %460 = tpu.matmul %458, %459, %cst_80 {dimension_numbers = #tpu.dot_dimension_numbers<[1], [0], [0], [1], [0, 0, 1, 1], [], []>} : vector<128x128xf32>, vector<128x128xf32>, vector<128x128xf32> -> vector<128x128xf32>
    %c0_81 = arith.constant 0 : index
    %c0_82 = arith.constant 0 : index
    %461 = vector.load %arg9[%c0_81, %c0_82] : memref<1x128xf32, #tpu.memory_space<vmem>>, vector<1x128xf32>
    %462 = vector.broadcast %461 : vector<1x128xf32> to vector<128x128xf32>
    %463 = arith.addf %460, %462 : vector<128x128xf32>
    %464 = arith.negf %463 : vector<128x128xf32>
    %465 = math.exp %464 : vector<128x128xf32>
    %cst_83 = arith.constant 1.000000e+00 : f32
    %466 = vector.broadcast %cst_83 : f32 to vector<128x128xf32>
    %467 = arith.addf %466, %465 : vector<128x128xf32>
    %468 = arith.divf %466, %467 : vector<128x128xf32>
    %c0_84 = arith.constant 0 : index
    %c0_85 = arith.constant 0 : index
    %469 = vector.load %arg10[%c0_84, %c0_85] : memref<128x128xf32, #tpu.memory_space<vmem>>, vector<128x128xf32>
    tpu.vector_store %arg10[%c0_84, %c0_85], %468 {strides = array<i32>} : memref<128x128xf32, #tpu.memory_space<vmem>>, vector<128x128xf32>,
    return
  }
  func.func @transform_0(%arg0: i32) -> (i32, i32, i32) {
    %c0_i32 = arith.constant 0 : i32
    %c0_i32_0 = arith.constant 0 : i32
    %c0_i32_1 = arith.constant 0 : i32
    return %c0_i32, %arg0, %c0_i32_0 : i32, i32, i32
  }
  func.func @transform_1(%arg0: i32) -> (i32, i32) {
    %c0_i32 = arith.constant 0 : i32
    %c0_i32_0 = arith.constant 0 : i32
    %c0_i32_1 = arith.constant 0 : i32
    return %c0_i32, %c0_i32_0 : i32, i32
  }
  func.func @transform_2(%arg0: i32) -> (i32, i32) {
    %c0_i32 = arith.constant 0 : i32
    %c0_i32_0 = arith.constant 0 : i32
    %c0_i32_1 = arith.constant 0 : i32
    return %c0_i32, %c0_i32_0 : i32, i32
  }
  func.func @transform_3(%arg0: i32) -> (i32, i32) {
    %c0_i32 = arith.constant 0 : i32
    %c0_i32_0 = arith.constant 0 : i32
    %c0_i32_1 = arith.constant 0 : i32
    return %c0_i32, %c0_i32_0 : i32, i32
  }
  func.func @transform_4(%arg0: i32) -> (i32, i32) {
    %c0_i32 = arith.constant 0 : i32
    %c0_i32_0 = arith.constant 0 : i32
    %c0_i32_1 = arith.constant 0 : i32
    return %c0_i32, %c0_i32_0 : i32, i32
  }
  func.func @transform_5(%arg0: i32) -> (i32, i32) {
    %c0_i32 = arith.constant 0 : i32
    %c0_i32_0 = arith.constant 0 : i32
    %c0_i32_1 = arith.constant 0 : i32
    return %c0_i32, %c0_i32_0 : i32, i32
  }
  func.func @transform_6(%arg0: i32) -> (i32, i32) {
    %c0_i32 = arith.constant 0 : i32
    %c0_i32_0 = arith.constant 0 : i32
    %c0_i32_1 = arith.constant 0 : i32
    return %c0_i32, %c0_i32_0 : i32, i32
  }
  func.func @transform_7(%arg0: i32) -> (i32, i32) {
    %c0_i32 = arith.constant 0 : i32
    %c0_i32_0 = arith.constant 0 : i32
    %c0_i32_1 = arith.constant 0 : i32
    return %c0_i32, %c0_i32_0 : i32, i32
  }
  func.func @transform_8(%arg0: i32) -> (i32, i32) {
    %c0_i32 = arith.constant 0 : i32
    %c0_i32_0 = arith.constant 0 : i32
    %c0_i32_1 = arith.constant 0 : i32
    return %c0_i32, %c0_i32_0 : i32, i32
  }
  func.func @transform_9(%arg0: i32) -> (i32, i32) {
    %c0_i32 = arith.constant 0 : i32
    %c0_i32_0 = arith.constant 0 : i32
    return %arg0, %c0_i32 : i32, i32
  }
}

</mosaic_0001>

<llo_original>
// kernel: tpu_custom_call.1
$region0: #{tpu_custom_call.1}
  #allocation0 [shape = 'u32[]', space=smem, size = 0x4, offset = 0x4, fixed_abs, tag = 'smem constant byte address 0x4 - core index']
  #allocation1 [shape = 'u32[144,128]{1,0:T(1,128)}', space=vmem, size = 0x12000, scoped, tag = 'internal scratch']
  %s0 = inlined_call_operand.vmem [shape: bf16[8,128,192], index: 0, kind: input, shape index: {}]
  %s1 = inlined_call_operand.vmem [shape: bf16[64,192], index: 1, kind: input, shape index: {}]
  %s2 = inlined_call_operand.vmem [shape: f32[1,64], index: 2, kind: input, shape index: {}]
  %s3 = inlined_call_operand.vmem [shape: f32[64,128], index: 3, kind: input, shape index: {}]
  %s4 = inlined_call_operand.vmem [shape: f32[1,128], index: 4, kind: input, shape index: {}]
  %s5 = inlined_call_operand.vmem [shape: f32[128,128], index: 5, kind: input, shape index: {}]
  %s6 = inlined_call_operand.vmem [shape: f32[1,128], index: 6, kind: input, shape index: {}]
  %s7 = inlined_call_operand.vmem [shape: f32[128,128], index: 7, kind: input, shape index: {}]
  %s8 = inlined_call_operand.vmem [shape: f32[1,128], index: 8, kind: input, shape index: {}]
  %s9 = inlined_call_operand.hbm [shape: f32[128,128], index: 9, kind: output, shape index: {}]
  %s10 = sld [smem:[#allocation0]]
  $region46: #{tpu_custom_call.1} parent=0
    _
  %s12 = ssub.s32 1, %s10
  %s13 = scalar_select 0, %s12, %s10
  $region1: #{tpu_custom_call.1} parent=0
    #allocation2 [shape = 'u8[65536]{0}', space=vmem, size = 0x10000, scoped, tag = 'output window, operand 0, single buffered']
    #allocation3 [shape = 's32[1]{0}', space=sflag, size = 0x4, scoped, tag = 'scoped memory for tpu_custom_call.1']
    %14 = vsyncpa [#allocation3], 0
    // Predicated region
    $region2: #{tpu_custom_call.1} parent=1 // pred_check
      _
    $region3: #{tpu_custom_call.1} parent=1 // pred_check_branch
      %16 = sbr.rel (0) target = $region5
    $region4: #{tpu_custom_call.1} parent=1 // pred_region
      _
    $region5: #{tpu_custom_call.1} parent=1 // pred_fallthru
      _
    // Predicated region
    $region6: #{tpu_custom_call.1} parent=1 // pred_check
      _
    $region7: #{tpu_custom_call.1} parent=1 // pred_check_branch
      %18 = sbr.rel (0) target = $region9
    $region8: #{tpu_custom_call.1} parent=1 // pred_region
      _
    $region9: #{tpu_custom_call.1} parent=1 // pred_fallthru
      _
    // Predicated region
    $region10: #{tpu_custom_call.1} parent=1 // pred_check
      _
    $region11: #{tpu_custom_call.1} parent=1 // pred_check_branch
      %20 = sbr.rel (0) target = $region13
    $region12: #{tpu_custom_call.1} parent=1 // pred_region
      _
    $region13: #{tpu_custom_call.1} parent=1 // pred_fallthru
      _
    // Predicated region
    $region14: #{tpu_custom_call.1} parent=1 // pred_check
      _
    $region15: #{tpu_custom_call.1} parent=1 // pred_check_branch
      %22 = sbr.rel (0) target = $region17
    $region16: #{tpu_custom_call.1} parent=1 // pred_region
      _
    $region17: #{tpu_custom_call.1} parent=1 // pred_fallthru
      _
    // Predicated region
    $region18: #{tpu_custom_call.1} parent=1 // pred_check
      _
    $region19: #{tpu_custom_call.1} parent=1 // pred_check_branch
      %24 = sbr.rel (0) target = $region21
    $region20: #{tpu_custom_call.1} parent=1 // pred_region
      _
    $region21: #{tpu_custom_call.1} parent=1 // pred_fallthru
      _
    // Predicated region
    $region22: #{tpu_custom_call.1} parent=1 // pred_check
      _
    $region23: #{tpu_custom_call.1} parent=1 // pred_check_branch
      %26 = sbr.rel (0) target = $region25
    $region24: #{tpu_custom_call.1} parent=1 // pred_region
      _
    $region25: #{tpu_custom_call.1} parent=1 // pred_fallthru
      _
    // Predicated region
    $region26: #{tpu_custom_call.1} parent=1 // pred_check
      _
    $region27: #{tpu_custom_call.1} parent=1 // pred_check_branch
      %28 = sbr.rel (0) target = $region29
    $region28: #{tpu_custom_call.1} parent=1 // pred_region
      _
    $region29: #{tpu_custom_call.1} parent=1 // pred_fallthru
      _
    // Predicated region
    $region30: #{tpu_custom_call.1} parent=1 // pred_check
      _
    $region31: #{tpu_custom_call.1} parent=1 // pred_check_branch
      %30 = sbr.rel (0) target = $region33
    $region32: #{tpu_custom_call.1} parent=1 // pred_region
      _
    $region33: #{tpu_custom_call.1} parent=1 // pred_fallthru
      _
    // Predicated region
    $region34: #{tpu_custom_call.1} parent=1 // pred_check
      _
    $region35: #{tpu_custom_call.1} parent=1 // pred_check_branch
      %32 = sbr.rel (0) target = $region37
    $region36: #{tpu_custom_call.1} parent=1 // pred_region
      _
    $region37: #{tpu_custom_call.1} parent=1 // pred_fallthru
      _
    %v34 = vld [vmem:[%s1] sm:$0xff]
    %v35 = vld [vmem:[%s1 + $0x8] sm:$0xff]
    %v36 = vld [vmem:[%s1 + $0x10] sm:$0xff]
    %v37 = vld [vmem:[%s1 + $0x18] sm:$0xff]
    %v38 = vld [vmem:[%s1 + $0x20] sm:$0xff]
    %v39 = vld [vmem:[%s1 + $0x28] sm:$0xff]
    %v40 = vld [vmem:[%s1 + $0x30] sm:$0xff]
    %v41 = vld [vmem:[%s1 + $0x38] sm:$0xff]
    %v42 = vld [vmem:[%s2] sm:$0x1]
    %v44 = vlaneseq
    %v45 = vshrl.u32 %v44, 7
    %v46 = vsub.s32 0, %v45
    %v47 = vrot.slane %v42, %v46
    %v49 = vld [vmem:[%s0] sm:$0xff]
    %v50 = vld [vmem:[%s0 + $0x8] sm:$0xff]
    %v51 = vld [vmem:[%s0 + $0x10] sm:$0xff]
    %v52 = vld [vmem:[%s0 + $0x18] sm:$0xff]
    %v53 = vld [vmem:[%s0 + $0x20] sm:$0xff]
    %v54 = vld [vmem:[%s0 + $0x28] sm:$0xff]
    %v55 = vld [vmem:[%s0 + $0x30] sm:$0xff]
    %v56 = vld [vmem:[%s0 + $0x38] sm:$0xff]
    %v57 = vld [vmem:[%s0 + $0x40] sm:$0xff]
    %v58 = vld [vmem:[%s0 + $0x48] sm:$0xff]
    %v59 = vld [vmem:[%s0 + $0x50] sm:$0xff]
    %v60 = vld [vmem:[%s0 + $0x58] sm:$0xff]
    %v61 = vld [vmem:[%s0 + $0x60] sm:$0xff]
    %v62 = vld [vmem:[%s0 + $0x68] sm:$0xff]
    %v63 = vld [vmem:[%s0 + $0x70] sm:$0xff]
    %v64 = vld [vmem:[%s0 + $0x78] sm:$0xff]
    %v73 = vunpack.c.l.b16 %v34
    %v74 = vunpack.c.h.b16 %v34
    %v75 = vunpack.c.l.b16 %v35
    %v76 = vunpack.c.h.b16 %v35
    %v77 = vunpack.c.l.b16 %v36
    %v78 = vunpack.c.h.b16 %v36
    %v79 = vunpack.c.l.b16 %v37
    %v80 = vunpack.c.h.b16 %v37
    %v81 = vunpack.c.l.b16 %v38
    %v82 = vunpack.c.h.b16 %v38
    %v83 = vunpack.c.l.b16 %v39
    %v84 = vunpack.c.h.b16 %v39
    %v85 = vunpack.c.l.b16 %v40
    %v86 = vunpack.c.h.b16 %v40
    %v87 = vunpack.c.l.b16 %v41
    %v88 = vunpack.c.h.b16 %v41
    %v89 = vpack.c.b16 %v75, %v73
    %v90 = vpack.c.b16 %v76, %v74
    %v91 = vpack.c.b16 %v79, %v77
    %v92 = vpack.c.b16 %v80, %v78
    %v93 = vpack.c.b16 %v83, %v81
    %v94 = vpack.c.b16 %v84, %v82
    %v95 = vpack.c.b16 %v87, %v85
    %v96 = vpack.c.b16 %v88, %v86
    %vm105 = vcmask 523264
    %v107 = vsel %vm105, 0, 0
    %109 = vmatprep.subr.bf16.mxu0 %v90
    %110 = vmatpush1.bf16.msra.mxu0 %v89
    %111 = vmatprep.subr.bf16.mxu0 %v92
    %112 = vmatpush1.bf16.msra.mxu0 %v91
    %113 = vmatprep.subr.bf16.mxu0 %v94
    %114 = vmatpush1.bf16.msra.mxu0 %v93
    %115 = vmatprep.subr.bf16.mxu0 %v96
    %116 = vmatpush1.bf16.msra.mxu0 %v95
    %117 = vmatprep.subr.bf16.mxu0 0
    %118 = vmatpush1.bf16.msra.mxu0 0
    %119 = vmatprep.subr.bf16.mxu0 0
    %120 = vmatpush1.bf16.msra.mxu0 0
    %121 = vmatprep.subr.bf16.mxu0 0
    %122 = vmatpush1.bf16.msra.mxu0 0
    %123 = vmatprep.subr.bf16.mxu0 0
    %124 = vmatpush1.bf16.msra.mxu0 0
    %125 = vmatprep.subr.bf16.mxu0 0
    %126 = vmatpush1.bf16.msra.mxu0 0
    %127 = vmatprep.subr.bf16.mxu0 0
    %128 = vmatpush1.bf16.msra.mxu0 0
    %129 = vmatprep.subr.bf16.mxu0 0
    %130 = vmatpush1.bf16.msra.mxu0 0
    %131 = vmatprep.subr.bf16.mxu0 0
    %132 = vmatpush1.bf16.msra.mxu0 0
    %133 = vmatprep.subr.bf16.mxu0 0
    %134 = vmatpush1.bf16.msra.mxu0 0
    %135 = vmatprep.subr.bf16.mxu0 0
    %136 = vmatpush1.bf16.msra.mxu0 0
    %137 = vmatprep.subr.bf16.mxu0 0
    %138 = vmatpush1.bf16.msra.mxu0 0
    %139 = vmatprep.subr.bf16.mxu0 0
    %140 = vmatpush1.bf16.msra.mxu0 0
    %141 = vmatprep.mubr.bf16.mxu0 0
    %142 = vmatmul.mubr.bf16.gmra.mrb[0].mxu0 %v107
    %v143 = vpop.f32.mrb[0].mxu0
    %v144 = vadd.f32 0.0, %v143
    %v145 = vpop.f32.mrb[0].mxu0
    %v146 = vadd.f32 0.0, %v145
    %v147 = vpop.f32.mrb[0].mxu0
    %v148 = vadd.f32 0.0, %v147
    %v149 = vpop.f32.mrb[0].mxu0
    %v150 = vadd.f32 0.0, %v149
    %151 = vmatprep.mubr.bf16.mxu0 0
    %152 = vmatmul.mubr.bf16.gmra.mrb[0].mxu0 %v107
    %v153 = vpop.f32.mrb[0].mxu0
    %v154 = vadd.f32 0.0, %v153
    %v155 = vpop.f32.mrb[0].mxu0
    %v156 = vadd.f32 0.0, %v155
    %v157 = vpop.f32.mrb[0].mxu0
    %v158 = vadd.f32 0.0, %v157
    %v159 = vpop.f32.mrb[0].mxu0
    %v160 = vadd.f32 0.0, %v159
    %161 = vmatprep.mubr.bf16.mxu0 0
    %162 = vmatmul.mubr.bf16.gmra.mrb[0].mxu0 %v107
    %v163 = vpop.f32.mrb[0].mxu0
    %v164 = vadd.f32 0.0, %v163
    %v165 = vpop.f32.mrb[0].mxu0
    %v166 = vadd.f32 0.0, %v165
    %v167 = vpop.f32.mrb[0].mxu0
    %v168 = vadd.f32 0.0, %v167
    %v169 = vpop.f32.mrb[0].mxu0
    %v170 = vadd.f32 0.0, %v169
    %171 = vmatprep.mubr.bf16.mxu0 0
    %172 = vmatmul.mubr.bf16.gmra.mrb[0].mxu0 %v107
    %v173 = vpop.f32.mrb[0].mxu0
    %v174 = vadd.f32 0.0, %v173
    %v175 = vpop.f32.mrb[0].mxu0
    %v176 = vadd.f32 0.0, %v175
    %v177 = vpop.f32.mrb[0].mxu0
    %v178 = vadd.f32 0.0, %v177
    %v179 = vpop.f32.mrb[0].mxu0
    %v180 = vadd.f32 0.0, %v179
    %181 = vdwg.mxu0
    %v182 = vunpack.c.l.bf16 %v49
    %v183 = vunpack.c.l.bf16 %v50
    %v184 = vunpack.c.l.bf16 %v51
    %v185 = vunpack.c.l.bf16 %v52
    %v186 = vunpack.c.l.bf16 %v53
    %v187 = vunpack.c.l.bf16 %v54
    %v188 = vunpack.c.l.bf16 %v55
    %v189 = vunpack.c.l.bf16 %v56
    %v190 = vadd.f32 %v182, %v144
    %v191 = vadd.f32 %v183, %v148
    %v192 = vadd.f32 %v184, %v154
    %v193 = vadd.f32 %v185, %v158
    %v194 = vadd.f32 %v186, %v164
    %v195 = vadd.f32 %v187, %v168
    %v196 = vadd.f32 %v188, %v174
    %v197 = vadd.f32 %v189, %v178
    %v198 = vxor.u32 %v190, 2147483648
    %v199 = vxor.u32 %v191, 2147483648
    %v200 = vxor.u32 %v192, 2147483648
    %v201 = vxor.u32 %v193, 2147483648
    %v202 = vxor.u32 %v194, 2147483648
    %v203 = vxor.u32 %v195, 2147483648
    %v204 = vxor.u32 %v196, 2147483648
    %v205 = vxor.u32 %v197, 2147483648
    %v206 = vmul.f32 %v198, 1.442695
    %v207 = vpow.pop %v206
    %v208 = vmul.f32 %v199, 1.442695
    %v209 = vpow.pop %v208
    %v210 = vmul.f32 %v200, 1.442695
    %v211 = vpow.pop %v210
    %v212 = vmul.f32 %v201, 1.442695
    %v213 = vpow.pop %v212
    %v214 = vmul.f32 %v202, 1.442695
    %v215 = vpow.pop %v214
    %v216 = vmul.f32 %v203, 1.442695
    %v217 = vpow.pop %v216
    %v218 = vmul.f32 %v204, 1.442695
    %v219 = vpow.pop %v218
    %v220 = vmul.f32 %v205, 1.442695
    %v221 = vpow.pop %v220
    %v222 = vadd.f32 %v207, 1.0
    %v223 = vadd.f32 %v209, 1.0
    %v224 = vadd.f32 %v211, 1.0
    %v225 = vadd.f32 %v213, 1.0
    %v226 = vadd.f32 %v215, 1.0
    %v227 = vadd.f32 %v217, 1.0
    %v228 = vadd.f32 %v219, 1.0
    %v229 = vadd.f32 %v221, 1.0
    %v230 = vrcp.pop %v222
    %v231 = vmul.f32 1.0, %v230
    %v232 = vrcp.pop %v223
    %v233 = vmul.f32 1.0, %v232
    %v234 = vrcp.pop %v224
    %v235 = vmul.f32 1.0, %v234
    %v236 = vrcp.pop %v225
    %v237 = vmul.f32 1.0, %v236
    %v238 = vrcp.pop %v226
    %v239 = vmul.f32 1.0, %v238
    %v240 = vrcp.pop %v227
    %v241 = vmul.f32 1.0, %v240
    %v242 = vrcp.pop %v228
    %v243 = vmul.f32 1.0, %v242
    %v244 = vrcp.pop %v229
    %v245 = vmul.f32 1.0, %v244
    %v254 = vrot.slane %v49, 4
    %v255 = vrot.slane %v50, 4
    %v256 = vrot.slane %v51, 4
    %v257 = vrot.slane %v52, 4
    %v258 = vrot.slane %v53, 4
    %v259 = vrot.slane %v54, 4
    %v260 = vrot.slane %v55, 4
    %v261 = vrot.slane %v56, 4
    %v270 = vunpack.c.l.bf16 %v254
    %v271 = vunpack.c.l.bf16 %v255
    %v272 = vunpack.c.l.bf16 %v256
    %v273 = vunpack.c.l.bf16 %v257
    %v274 = vunpack.c.l.bf16 %v258
    %v275 = vunpack.c.l.bf16 %v259
    %v276 = vunpack.c.l.bf16 %v260
    %v277 = vunpack.c.l.bf16 %v261
    %v278 = vadd.f32 %v146, %v47
    %v279 = vadd.f32 %v150, %v47
    %v280 = vadd.f32 %v156, %v47
    %v281 = vadd.f32 %v160, %v47
    %v282 = vadd.f32 %v166, %v47
    %v283 = vadd.f32 %v170, %v47
    %v284 = vadd.f32 %v176, %v47
    %v285 = vadd.f32 %v180, %v47
    %v286 = vmul.f32 %v231, %v278
    %v287 = vmul.f32 %v233, %v279
    %v288 = vmul.f32 %v235, %v280
    %v289 = vmul.f32 %v237, %v281
    %v290 = vmul.f32 %v239, %v282
    %v291 = vmul.f32 %v241, %v283
    %v292 = vmul.f32 %v243, %v284
    %v293 = vmul.f32 %v245, %v285
    %v294 = vadd.f32 %v270, %v286
    %v295 = vadd.f32 %v271, %v287
    %v296 = vadd.f32 %v272, %v288
    %v297 = vadd.f32 %v273, %v289
    %v298 = vadd.f32 %v274, %v290
    %v299 = vadd.f32 %v275, %v291
    %v300 = vadd.f32 %v276, %v292
    %v301 = vadd.f32 %v277, %v293
    %v302 = vtanh.pop %v294
    %v303 = vtanh.pop %v295
    %v304 = vtanh.pop %v296
    %v305 = vtanh.pop %v297
    %v306 = vtanh.pop %v298
    %v307 = vtanh.pop %v299
    %v308 = vtanh.pop %v300
    %v309 = vtanh.pop %v301
    %v310 = vsub.f32 1.0, %v231
    %v311 = vsub.f32 1.0, %v233
    %v312 = vsub.f32 1.0, %v235
    %v313 = vsub.f32 1.0, %v237
    %v314 = vsub.f32 1.0, %v239
    %v315 = vsub.f32 1.0, %v241
    %v316 = vsub.f32 1.0, %v243
    %v317 = vsub.f32 1.0, %v245
    %326 = vrot.lane.b32.xlu0 %v302, 64
    %v327 = vpop.permute.xlu0 %326
    %328 = vrot.lane.b32.xlu0 %v303, 64
    %v329 = vpop.permute.xlu0 %328
    %330 = vrot.lane.b32.xlu0 %v304, 64
    %v331 = vpop.permute.xlu0 %330
    %332 = vrot.lane.b32.xlu0 %v305, 64
    %v333 = vpop.permute.xlu0 %332
    %334 = vrot.lane.b32.xlu0 %v306, 64
    %v335 = vpop.permute.xlu0 %334
    %336 = vrot.lane.b32.xlu0 %v307, 64
    %v337 = vpop.permute.xlu0 %336
    %338 = vrot.lane.b32.xlu0 %v308, 64
    %v339 = vpop.permute.xlu0 %338
    %340 = vrot.lane.b32.xlu0 %v309, 64
    %v341 = vpop.permute.xlu0 %340
    %v350 = vmul.f32 %v310, %v327
    %v351 = vmul.f32 %v311, %v329
    %v352 = vmul.f32 %v312, %v331
    %v353 = vmul.f32 %v313, %v333
    %v354 = vmul.f32 %v314, %v335
    %v355 = vmul.f32 %v315, %v337
    %v356 = vmul.f32 %v316, %v339
    %v357 = vmul.f32 %v317, %v341
    %v358 = vmul.f32 %v231, 0.0
    %v359 = vmul.f32 %v233, 0.0
    %v360 = vmul.f32 %v235, 0.0
    %v361 = vmul.f32 %v237, 0.0
    %v362 = vmul.f32 %v239, 0.0
    %v363 = vmul.f32 %v241, 0.0
    %v364 = vmul.f32 %v243, 0.0
    %v365 = vmul.f32 %v245, 0.0
    %v366 = vadd.f32 %v350, %v358
    %v367 = vadd.f32 %v351, %v359
    %v368 = vadd.f32 %v352, %v360
    %v369 = vadd.f32 %v353, %v361
    %v370 = vadd.f32 %v354, %v362
    %v371 = vadd.f32 %v355, %v363
    %v372 = vadd.f32 %v356, %v364
    %v373 = vadd.f32 %v357, %v365
    %v374 = vunpack.c.l.bf16 %v57
    %v375 = vunpack.c.l.bf16 %v58
    %v376 = vunpack.c.l.bf16 %v59
    %v377 = vunpack.c.l.bf16 %v60
    %v378 = vunpack.c.l.bf16 %v61
    %v379 = vunpack.c.l.bf16 %v62
    %v380 = vunpack.c.l.bf16 %v63
    %v381 = vunpack.c.l.bf16 %v64
    %v382 = vadd.f32 %v374, %v144
    %v383 = vadd.f32 %v375, %v148
    %v384 = vadd.f32 %v376, %v154
    %v385 = vadd.f32 %v377, %v158
    %v386 = vadd.f32 %v378, %v164
    %v387 = vadd.f32 %v379, %v168
    %v388 = vadd.f32 %v380, %v174
    %v389 = vadd.f32 %v381, %v178
    %v390 = vxor.u32 %v382, 2147483648
    %v391 = vxor.u32 %v383, 2147483648
    %v392 = vxor.u32 %v384, 2147483648
    %v393 = vxor.u32 %v385, 2147483648
    %v394 = vxor.u32 %v386, 2147483648
    %v395 = vxor.u32 %v387, 2147483648
    %v396 = vxor.u32 %v388, 2147483648
    %v397 = vxor.u32 %v389, 2147483648
    %v398 = vmul.f32 %v390, 1.442695
    %v399 = vpow.pop %v398
    %v400 = vmul.f32 %v391, 1.442695
    %v401 = vpow.pop %v400
    %v402 = vmul.f32 %v392, 1.442695
    %v403 = vpow.pop %v402
    %v404 = vmul.f32 %v393, 1.442695
    %v405 = vpow.pop %v404
    %v406 = vmul.f32 %v394, 1.442695
    %v407 = vpow.pop %v406
    %v408 = vmul.f32 %v395, 1.442695
    %v409 = vpow.pop %v408
    %v410 = vmul.f32 %v396, 1.442695
    %v411 = vpow.pop %v410
    %v412 = vmul.f32 %v397, 1.442695
    %v413 = vpow.pop %v412
    %v414 = vadd.f32 %v399, 1.0
    %v415 = vadd.f32 %v401, 1.0
    %v416 = vadd.f32 %v403, 1.0
    %v417 = vadd.f32 %v405, 1.0
    %v418 = vadd.f32 %v407, 1.0
    %v419 = vadd.f32 %v409, 1.0
    %v420 = vadd.f32 %v411, 1.0
    %v421 = vadd.f32 %v413, 1.0
    %v422 = vrcp.pop %v414
    %v423 = vmul.f32 1.0, %v422
    %v424 = vrcp.pop %v415
    %v425 = vmul.f32 1.0, %v424
    %v426 = vrcp.pop %v416
    %v427 = vmul.f32 1.0, %v426
    %v428 = vrcp.pop %v417
    %v429 = vmul.f32 1.0, %v428
    %v430 = vrcp.pop %v418
    %v431 = vmul.f32 1.0, %v430
    %v432 = vrcp.pop %v419
    %v433 = vmul.f32 1.0, %v432
    %v434 = vrcp.pop %v420
    %v435 = vmul.f32 1.0, %v434
    %v436 = vrcp.pop %v421
    %v437 = vmul.f32 1.0, %v436
    %v446 = vrot.slane %v57, 4
    %v447 = vrot.slane %v58, 4
    %v448 = vrot.slane %v59, 4
    %v449 = vrot.slane %v60, 4
    %v450 = vrot.slane %v61, 4
    %v451 = vrot.slane %v62, 4
    %v452 = vrot.slane %v63, 4
    %v453 = vrot.slane %v64, 4
    %v462 = vunpack.c.l.bf16 %v446
    %v463 = vunpack.c.l.bf16 %v447
    %v464 = vunpack.c.l.bf16 %v448
    %v465 = vunpack.c.l.bf16 %v449
    %v466 = vunpack.c.l.bf16 %v450
    %v467 = vunpack.c.l.bf16 %v451
    %v468 = vunpack.c.l.bf16 %v452
    %v469 = vunpack.c.l.bf16 %v453
    %v470 = vmul.f32 %v423, %v278
    %v471 = vmul.f32 %v425, %v279
    %v472 = vmul.f32 %v427, %v280
    %v473 = vmul.f32 %v429, %v281
    %v474 = vmul.f32 %v431, %v282
    %v475 = vmul.f32 %v433, %v283
    %v476 = vmul.f32 %v435, %v284
    %v477 = vmul.f32 %v437, %v285
    %v478 = vadd.f32 %v462, %v470
    %v479 = vadd.f32 %v463, %v471
    %v480 = vadd.f32 %v464, %v472
    %v481 = vadd.f32 %v465, %v473
    %v482 = vadd.f32 %v466, %v474
    %v483 = vadd.f32 %v467, %v475
    %v484 = vadd.f32 %v468, %v476
    %v485 = vadd.f32 %v469, %v477
    %v486 = vtanh.pop %v478
    %v487 = vtanh.pop %v479
    %v488 = vtanh.pop %v480
    %v489 = vtanh.pop %v481
    %v490 = vtanh.pop %v482
    %v491 = vtanh.pop %v483
    %v492 = vtanh.pop %v484
    %v493 = vtanh.pop %v485
    %v494 = vsub.f32 1.0, %v423
    %v495 = vsub.f32 1.0, %v425
    %v496 = vsub.f32 1.0, %v427
    %v497 = vsub.f32 1.0, %v429
    %v498 = vsub.f32 1.0, %v431
    %v499 = vsub.f32 1.0, %v433
    %v500 = vsub.f32 1.0, %v435
    %v501 = vsub.f32 1.0, %v437
    %510 = vrot.lane.b32.xlu0 %v486, 64
    %v511 = vpop.permute.xlu0 %510
    %512 = vrot.lane.b32.xlu0 %v487, 64
    %v513 = vpop.permute.xlu0 %512
    %514 = vrot.lane.b32.xlu0 %v488, 64
    %v515 = vpop.permute.xlu0 %514
    %516 = vrot.lane.b32.xlu0 %v489, 64
    %v517 = vpop.permute.xlu0 %516
    %518 = vrot.lane.b32.xlu0 %v490, 64
    %v519 = vpop.permute.xlu0 %518
    %520 = vrot.lane.b32.xlu0 %v491, 64
    %v521 = vpop.permute.xlu0 %520
    %522 = vrot.lane.b32.xlu0 %v492, 64
    %v523 = vpop.permute.xlu0 %522
    %524 = vrot.lane.b32.xlu0 %v493, 64
    %v525 = vpop.permute.xlu0 %524
    %v534 = vmul.f32 %v494, %v511
    %v535 = vmul.f32 %v495, %v513
    %v536 = vmul.f32 %v496, %v515
    %v537 = vmul.f32 %v497, %v517
    %v538 = vmul.f32 %v498, %v519
    %v539 = vmul.f32 %v499, %v521
    %v540 = vmul.f32 %v500, %v523
    %v541 = vmul.f32 %v501, %v525
    %v542 = vmul.f32 %v423, 0.0
    %v543 = vmul.f32 %v425, 0.0
    %v544 = vmul.f32 %v427, 0.0
    %v545 = vmul.f32 %v429, 0.0
    %v546 = vmul.f32 %v431, 0.0
    %v547 = vmul.f32 %v433, 0.0
    %v548 = vmul.f32 %v435, 0.0
    %v549 = vmul.f32 %v437, 0.0
    %v550 = vadd.f32 %v534, %v542
    %v551 = vadd.f32 %v535, %v543
    %v552 = vadd.f32 %v536, %v544
    %v553 = vadd.f32 %v537, %v545
    %v554 = vadd.f32 %v538, %v546
    %v555 = vadd.f32 %v539, %v547
    %v556 = vadd.f32 %v540, %v548
    %v557 = vadd.f32 %v541, %v549
    %s558 = scalar_lea.vmem %s0, 128
    %v559 = vld [vmem:[%s558] sm:$0xff]
    %v560 = vld [vmem:[%s558 + $0x8] sm:$0xff]
    %v561 = vld [vmem:[%s558 + $0x10] sm:$0xff]
    %v562 = vld [vmem:[%s558 + $0x18] sm:$0xff]
    %v563 = vld [vmem:[%s558 + $0x20] sm:$0xff]
    %v564 = vld [vmem:[%s558 + $0x28] sm:$0xff]
    %v565 = vld [vmem:[%s558 + $0x30] sm:$0xff]
    %v566 = vld [vmem:[%s558 + $0x38] sm:$0xff]
    %v567 = vld [vmem:[%s558 + $0x40] sm:$0xff]
    %v568 = vld [vmem:[%s558 + $0x48] sm:$0xff]
    %v569 = vld [vmem:[%s558 + $0x50] sm:$0xff]
    %v570 = vld [vmem:[%s558 + $0x58] sm:$0xff]
    %v571 = vld [vmem:[%s558 + $0x60] sm:$0xff]
    %v572 = vld [vmem:[%s558 + $0x68] sm:$0xff]
    %v573 = vld [vmem:[%s558 + $0x70] sm:$0xff]
    %v574 = vld [vmem:[%s558 + $0x78] sm:$0xff]
    %v575 = vpack.c.bf16 %v367, %v366
    %v576 = vpack.c.bf16 %v369, %v368
    %v577 = vpack.c.bf16 %v371, %v370
    %v578 = vpack.c.bf16 %v373, %v372
    %583 = vrot.lane.b32.xlu0 %v575, 64
    %v584 = vpop.permute.xlu0 %583
    %585 = vrot.lane.b32.xlu0 %v576, 64
    %v586 = vpop.permute.xlu0 %585
    %587 = vrot.lane.b32.xlu0 %v577, 64
    %v588 = vpop.permute.xlu0 %587
    %589 = vrot.lane.b32.xlu0 %v578, 64
    %v590 = vpop.permute.xlu0 %589
    %v592 = vsel %vm105, %v584, 0
    %v595 = vsel %vm105, %v586, 0
    %v598 = vsel %vm105, %v588, 0
    %v601 = vsel %vm105, %v590, 0
    %603 = vmatprep.subr.bf16.mxu0 %v90
    %604 = vmatpush1.bf16.msra.mxu0 %v89
    %605 = vmatprep.subr.bf16.mxu0 %v92
    %606 = vmatpush1.bf16.msra.mxu0 %v91
    %607 = vmatprep.subr.bf16.mxu0 %v94
    %608 = vmatpush1.bf16.msra.mxu0 %v93
    %609 = vmatprep.subr.bf16.mxu0 %v96
    %610 = vmatpush1.bf16.msra.mxu0 %v95
    %611 = vmatprep.subr.bf16.mxu0 0
    %612 = vmatpush1.bf16.msra.mxu0 0
    %613 = vmatprep.subr.bf16.mxu0 0
    %614 = vmatpush1.bf16.msra.mxu0 0
    %615 = vmatprep.subr.bf16.mxu0 0
    %616 = vmatpush1.bf16.msra.mxu0 0
    %617 = vmatprep.subr.bf16.mxu0 0
    %618 = vmatpush1.bf16.msra.mxu0 0
    %619 = vmatprep.subr.bf16.mxu0 0
    %620 = vmatpush1.bf16.msra.mxu0 0
    %621 = vmatprep.subr.bf16.mxu0 0
    %622 = vmatpush1.bf16.msra.mxu0 0
    %623 = vmatprep.subr.bf16.mxu0 0
    %624 = vmatpush1.bf16.msra.mxu0 0
    %625 = vmatprep.subr.bf16.mxu0 0
    %626 = vmatpush1.bf16.msra.mxu0 0
    %627 = vmatprep.subr.bf16.mxu0 0
    %628 = vmatpush1.bf16.msra.mxu0 0
    %629 = vmatprep.subr.bf16.mxu0 0
    %630 = vmatpush1.bf16.msra.mxu0 0
    %631 = vmatprep.subr.bf16.mxu0 0
    %632 = vmatpush1.bf16.msra.mxu0 0
    %633 = vmatprep.subr.bf16.mxu0 0
    %634 = vmatpush1.bf16.msra.mxu0 0
    %635 = vmatprep.mubr.bf16.mxu0 0
    %636 = vmatmul.mubr.bf16.gmra.mrb[0].mxu0 %v592
    %v637 = vpop.f32.mrb[0].mxu0
    %v638 = vadd.f32 0.0, %v637
    %v639 = vpop.f32.mrb[0].mxu0
    %v640 = vadd.f32 0.0, %v639
    %v641 = vpop.f32.mrb[0].mxu0
    %v642 = vadd.f32 0.0, %v641
    %v643 = vpop.f32.mrb[0].mxu0
    %v644 = vadd.f32 0.0, %v643
    %645 = vmatprep.mubr.bf16.mxu0 0
    %646 = vmatmul.mubr.bf16.gmra.mrb[0].mxu0 %v595
    %v647 = vpop.f32.mrb[0].mxu0
    %v648 = vadd.f32 0.0, %v647
    %v649 = vpop.f32.mrb[0].mxu0
    %v650 = vadd.f32 0.0, %v649
    %v651 = vpop.f32.mrb[0].mxu0
    %v652 = vadd.f32 0.0, %v651
    %v653 = vpop.f32.mrb[0].mxu0
    %v654 = vadd.f32 0.0, %v653
    %655 = vmatprep.mubr.bf16.mxu0 0
    %656 = vmatmul.mubr.bf16.gmra.mrb[0].mxu0 %v598
    %v657 = vpop.f32.mrb[0].mxu0
    %v658 = vadd.f32 0.0, %v657
    %v659 = vpop.f32.mrb[0].mxu0
    %v660 = vadd.f32 0.0, %v659
    %v661 = vpop.f32.mrb[0].mxu0
    %v662 = vadd.f32 0.0, %v661
    %v663 = vpop.f32.mrb[0].mxu0
    %v664 = vadd.f32 0.0, %v663
    %665 = vmatprep.mubr.bf16.mxu0 0
    %666 = vmatmul.mubr.bf16.gmra.mrb[0].mxu0 %v601
    %v667 = vpop.f32.mrb[0].mxu0
    %v668 = vadd.f32 0.0, %v667
    %v669 = vpop.f32.mrb[0].mxu0
    %v670 = vadd.f32 0.0, %v669
    %v671 = vpop.f32.mrb[0].mxu0
    %v672 = vadd.f32 0.0, %v671
    %v673 = vpop.f32.mrb[0].mxu0
    %v674 = vadd.f32 0.0, %v673
    %675 = vdwg.mxu0
    %v676 = vunpack.c.l.bf16 %v559
    %v677 = vunpack.c.l.bf16 %v560
    %v678 = vunpack.c.l.bf16 %v561
    %v679 = vunpack.c.l.bf16 %v562
    %v680 = vunpack.c.l.bf16 %v563
    %v681 = vunpack.c.l.bf16 %v564
    %v682 = vunpack.c.l.bf16 %v565
    %v683 = vunpack.c.l.bf16 %v566
    %v684 = vadd.f32 %v676, %v638
    %v685 = vadd.f32 %v677, %v642
    %v686 = vadd.f32 %v678, %v648
    %v687 = vadd.f32 %v679, %v652
    %v688 = vadd.f32 %v680, %v658
    %v689 = vadd.f32 %v681, %v662
    %v690 = vadd.f32 %v682, %v668
    %v691 = vadd.f32 %v683, %v672
    %v692 = vxor.u32 %v684, 2147483648
    %v693 = vxor.u32 %v685, 2147483648
    %v694 = vxor.u32 %v686, 2147483648
    %v695 = vxor.u32 %v687, 2147483648
    %v696 = vxor.u32 %v688, 2147483648
    %v697 = vxor.u32 %v689, 2147483648
    %v698 = vxor.u32 %v690, 2147483648
    %v699 = vxor.u32 %v691, 2147483648
    %v700 = vmul.f32 %v692, 1.442695
    %v701 = vpow.pop %v700
    %v702 = vmul.f32 %v693, 1.442695
    %v703 = vpow.pop %v702
    %v704 = vmul.f32 %v694, 1.442695
    %v705 = vpow.pop %v704
    %v706 = vmul.f32 %v695, 1.442695
    %v707 = vpow.pop %v706
    %v708 = vmul.f32 %v696, 1.442695
    %v709 = vpow.pop %v708
    %v710 = vmul.f32 %v697, 1.442695
    %v711 = vpow.pop %v710
    %v712 = vmul.f32 %v698, 1.442695
    %v713 = vpow.pop %v712
    %v714 = vmul.f32 %v699, 1.442695
    %v715 = vpow.pop %v714
    %v716 = vadd.f32 %v701, 1.0
    %v717 = vadd.f32 %v703, 1.0
    %v718 = vadd.f32 %v705, 1.0
    %v719 = vadd.f32 %v707, 1.0
    %v720 = vadd.f32 %v709, 1.0
    %v721 = vadd.f32 %v711, 1.0
    %v722 = vadd.f32 %v713, 1.0
    %v723 = vadd.f32 %v715, 1.0
    %v724 = vrcp.pop %v716
    %v725 = vmul.f32 1.0, %v724
    %v726 = vrcp.pop %v717
    %v727 = vmul.f32 1.0, %v726
    %v728 = vrcp.pop %v718
    %v729 = vmul.f32 1.0, %v728
    %v730 = vrcp.pop %v719
    %v731 = vmul.f32 1.0, %v730
    %v732 = vrcp.pop %v720
    %v733 = vmul.f32 1.0, %v732
    %v734 = vrcp.pop %v721
    %v735 = vmul.f32 1.0, %v734
    %v736 = vrcp.pop %v722
    %v737 = vmul.f32 1.0, %v736
    %v738 = vrcp.pop %v723
    %v739 = vmul.f32 1.0, %v738
    %v748 = vrot.slane %v559, 4
    %v749 = vrot.slane %v560, 4
    %v750 = vrot.slane %v561, 4
    %v751 = vrot.slane %v562, 4
    %v752 = vrot.slane %v563, 4
    %v753 = vrot.slane %v564, 4
    %v754 = vrot.slane %v565, 4
    %v755 = vrot.slane %v566, 4
    %v764 = vunpack.c.l.bf16 %v748
    %v765 = vunpack.c.l.bf16 %v749
    %v766 = vunpack.c.l.bf16 %v750
    %v767 = vunpack.c.l.bf16 %v751
    %v768 = vunpack.c.l.bf16 %v752
    %v769 = vunpack.c.l.bf16 %v753
    %v770 = vunpack.c.l.bf16 %v754
    %v771 = vunpack.c.l.bf16 %v755
    %v772 = vadd.f32 %v640, %v47
    %v773 = vadd.f32 %v644, %v47
    %v774 = vadd.f32 %v650, %v47
    %v775 = vadd.f32 %v654, %v47
    %v776 = vadd.f32 %v660, %v47
    %v777 = vadd.f32 %v664, %v47
    %v778 = vadd.f32 %v670, %v47
    %v779 = vadd.f32 %v674, %v47
    %v780 = vmul.f32 %v725, %v772
    %v781 = vmul.f32 %v727, %v773
    %v782 = vmul.f32 %v729, %v774
    %v783 = vmul.f32 %v731, %v775
    %v784 = vmul.f32 %v733, %v776
    %v785 = vmul.f32 %v735, %v777
    %v786 = vmul.f32 %v737, %v778
    %v787 = vmul.f32 %v739, %v779
    %v788 = vadd.f32 %v764, %v780
    %v789 = vadd.f32 %v765, %v781
    %v790 = vadd.f32 %v766, %v782
    %v791 = vadd.f32 %v767, %v783
    %v792 = vadd.f32 %v768, %v784
    %v793 = vadd.f32 %v769, %v785
    %v794 = vadd.f32 %v770, %v786
    %v795 = vadd.f32 %v771, %v787
    %v796 = vtanh.pop %v788
    %v797 = vtanh.pop %v789
    %v798 = vtanh.pop %v790
    %v799 = vtanh.pop %v791
    %v800 = vtanh.pop %v792
    %v801 = vtanh.pop %v793
    %v802 = vtanh.pop %v794
    %v803 = vtanh.pop %v795
    %v804 = vsub.f32 1.0, %v725
    %v805 = vsub.f32 1.0, %v727
    %v806 = vsub.f32 1.0, %v729
    %v807 = vsub.f32 1.0, %v731
    %v808 = vsub.f32 1.0, %v733
    %v809 = vsub.f32 1.0, %v735
    %v810 = vsub.f32 1.0, %v737
    %v811 = vsub.f32 1.0, %v739
    %820 = vrot.lane.b32.xlu0 %v796, 64
    %v821 = vpop.permute.xlu0 %820
    %822 = vrot.lane.b32.xlu0 %v797, 64
    %v823 = vpop.permute.xlu0 %822
    %824 = vrot.lane.b32.xlu0 %v798, 64
    %v825 = vpop.permute.xlu0 %824
    %826 = vrot.lane.b32.xlu0 %v799, 64
    %v827 = vpop.permute.xlu0 %826
    %828 = vrot.lane.b32.xlu0 %v800, 64
    %v829 = vpop.permute.xlu0 %828
    %830 = vrot.lane.b32.xlu0 %v801, 64
    %v831 = vpop.permute.xlu0 %830
    %832 = vrot.lane.b32.xlu0 %v802, 64
    %v833 = vpop.permute.xlu0 %832
    %834 = vrot.lane.b32.xlu0 %v803, 64
    %v835 = vpop.permute.xlu0 %834
    %v844 = vmul.f32 %v804, %v821
    %v845 = vmul.f32 %v805, %v823
    %v846 = vmul.f32 %v806, %v825
    %v847 = vmul.f32 %v807, %v827
    %v848 = vmul.f32 %v808, %v829
    %v849 = vmul.f32 %v809, %v831
    %v850 = vmul.f32 %v810, %v833
    %v851 = vmul.f32 %v811, %v835
    %v852 = vmul.f32 %v725, %v366
    %v853 = vmul.f32 %v727, %v367
    %v854 = vmul.f32 %v729, %v368
    %v855 = vmul.f32 %v731, %v369
    %v856 = vmul.f32 %v733, %v370
    %v857 = vmul.f32 %v735, %v371
    %v858 = vmul.f32 %v737, %v372
    %v859 = vmul.f32 %v739, %v373
    %v860 = vadd.f32 %v844, %v852
    %v861 = vadd.f32 %v845, %v853
    %v862 = vadd.f32 %v846, %v854
    %v863 = vadd.f32 %v847, %v855
    %v864 = vadd.f32 %v848, %v856
    %v865 = vadd.f32 %v849, %v857
    %v866 = vadd.f32 %v850, %v858
    %v867 = vadd.f32 %v851, %v859
    %v868 = vpack.c.bf16 %v551, %v550
    %v869 = vpack.c.bf16 %v553, %v552
    %v870 = vpack.c.bf16 %v555, %v554
    %v871 = vpack.c.bf16 %v557, %v556
    %876 = vrot.lane.b32.xlu0 %v868, 64
    %v877 = vpop.permute.xlu0 %876
    %878 = vrot.lane.b32.xlu0 %v869, 64
    %v879 = vpop.permute.xlu0 %878
    %880 = vrot.lane.b32.xlu0 %v870, 64
    %v881 = vpop.permute.xlu0 %880
    %882 = vrot.lane.b32.xlu0 %v871, 64
    %v883 = vpop.permute.xlu0 %882
    %v885 = vsel %vm105, %v877, 0
    %v888 = vsel %vm105, %v879, 0
    %v891 = vsel %vm105, %v881, 0
    %v894 = vsel %vm105, %v883, 0
    %896 = vmatprep.subr.bf16.mxu0 %v90
    %897 = vmatpush1.bf16.msra.mxu0 %v89
    %898 = vmatprep.subr.bf16.mxu0 %v92
    %899 = vmatpush1.bf16.msra.mxu0 %v91
    %900 = vmatprep.subr.bf16.mxu0 %v94
    %901 = vmatpush1.bf16.msra.mxu0 %v93
    %902 = vmatprep.subr.bf16.mxu0 %v96
    %903 = vmatpush1.bf16.msra.mxu0 %v95
    %904 = vmatprep.subr.bf16.mxu0 0
    %905 = vmatpush1.bf16.msra.mxu0 0
    %906 = vmatprep.subr.bf16.mxu0 0
    %907 = vmatpush1.bf16.msra.mxu0 0
    %908 = vmatprep.subr.bf16.mxu0 0
    %909 = vmatpush1.bf16.msra.mxu0 0
    %910 = vmatprep.subr.bf16.mxu0 0
    %911 = vmatpush1.bf16.msra.mxu0 0
    %912 = vmatprep.subr.bf16.mxu0 0
    %913 = vmatpush1.bf16.msra.mxu0 0
    %914 = vmatprep.subr.bf16.mxu0 0
    %915 = vmatpush1.bf16.msra.mxu0 0
    %916 = vmatprep.subr.bf16.mxu0 0
    %917 = vmatpush1.bf16.msra.mxu0 0
    %918 = vmatprep.subr.bf16.mxu0 0
    %919 = vmatpush1.bf16.msra.mxu0 0
    %920 = vmatprep.subr.bf16.mxu0 0
    %921 = vmatpush1.bf16.msra.mxu0 0
    %922 = vmatprep.subr.bf16.mxu0 0
    %923 = vmatpush1.bf16.msra.mxu0 0
    %924 = vmatprep.subr.bf16.mxu0 0
    %925 = vmatpush1.bf16.msra.mxu0 0
    %926 = vmatprep.subr.bf16.mxu0 0
    %927 = vmatpush1.bf16.msra.mxu0 0
    %928 = vmatprep.mubr.bf16.mxu0 0
    %929 = vmatmul.mubr.bf16.gmra.mrb[0].mxu0 %v885
    %v930 = vpop.f32.mrb[0].mxu0
    %v931 = vadd.f32 0.0, %v930
    %v932 = vpop.f32.mrb[0].mxu0
    %v933 = vadd.f32 0.0, %v932
    %v934 = vpop.f32.mrb[0].mxu0
    %v935 = vadd.f32 0.0, %v934
    %v936 = vpop.f32.mrb[0].mxu0
    %v937 = vadd.f32 0.0, %v936
    %938 = vmatprep.mubr.bf16.mxu0 0
    %939 = vmatmul.mubr.bf16.gmra.mrb[0].mxu0 %v888
    %v940 = vpop.f32.mrb[0].mxu0
    %v941 = vadd.f32 0.0, %v940
    %v942 = vpop.f32.mrb[0].mxu0
    %v943 = vadd.f32 0.0, %v942
    %v944 = vpop.f32.mrb[0].mxu0
    %v945 = vadd.f32 0.0, %v944
    %v946 = vpop.f32.mrb[0].mxu0
    %v947 = vadd.f32 0.0, %v946
    %948 = vmatprep.mubr.bf16.mxu0 0
    %949 = vmatmul.mubr.bf16.gmra.mrb[0].mxu0 %v891
    %v950 = vpop.f32.mrb[0].mxu0
    %v951 = vadd.f32 0.0, %v950
    %v952 = vpop.f32.mrb[0].mxu0
    %v953 = vadd.f32 0.0, %v952
    %v954 = vpop.f32.mrb[0].mxu0
    %v955 = vadd.f32 0.0, %v954
    %v956 = vpop.f32.mrb[0].mxu0
    %v957 = vadd.f32 0.0, %v956
    %958 = vmatprep.mubr.bf16.mxu0 0
    %959 = vmatmul.mubr.bf16.gmra.mrb[0].mxu0 %v894
    %v960 = vpop.f32.mrb[0].mxu0
    %v961 = vadd.f32 0.0, %v960
    %v962 = vpop.f32.mrb[0].mxu0
    %v963 = vadd.f32 0.0, %v962
    %v964 = vpop.f32.mrb[0].mxu0
    %v965 = vadd.f32 0.0, %v964
    %v966 = vpop.f32.mrb[0].mxu0
    %v967 = vadd.f32 0.0, %v966
    %968 = vdwg.mxu0
    %v969 = vunpack.c.l.bf16 %v567
    %v970 = vunpack.c.l.bf16 %v568
    %v971 = vunpack.c.l.bf16 %v569
    %v972 = vunpack.c.l.bf16 %v570
    %v973 = vunpack.c.l.bf16 %v571
    %v974 = vunpack.c.l.bf16 %v572
    %v975 = vunpack.c.l.bf16 %v573
    %v976 = vunpack.c.l.bf16 %v574
    %v977 = vadd.f32 %v969, %v931
    %v978 = vadd.f32 %v970, %v935
    %v979 = vadd.f32 %v971, %v941
    %v980 = vadd.f32 %v972, %v945
    %v981 = vadd.f32 %v973, %v951
    %v982 = vadd.f32 %v974, %v955
    %v983 = vadd.f32 %v975, %v961
    %v984 = vadd.f32 %v976, %v965
    %v985 = vxor.u32 %v977, 2147483648
    %v986 = vxor.u32 %v978, 2147483648
    %v987 = vxor.u32 %v979, 2147483648
    %v988 = vxor.u32 %v980, 2147483648
    %v989 = vxor.u32 %v981, 2147483648
    %v990 = vxor.u32 %v982, 2147483648
    %v991 = vxor.u32 %v983, 2147483648
    %v992 = vxor.u32 %v984, 2147483648
    %v993 = vmul.f32 %v985, 1.442695
    %v994 = vpow.pop %v993
    %v995 = vmul.f32 %v986, 1.442695
    %v996 = vpow.pop %v995
    %v997 = vmul.f32 %v987, 1.442695
    %v998 = vpow.pop %v997
    %v999 = vmul.f32 %v988, 1.442695
    %v1000 = vpow.pop %v999
    %v1001 = vmul.f32 %v989, 1.442695
    %v1002 = vpow.pop %v1001
    %v1003 = vmul.f32 %v990, 1.442695
    %v1004 = vpow.pop %v1003
    %v1005 = vmul.f32 %v991, 1.442695
    %v1006 = vpow.pop %v1005
    %v1007 = vmul.f32 %v992, 1.442695
    %v1008 = vpow.pop %v1007
    %v1009 = vadd.f32 %v994, 1.0
    %v1010 = vadd.f32 %v996, 1.0
    %v1011 = vadd.f32 %v998, 1.0
    %v1012 = vadd.f32 %v1000, 1.0
    %v1013 = vadd.f32 %v1002, 1.0
    %v1014 = vadd.f32 %v1004, 1.0
    %v1015 = vadd.f32 %v1006, 1.0
    %v1016 = vadd.f32 %v1008, 1.0
    %v1017 = vrcp.pop %v1009
    %v1018 = vmul.f32 1.0, %v1017
    %v1019 = vrcp.pop %v1010
    %v1020 = vmul.f32 1.0, %v1019
    %v1021 = vrcp.pop %v1011
    %v1022 = vmul.f32 1.0, %v1021
    %v1023 = vrcp.pop %v1012
    %v1024 = vmul.f32 1.0, %v1023
    %v1025 = vrcp.pop %v1013
    %v1026 = vmul.f32 1.0, %v1025
    %v1027 = vrcp.pop %v1014
    %v1028 = vmul.f32 1.0, %v1027
    %v1029 = vrcp.pop %v1015
    %v1030 = vmul.f32 1.0, %v1029
    %v1031 = vrcp.pop %v1016
    %v1032 = vmul.f32 1.0, %v1031
    %v1041 = vrot.slane %v567, 4
    %v1042 = vrot.slane %v568, 4
    %v1043 = vrot.slane %v569, 4
    %v1044 = vrot.slane %v570, 4
    %v1045 = vrot.slane %v571, 4
    %v1046 = vrot.slane %v572, 4
    %v1047 = vrot.slane %v573, 4
    %v1048 = vrot.slane %v574, 4
    %v1057 = vunpack.c.l.bf16 %v1041
    %v1058 = vunpack.c.l.bf16 %v1042
    %v1059 = vunpack.c.l.bf16 %v1043
    %v1060 = vunpack.c.l.bf16 %v1044
    %v1061 = vunpack.c.l.bf16 %v1045
    %v1062 = vunpack.c.l.bf16 %v1046
    %v1063 = vunpack.c.l.bf16 %v1047
    %v1064 = vunpack.c.l.bf16 %v1048
    %v1065 = vadd.f32 %v933, %v47
    %v1066 = vadd.f32 %v937, %v47
    %v1067 = vadd.f32 %v943, %v47
    %v1068 = vadd.f32 %v947, %v47
    %v1069 = vadd.f32 %v953, %v47
    %v1070 = vadd.f32 %v957, %v47
    %v1071 = vadd.f32 %v963, %v47
    %v1072 = vadd.f32 %v967, %v47
    %v1073 = vmul.f32 %v1018, %v1065
    %v1074 = vmul.f32 %v1020, %v1066
    %v1075 = vmul.f32 %v1022, %v1067
    %v1076 = vmul.f32 %v1024, %v1068
    %v1077 = vmul.f32 %v1026, %v1069
    %v1078 = vmul.f32 %v1028, %v1070
    %v1079 = vmul.f32 %v1030, %v1071
    %v1080 = vmul.f32 %v1032, %v1072
    %v1081 = vadd.f32 %v1057, %v1073
    %v1082 = vadd.f32 %v1058, %v1074
    %v1083 = vadd.f32 %v1059, %v1075
    %v1084 = vadd.f32 %v1060, %v1076
    %v1085 = vadd.f32 %v1061, %v1077
    %v1086 = vadd.f32 %v1062, %v1078
    %v1087 = vadd.f32 %v1063, %v1079
    %v1088 = vadd.f32 %v1064, %v1080
    %v1089 = vtanh.pop %v1081
    %v1090 = vtanh.pop %v1082
    %v1091 = vtanh.pop %v1083
    %v1092 = vtanh.pop %v1084
    %v1093 = vtanh.pop %v1085
    %v1094 = vtanh.pop %v1086
    %v1095 = vtanh.pop %v1087
    %v1096 = vtanh.pop %v1088
    %v1097 = vsub.f32 1.0, %v1018
    %v1098 = vsub.f32 1.0, %v1020
    %v1099 = vsub.f32 1.0, %v1022
    %v1100 = vsub.f32 1.0, %v1024
    %v1101 = vsub.f32 1.0, %v1026
    %v1102 = vsub.f32 1.0, %v1028
    %v1103 = vsub.f32 1.0, %v1030
    %v1104 = vsub.f32 1.0, %v1032
    %1113 = vrot.lane.b32.xlu0 %v1089, 64
    %v1114 = vpop.permute.xlu0 %1113
    %1115 = vrot.lane.b32.xlu0 %v1090, 64
    %v1116 = vpop.permute.xlu0 %1115
    %1117 = vrot.lane.b32.xlu0 %v1091, 64
    %v1118 = vpop.permute.xlu0 %1117
    %1119 = vrot.lane.b32.xlu0 %v1092, 64
    %v1120 = vpop.permute.xlu0 %1119
    %1121 = vrot.lane.b32.xlu0 %v1093, 64
    %v1122 = vpop.permute.xlu0 %1121
    %1123 = vrot.lane.b32.xlu0 %v1094, 64
    %v1124 = vpop.permute.xlu0 %1123
    %1125 = vrot.lane.b32.xlu0 %v1095, 64
    %v1126 = vpop.permute.xlu0 %1125
    %1127 = vrot.lane.b32.xlu0 %v1096, 64
    %v1128 = vpop.permute.xlu0 %1127
    %v1137 = vmul.f32 %v1097, %v1114
    %v1138 = vmul.f32 %v1098, %v1116
    %v1139 = vmul.f32 %v1099, %v1118
    %v1140 = vmul.f32 %v1100, %v1120
    %v1141 = vmul.f32 %v1101, %v1122
    %v1142 = vmul.f32 %v1102, %v1124
    %v1143 = vmul.f32 %v1103, %v1126
    %v1144 = vmul.f32 %v1104, %v1128
    %v1145 = vmul.f32 %v1018, %v550
    %v1146 = vmul.f32 %v1020, %v551
    %v1147 = vmul.f32 %v1022, %v552
    %v1148 = vmul.f32 %v1024, %v553
    %v1149 = vmul.f32 %v1026, %v554
    %v1150 = vmul.f32 %v1028, %v555
    %v1151 = vmul.f32 %v1030, %v556
    %v1152 = vmul.f32 %v1032, %v557
    %v1153 = vadd.f32 %v1137, %v1145
    %v1154 = vadd.f32 %v1138, %v1146
    %v1155 = vadd.f32 %v1139, %v1147
    %v1156 = vadd.f32 %v1140, %v1148
    %v1157 = vadd.f32 %v1141, %v1149
    %v1158 = vadd.f32 %v1142, %v1150
    %v1159 = vadd.f32 %v1143, %v1151
    %v1160 = vadd.f32 %v1144, %v1152
    %s1161 = scalar_lea.vmem %s0, 256
    %v1162 = vld [vmem:[%s1161] sm:$0xff]
    %v1163 = vld [vmem:[%s1161 + $0x8] sm:$0xff]
    %v1164 = vld [vmem:[%s1161 + $0x10] sm:$0xff]
    %v1165 = vld [vmem:[%s1161 + $0x18] sm:$0xff]
    %v1166 = vld [vmem:[%s1161 + $0x20] sm:$0xff]
    %v1167 = vld [vmem:[%s1161 + $0x28] sm:$0xff]
    %v1168 = vld [vmem:[%s1161 + $0x30] sm:$0xff]
    %v1169 = vld [vmem:[%s1161 + $0x38] sm:$0xff]
    %v1170 = vld [vmem:[%s1161 + $0x40] sm:$0xff]
    %v1171 = vld [vmem:[%s1161 + $0x48] sm:$0xff]
    %v1172 = vld [vmem:[%s1161 + $0x50] sm:$0xff]
    %v1173 = vld [vmem:[%s1161 + $0x58] sm:$0xff]
    %v1174 = vld [vmem:[%s1161 + $0x60] sm:$0xff]
    %v1175 = vld [vmem:[%s1161 + $0x68] sm:$0xff]
    %v1176 = vld [vmem:[%s1161 + $0x70] sm:$0xff]
    %v1177 = vld [vmem:[%s1161 + $0x78] sm:$0xff]
    %v1178 = vpack.c.bf16 %v861, %v860
    %v1179 = vpack.c.bf16 %v863, %v862
    %v1180 = vpack.c.bf16 %v865, %v864
    %v1181 = vpack.c.bf16 %v867, %v866
    %1186 = vrot.lane.b32.xlu0 %v1178, 64
    %v1187 = vpop.permute.xlu0 %1186
    %1188 = vrot.lane.b32.xlu0 %v1179, 64
    %v1189 = vpop.permute.xlu0 %1188
    %1190 = vrot.lane.b32.xlu0 %v1180, 64
    %v1191 = vpop.permute.xlu0 %1190
    %1192 = vrot.lane.b32.xlu0 %v1181, 64
    %v1193 = vpop.permute.xlu0 %1192
    %v1195 = vsel %vm105, %v1187, 0
    %v1198 = vsel %vm105, %v1189, 0
    %v1201 = vsel %vm105, %v1191, 0
    %v1204 = vsel %vm105, %v1193, 0
    %1206 = vmatprep.subr.bf16.mxu0 %v90
    %1207 = vmatpush1.bf16.msra.mxu0 %v89
    %1208 = vmatprep.subr.bf16.mxu0 %v92
    %1209 = vmatpush1.bf16.msra.mxu0 %v91
    %1210 = vmatprep.subr.bf16.mxu0 %v94
    %1211 = vmatpush1.bf16.msra.mxu0 %v93
    %1212 = vmatprep.subr.bf16.mxu0 %v96
    %1213 = vmatpush1.bf16.msra.mxu0 %v95
    %1214 = vmatprep.subr.bf16.mxu0 0
    %1215 = vmatpush1.bf16.msra.mxu0 0
    %1216 = vmatprep.subr.bf16.mxu0 0
    %1217 = vmatpush1.bf16.msra.mxu0 0
    %1218 = vmatprep.subr.bf16.mxu0 0
    %1219 = vmatpush1.bf16.msra.mxu0 0
    %1220 = vmatprep.subr.bf16.mxu0 0
    %1221 = vmatpush1.bf16.msra.mxu0 0
    %1222 = vmatprep.subr.bf16.mxu0 0
    %1223 = vmatpush1.bf16.msra.mxu0 0
    %1224 = vmatprep.subr.bf16.mxu0 0
    %1225 = vmatpush1.bf16.msra.mxu0 0
    %1226 = vmatprep.subr.bf16.mxu0 0
    %1227 = vmatpush1.bf16.msra.mxu0 0
    %1228 = vmatprep.subr.bf16.mxu0 0
    %1229 = vmatpush1.bf16.msra.mxu0 0
    %1230 = vmatprep.subr.bf16.mxu0 0
    %1231 = vmatpush1.bf16.msra.mxu0 0
    %1232 = vmatprep.subr.bf16.mxu0 0
    %1233 = vmatpush1.bf16.msra.mxu0 0
    %1234 = vmatprep.subr.bf16.mxu0 0
    %1235 = vmatpush1.bf16.msra.mxu0 0
    %1236 = vmatprep.subr.bf16.mxu0 0
    %1237 = vmatpush1.bf16.msra.mxu0 0
    %1238 = vmatprep.mubr.bf16.mxu0 0
    %1239 = vmatmul.mubr.bf16.gmra.mrb[0].mxu0 %v1195
    %v1240 = vpop.f32.mrb[0].mxu0
    %v1241 = vadd.f32 0.0, %v1240
    %v1242 = vpop.f32.mrb[0].mxu0
    %v1243 = vadd.f32 0.0, %v1242
    %v1244 = vpop.f32.mrb[0].mxu0
    %v1245 = vadd.f32 0.0, %v1244
    %v1246 = vpop.f32.mrb[0].mxu0
    %v1247 = vadd.f32 0.0, %v1246
    %1248 = vmatprep.mubr.bf16.mxu0 0
    %1249 = vmatmul.mubr.bf16.gmra.mrb[0].mxu0 %v1198
    %v1250 = vpop.f32.mrb[0].mxu0
    %v1251 = vadd.f32 0.0, %v1250
    %v1252 = vpop.f32.mrb[0].mxu0
    %v1253 = vadd.f32 0.0, %v1252
    %v1254 = vpop.f32.mrb[0].mxu0
    %v1255 = vadd.f32 0.0, %v1254
    %v1256 = vpop.f32.mrb[0].mxu0
    %v1257 = vadd.f32 0.0, %v1256
    %1258 = vmatprep.mubr.bf16.mxu0 0
    %1259 = vmatmul.mubr.bf16.gmra.mrb[0].mxu0 %v1201
    %v1260 = vpop.f32.mrb[0].mxu0
    %v1261 = vadd.f32 0.0, %v1260
    %v1262 = vpop.f32.mrb[0].mxu0
    %v1263 = vadd.f32 0.0, %v1262
    %v1264 = vpop.f32.mrb[0].mxu0
    %v1265 = vadd.f32 0.0, %v1264
    %v1266 = vpop.f32.mrb[0].mxu0
    %v1267 = vadd.f32 0.0, %v1266
    %1268 = vmatprep.mubr.bf16.mxu0 0
    %1269 = vmatmul.mubr.bf16.gmra.mrb[0].mxu0 %v1204
    %v1270 = vpop.f32.mrb[0].mxu0
    %v1271 = vadd.f32 0.0, %v1270
    %v1272 = vpop.f32.mrb[0].mxu0
    %v1273 = vadd.f32 0.0, %v1272
    %v1274 = vpop.f32.mrb[0].mxu0
    %v1275 = vadd.f32 0.0, %v1274
    %v1276 = vpop.f32.mrb[0].mxu0
    %v1277 = vadd.f32 0.0, %v1276
    %1278 = vdwg.mxu0
    %v1279 = vunpack.c.l.bf16 %v1162
    %v1280 = vunpack.c.l.bf16 %v1163
    %v1281 = vunpack.c.l.bf16 %v1164
    %v1282 = vunpack.c.l.bf16 %v1165
    %v1283 = vunpack.c.l.bf16 %v1166
    %v1284 = vunpack.c.l.bf16 %v1167
    %v1285 = vunpack.c.l.bf16 %v1168
    %v1286 = vunpack.c.l.bf16 %v1169
    %v1287 = vadd.f32 %v1279, %v1241
    %v1288 = vadd.f32 %v1280, %v1245
    %v1289 = vadd.f32 %v1281, %v1251
    %v1290 = vadd.f32 %v1282, %v1255
    %v1291 = vadd.f32 %v1283, %v1261
    %v1292 = vadd.f32 %v1284, %v1265
    %v1293 = vadd.f32 %v1285, %v1271
    %v1294 = vadd.f32 %v1286, %v1275
    %v1295 = vxor.u32 %v1287, 2147483648
    %v1296 = vxor.u32 %v1288, 2147483648
    %v1297 = vxor.u32 %v1289, 2147483648
    %v1298 = vxor.u32 %v1290, 2147483648
    %v1299 = vxor.u32 %v1291, 2147483648
    %v1300 = vxor.u32 %v1292, 2147483648
    %v1301 = vxor.u32 %v1293, 2147483648
    %v1302 = vxor.u32 %v1294, 2147483648
    %v1303 = vmul.f32 %v1295, 1.442695
    %v1304 = vpow.pop %v1303
    %v1305 = vmul.f32 %v1296, 1.442695
    %v1306 = vpow.pop %v1305
    %v1307 = vmul.f32 %v1297, 1.442695
    %v1308 = vpow.pop %v1307
    %v1309 = vmul.f32 %v1298, 1.442695
    %v1310 = vpow.pop %v1309
    %v1311 = vmul.f32 %v1299, 1.442695
    %v1312 = vpow.pop %v1311
    %v1313 = vmul.f32 %v1300, 1.442695
    %v1314 = vpow.pop %v1313
    %v1315 = vmul.f32 %v1301, 1.442695
    %v1316 = vpow.pop %v1315
    %v1317 = vmul.f32 %v1302, 1.442695
    %v1318 = vpow.pop %v1317
    %v1319 = vadd.f32 %v1304, 1.0
    %v1320 = vadd.f32 %v1306, 1.0
    %v1321 = vadd.f32 %v1308, 1.0
    %v1322 = vadd.f32 %v1310, 1.0
    %v1323 = vadd.f32 %v1312, 1.0
    %v1324 = vadd.f32 %v1314, 1.0
    %v1325 = vadd.f32 %v1316, 1.0
    %v1326 = vadd.f32 %v1318, 1.0
    %v1327 = vrcp.pop %v1319
    %v1328 = vmul.f32 1.0, %v1327
    %v1329 = vrcp.pop %v1320
    %v1330 = vmul.f32 1.0, %v1329
    %v1331 = vrcp.pop %v1321
    %v1332 = vmul.f32 1.0, %v1331
    %v1333 = vrcp.pop %v1322
    %v1334 = vmul.f32 1.0, %v1333
    %v1335 = vrcp.pop %v1323
    %v1336 = vmul.f32 1.0, %v1335
    %v1337 = vrcp.pop %v1324
    %v1338 = vmul.f32 1.0, %v1337
    %v1339 = vrcp.pop %v1325
    %v1340 = vmul.f32 1.0, %v1339
    %v1341 = vrcp.pop %v1326
    %v1342 = vmul.f32 1.0, %v1341
    %v1351 = vrot.slane %v1162, 4
    %v1352 = vrot.slane %v1163, 4
    %v1353 = vrot.slane %v1164, 4
    %v1354 = vrot.slane %v1165, 4
    %v1355 = vrot.slane %v1166, 4
    %v1356 = vrot.slane %v1167, 4
    %v1357 = vrot.slane %v1168, 4
    %v1358 = vrot.slane %v1169, 4
    %v1367 = vunpack.c.l.bf16 %v1351
    %v1368 = vunpack.c.l.bf16 %v1352
    %v1369 = vunpack.c.l.bf16 %v1353
    %v1370 = vunpack.c.l.bf16 %v1354
    %v1371 = vunpack.c.l.bf16 %v1355
    %v1372 = vunpack.c.l.bf16 %v1356
    %v1373 = vunpack.c.l.bf16 %v1357
    %v1374 = vunpack.c.l.bf16 %v1358
    %v1375 = vadd.f32 %v1243, %v47
    %v1376 = vadd.f32 %v1247, %v47
    %v1377 = vadd.f32 %v1253, %v47
    %v1378 = vadd.f32 %v1257, %v47
    %v1379 = vadd.f32 %v1263, %v47
    %v1380 = vadd.f32 %v1267, %v47
    %v1381 = vadd.f32 %v1273, %v47
    %v1382 = vadd.f32 %v1277, %v47
    %v1383 = vmul.f32 %v1328, %v1375
    %v1384 = vmul.f32 %v1330, %v1376
    %v1385 = vmul.f32 %v1332, %v1377
    %v1386 = vmul.f32 %v1334, %v1378
    %v1387 = vmul.f32 %v1336, %v1379
    %v1388 = vmul.f32 %v1338, %v1380
    %v1389 = vmul.f32 %v1340, %v1381
    %v1390 = vmul.f32 %v1342, %v1382
    %v1391 = vadd.f32 %v1367, %v1383
    %v1392 = vadd.f32 %v1368, %v1384
    %v1393 = vadd.f32 %v1369, %v1385
    %v1394 = vadd.f32 %v1370, %v1386
    %v1395 = vadd.f32 %v1371, %v1387
    %v1396 = vadd.f32 %v1372, %v1388
    %v1397 = vadd.f32 %v1373, %v1389
    %v1398 = vadd.f32 %v1374, %v1390
    %v1399 = vtanh.pop %v1391
    %v1400 = vtanh.pop %v1392
    %v1401 = vtanh.pop %v1393
    %v1402 = vtanh.pop %v1394
    %v1403 = vtanh.pop %v1395
    %v1404 = vtanh.pop %v1396
    %v1405 = vtanh.pop %v1397
    %v1406 = vtanh.pop %v1398
    %v1407 = vsub.f32 1.0, %v1328
    %v1408 = vsub.f32 1.0, %v1330
    %v1409 = vsub.f32 1.0, %v1332
    %v1410 = vsub.f32 1.0, %v1334
    %v1411 = vsub.f32 1.0, %v1336
    %v1412 = vsub.f32 1.0, %v1338
    %v1413 = vsub.f32 1.0, %v1340
    %v1414 = vsub.f32 1.0, %v1342
    %1423 = vrot.lane.b32.xlu0 %v1399, 64
    %v1424 = vpop.permute.xlu0 %1423
    %1425 = vrot.lane.b32.xlu0 %v1400, 64
    %v1426 = vpop.permute.xlu0 %1425
    %1427 = vrot.lane.b32.xlu0 %v1401, 64
    %v1428 = vpop.permute.xlu0 %1427
    %1429 = vrot.lane.b32.xlu0 %v1402, 64
    %v1430 = vpop.permute.xlu0 %1429
    %1431 = vrot.lane.b32.xlu0 %v1403, 64
    %v1432 = vpop.permute.xlu0 %1431
    %1433 = vrot.lane.b32.xlu0 %v1404, 64
    %v1434 = vpop.permute.xlu0 %1433
    %1435 = vrot.lane.b32.xlu0 %v1405, 64
    %v1436 = vpop.permute.xlu0 %1435
    %1437 = vrot.lane.b32.xlu0 %v1406, 64
    %v1438 = vpop.permute.xlu0 %1437
    %v1447 = vmul.f32 %v1407, %v1424
    %v1448 = vmul.f32 %v1408, %v1426
    %v1449 = vmul.f32 %v1409, %v1428
    %v1450 = vmul.f32 %v1410, %v1430
    %v1451 = vmul.f32 %v1411, %v1432
    %v1452 = vmul.f32 %v1412, %v1434
    %v1453 = vmul.f32 %v1413, %v1436
    %v1454 = vmul.f32 %v1414, %v1438
    %v1455 = vmul.f32 %v1328, %v860
    %v1456 = vmul.f32 %v1330, %v861
    %v1457 = vmul.f32 %v1332, %v862
    %v1458 = vmul.f32 %v1334, %v863
    %v1459 = vmul.f32 %v1336, %v864
    %v1460 = vmul.f32 %v1338, %v865
    %v1461 = vmul.f32 %v1340, %v866
    %v1462 = vmul.f32 %v1342, %v867
    %v1463 = vadd.f32 %v1447, %v1455
    %v1464 = vadd.f32 %v1448, %v1456
    %v1465 = vadd.f32 %v1449, %v1457
    %v1466 = vadd.f32 %v1450, %v1458
    %v1467 = vadd.f32 %v1451, %v1459
    %v1468 = vadd.f32 %v1452, %v1460
    %v1469 = vadd.f32 %v1453, %v1461
    %v1470 = vadd.f32 %v1454, %v1462
    %v1471 = vpack.c.bf16 %v1154, %v1153
    %v1472 = vpack.c.bf16 %v1156, %v1155
    %v1473 = vpack.c.bf16 %v1158, %v1157
    %v1474 = vpack.c.bf16 %v1160, %v1159
    %1479 = vrot.lane.b32.xlu0 %v1471, 64
    %v1480 = vpop.permute.xlu0 %1479
    %1481 = vrot.lane.b32.xlu0 %v1472, 64
    %v1482 = vpop.permute.xlu0 %1481
    %1483 = vrot.lane.b32.xlu0 %v1473, 64
    %v1484 = vpop.permute.xlu0 %1483
    %1485 = vrot.lane.b32.xlu0 %v1474, 64
    %v1486 = vpop.permute.xlu0 %1485
    %v1488 = vsel %vm105, %v1480, 0
    %v1491 = vsel %vm105, %v1482, 0
    %v1494 = vsel %vm105, %v1484, 0
    %v1497 = vsel %vm105, %v1486, 0
    %1499 = vmatprep.subr.bf16.mxu0 %v90
    %1500 = vmatpush1.bf16.msra.mxu0 %v89
    %1501 = vmatprep.subr.bf16.mxu0 %v92
    %1502 = vmatpush1.bf16.msra.mxu0 %v91
    %1503 = vmatprep.subr.bf16.mxu0 %v94
    %1504 = vmatpush1.bf16.msra.mxu0 %v93
    %1505 = vmatprep.subr.bf16.mxu0 %v96
    %1506 = vmatpush1.bf16.msra.mxu0 %v95
    %1507 = vmatprep.subr.bf16.mxu0 0
    %1508 = vmatpush1.bf16.msra.mxu0 0
    %1509 = vmatprep.subr.bf16.mxu0 0
    %1510 = vmatpush1.bf16.msra.mxu0 0
    %1511 = vmatprep.subr.bf16.mxu0 0
    %1512 = vmatpush1.bf16.msra.mxu0 0
    %1513 = vmatprep.subr.bf16.mxu0 0
    %1514 = vmatpush1.bf16.msra.mxu0 0
    %1515 = vmatprep.subr.bf16.mxu0 0
    %1516 = vmatpush1.bf16.msra.mxu0 0
    %1517 = vmatprep.subr.bf16.mxu0 0
    %1518 = vmatpush1.bf16.msra.mxu0 0
    %1519 = vmatprep.subr.bf16.mxu0 0
    %1520 = vmatpush1.bf16.msra.mxu0 0
    %1521 = vmatprep.subr.bf16.mxu0 0
    %1522 = vmatpush1.bf16.msra.mxu0 0
    %1523 = vmatprep.subr.bf16.mxu0 0
    %1524 = vmatpush1.bf16.msra.mxu0 0
    %1525 = vmatprep.subr.bf16.mxu0 0
    %1526 = vmatpush1.bf16.msra.mxu0 0
    %1527 = vmatprep.subr.bf16.mxu0 0
    %1528 = vmatpush1.bf16.msra.mxu0 0
    %1529 = vmatprep.subr.bf16.mxu0 0
    %1530 = vmatpush1.bf16.msra.mxu0 0
    %1531 = vmatprep.mubr.bf16.mxu0 0
    %1532 = vmatmul.mubr.bf16.gmra.mrb[0].mxu0 %v1488
    %v1533 = vpop.f32.mrb[0].mxu0
    %v1534 = vadd.f32 0.0, %v1533
    %v1535 = vpop.f32.mrb[0].mxu0
    %v1536 = vadd.f32 0.0, %v1535
    %v1537 = vpop.f32.mrb[0].mxu0
    %v1538 = vadd.f32 0.0, %v1537
    %v1539 = vpop.f32.mrb[0].mxu0
    %v1540 = vadd.f32 0.0, %v1539
    %1541 = vmatprep.mubr.bf16.mxu0 0
    %1542 = vmatmul.mubr.bf16.gmra.mrb[0].mxu0 %v1491
    %v1543 = vpop.f32.mrb[0].mxu0
    %v1544 = vadd.f32 0.0, %v1543
    %v1545 = vpop.f32.mrb[0].mxu0
    %v1546 = vadd.f32 0.0, %v1545
    %v1547 = vpop.f32.mrb[0].mxu0
    %v1548 = vadd.f32 0.0, %v1547
    %v1549 = vpop.f32.mrb[0].mxu0
    %v1550 = vadd.f32 0.0, %v1549
    %1551 = vmatprep.mubr.bf16.mxu0 0
    %1552 = vmatmul.mubr.bf16.gmra.mrb[0].mxu0 %v1494
    %v1553 = vpop.f32.mrb[0].mxu0
    %v1554 = vadd.f32 0.0, %v1553
    %v1555 = vpop.f32.mrb[0].mxu0
    %v1556 = vadd.f32 0.0, %v1555
    %v1557 = vpop.f32.mrb[0].mxu0
    %v1558 = vadd.f32 0.0, %v1557
    %v1559 = vpop.f32.mrb[0].mxu0
    %v1560 = vadd.f32 0.0, %v1559
    %1561 = vmatprep.mubr.bf16.mxu0 0
    %1562 = vmatmul.mubr.bf16.gmra.mrb[0].mxu0 %v1497
    %v1563 = vpop.f32.mrb[0].mxu0
    %v1564 = vadd.f32 0.0, %v1563
    %v1565 = vpop.f32.mrb[0].mxu0
    %v1566 = vadd.f32 0.0, %v1565
    %v1567 = vpop.f32.mrb[0].mxu0
    %v1568 = vadd.f32 0.0, %v1567
    %v1569 = vpop.f32.mrb[0].mxu0
    %v1570 = vadd.f32 0.0, %v1569
    %1571 = vdwg.mxu0
    %v1572 = vunpack.c.l.bf16 %v1170
    %v1573 = vunpack.c.l.bf16 %v1171
    %v1574 = vunpack.c.l.bf16 %v1172
    %v1575 = vunpack.c.l.bf16 %v1173
    %v1576 = vunpack.c.l.bf16 %v1174
    %v1577 = vunpack.c.l.bf16 %v1175
    %v1578 = vunpack.c.l.bf16 %v1176
    %v1579 = vunpack.c.l.bf16 %v1177
    %v1580 = vadd.f32 %v1572, %v1534
    %v1581 = vadd.f32 %v1573, %v1538
    %v1582 = vadd.f32 %v1574, %v1544
    %v1583 = vadd.f32 %v1575, %v1548
    %v1584 = vadd.f32 %v1576, %v1554
    %v1585 = vadd.f32 %v1577, %v1558
    %v1586 = vadd.f32 %v1578, %v1564
    %v1587 = vadd.f32 %v1579, %v1568
    %v1588 = vxor.u32 %v1580, 2147483648
    %v1589 = vxor.u32 %v1581, 2147483648
    %v1590 = vxor.u32 %v1582, 2147483648
    %v1591 = vxor.u32 %v1583, 2147483648
    %v1592 = vxor.u32 %v1584, 2147483648
    %v1593 = vxor.u32 %v1585, 2147483648
    %v1594 = vxor.u32 %v1586, 2147483648
    %v1595 = vxor.u32 %v1587, 2147483648
    %v1596 = vmul.f32 %v1588, 1.442695
    %v1597 = vpow.pop %v1596
    %v1598 = vmul.f32 %v1589, 1.442695
    %v1599 = vpow.pop %v1598
    %v1600 = vmul.f32 %v1590, 1.442695
    %v1601 = vpow.pop %v1600
    %v1602 = vmul.f32 %v1591, 1.442695
    %v1603 = vpow.pop %v1602
    %v1604 = vmul.f32 %v1592, 1.442695
    %v1605 = vpow.pop %v1604
    %v1606 = vmul.f32 %v1593, 1.442695
    %v1607 = vpow.pop %v1606
    %v1608 = vmul.f32 %v1594, 1.442695
    %v1609 = vpow.pop %v1608
    %v1610 = vmul.f32 %v1595, 1.442695
    %v1611 = vpow.pop %v1610
    %v1612 = vadd.f32 %v1597, 1.0
    %v1613 = vadd.f32 %v1599, 1.0
    %v1614 = vadd.f32 %v1601, 1.0
    %v1615 = vadd.f32 %v1603, 1.0
    %v1616 = vadd.f32 %v1605, 1.0
    %v1617 = vadd.f32 %v1607, 1.0
    %v1618 = vadd.f32 %v1609, 1.0
    %v1619 = vadd.f32 %v1611, 1.0
    %v1620 = vrcp.pop %v1612
    %v1621 = vmul.f32 1.0, %v1620
    %v1622 = vrcp.pop %v1613
    %v1623 = vmul.f32 1.0, %v1622
    %v1624 = vrcp.pop %v1614
    %v1625 = vmul.f32 1.0, %v1624
    %v1626 = vrcp.pop %v1615
    %v1627 = vmul.f32 1.0, %v1626
    %v1628 = vrcp.pop %v1616
    %v1629 = vmul.f32 1.0, %v1628
    %v1630 = vrcp.pop %v1617
    %v1631 = vmul.f32 1.0, %v1630
    %v1632 = vrcp.pop %v1618
    %v1633 = vmul.f32 1.0, %v1632
    %v1634 = vrcp.pop %v1619
    %v1635 = vmul.f32 1.0, %v1634
    %v1644 = vrot.slane %v1170, 4
    %v1645 = vrot.slane %v1171, 4
    %v1646 = vrot.slane %v1172, 4
    %v1647 = vrot.slane %v1173, 4
    %v1648 = vrot.slane %v1174, 4
    %v1649 = vrot.slane %v1175, 4
    %v1650 = vrot.slane %v1176, 4
    %v1651 = vrot.slane %v1177, 4
    %v1660 = vunpack.c.l.bf16 %v1644
    %v1661 = vunpack.c.l.bf16 %v1645
    %v1662 = vunpack.c.l.bf16 %v1646
    %v1663 = vunpack.c.l.bf16 %v1647
    %v1664 = vunpack.c.l.bf16 %v1648
    %v1665 = vunpack.c.l.bf16 %v1649
    %v1666 = vunpack.c.l.bf16 %v1650
    %v1667 = vunpack.c.l.bf16 %v1651
    %v1668 = vadd.f32 %v1536, %v47
    %v1669 = vadd.f32 %v1540, %v47
    %v1670 = vadd.f32 %v1546, %v47
    %v1671 = vadd.f32 %v1550, %v47
    %v1672 = vadd.f32 %v1556, %v47
    %v1673 = vadd.f32 %v1560, %v47
    %v1674 = vadd.f32 %v1566, %v47
    %v1675 = vadd.f32 %v1570, %v47
    %v1676 = vmul.f32 %v1621, %v1668
    %v1677 = vmul.f32 %v1623, %v1669
    %v1678 = vmul.f32 %v1625, %v1670
    %v1679 = vmul.f32 %v1627, %v1671
    %v1680 = vmul.f32 %v1629, %v1672
    %v1681 = vmul.f32 %v1631, %v1673
    %v1682 = vmul.f32 %v1633, %v1674
    %v1683 = vmul.f32 %v1635, %v1675
    %v1684 = vadd.f32 %v1660, %v1676
    %v1685 = vadd.f32 %v1661, %v1677
    %v1686 = vadd.f32 %v1662, %v1678
    %v1687 = vadd.f32 %v1663, %v1679
    %v1688 = vadd.f32 %v1664, %v1680
    %v1689 = vadd.f32 %v1665, %v1681
    %v1690 = vadd.f32 %v1666, %v1682
    %v1691 = vadd.f32 %v1667, %v1683
    %v1692 = vtanh.pop %v1684
    %v1693 = vtanh.pop %v1685
    %v1694 = vtanh.pop %v1686
    %v1695 = vtanh.pop %v1687
    %v1696 = vtanh.pop %v1688
    %v1697 = vtanh.pop %v1689
    %v1698 = vtanh.pop %v1690
    %v1699 = vtanh.pop %v1691
    %v1700 = vsub.f32 1.0, %v1621
    %v1701 = vsub.f32 1.0, %v1623
    %v1702 = vsub.f32 1.0, %v1625
    %v1703 = vsub.f32 1.0, %v1627
    %v1704 = vsub.f32 1.0, %v1629
    %v1705 = vsub.f32 1.0, %v1631
    %v1706 = vsub.f32 1.0, %v1633
    %v1707 = vsub.f32 1.0, %v1635
    %1716 = vrot.lane.b32.xlu0 %v1692, 64
    %v1717 = vpop.permute.xlu0 %1716
    %1718 = vrot.lane.b32.xlu0 %v1693, 64
    %v1719 = vpop.permute.xlu0 %1718
    %1720 = vrot.lane.b32.xlu0 %v1694, 64
    %v1721 = vpop.permute.xlu0 %1720
    %1722 = vrot.lane.b32.xlu0 %v1695, 64
    %v1723 = vpop.permute.xlu0 %1722
    %1724 = vrot.lane.b32.xlu0 %v1696, 64
    %v1725 = vpop.permute.xlu0 %1724
    %1726 = vrot.lane.b32.xlu0 %v1697, 64
    %v1727 = vpop.permute.xlu0 %1726
    %1728 = vrot.lane.b32.xlu0 %v1698, 64
    %v1729 = vpop.permute.xlu0 %1728
    %1730 = vrot.lane.b32.xlu0 %v1699, 64
    %v1731 = vpop.permute.xlu0 %1730
    %v1740 = vmul.f32 %v1700, %v1717
    %v1741 = vmul.f32 %v1701, %v1719
    %v1742 = vmul.f32 %v1702, %v1721
    %v1743 = vmul.f32 %v1703, %v1723
    %v1744 = vmul.f32 %v1704, %v1725
    %v1745 = vmul.f32 %v1705, %v1727
    %v1746 = vmul.f32 %v1706, %v1729
    %v1747 = vmul.f32 %v1707, %v1731
    %v1748 = vmul.f32 %v1621, %v1153
    %v1749 = vmul.f32 %v1623, %v1154
    %v1750 = vmul.f32 %v1625, %v1155
    %v1751 = vmul.f32 %v1627, %v1156
    %v1752 = vmul.f32 %v1629, %v1157
    %v1753 = vmul.f32 %v1631, %v1158
    %v1754 = vmul.f32 %v1633, %v1159
    %v1755 = vmul.f32 %v1635, %v1160
    %v1756 = vadd.f32 %v1740, %v1748
    %v1757 = vadd.f32 %v1741, %v1749
    %v1758 = vadd.f32 %v1742, %v1750
    %v1759 = vadd.f32 %v1743, %v1751
    %v1760 = vadd.f32 %v1744, %v1752
    %v1761 = vadd.f32 %v1745, %v1753
    %v1762 = vadd.f32 %v1746, %v1754
    %v1763 = vadd.f32 %v1747, %v1755
    %s1764 = scalar_lea.vmem %s0, 384
    %v1765 = vld [vmem:[%s1764] sm:$0xff]
    %v1766 = vld [vmem:[%s1764 + $0x8] sm:$0xff]
    %v1767 = vld [vmem:[%s1764 + $0x10] sm:$0xff]
    %v1768 = vld [vmem:[%s1764 + $0x18] sm:$0xff]
    %v1769 = vld [vmem:[%s1764 + $0x20] sm:$0xff]
    %v1770 = vld [vmem:[%s1764 + $0x28] sm:$0xff]
    %v1771 = vld [vmem:[%s1764 + $0x30] sm:$0xff]
    %v1772 = vld [vmem:[%s1764 + $0x38] sm:$0xff]
    %v1773 = vld [vmem:[%s1764 + $0x40] sm:$0xff]
    %v1774 = vld [vmem:[%s1764 + $0x48] sm:$0xff]
    %v1775 = vld [vmem:[%s1764 + $0x50] sm:$0xff]
    %v1776 = vld [vmem:[%s1764 + $0x58] sm:$0xff]
    %v1777 = vld [vmem:[%s1764 + $0x60] sm:$0xff]
    %v1778 = vld [vmem:[%s1764 + $0x68] sm:$0xff]
    %v1779 = vld [vmem:[%s1764 + $0x70] sm:$0xff]
    %v1780 = vld [vmem:[%s1764 + $0x78] sm:$0xff]
    %v1781 = vpack.c.bf16 %v1464, %v1463
    %v1782 = vpack.c.bf16 %v1466, %v1465
    %v1783 = vpack.c.bf16 %v1468, %v1467
    %v1784 = vpack.c.bf16 %v1470, %v1469
    %1789 = vrot.lane.b32.xlu0 %v1781, 64
    %v1790 = vpop.permute.xlu0 %1789
    %1791 = vrot.lane.b32.xlu0 %v1782, 64
    %v1792 = vpop.permute.xlu0 %1791
    %1793 = vrot.lane.b32.xlu0 %v1783, 64
    %v1794 = vpop.permute.xlu0 %1793
    %1795 = vrot.lane.b32.xlu0 %v1784, 64
    %v1796 = vpop.permute.xlu0 %1795
    %v1798 = vsel %vm105, %v1790, 0
    %v1801 = vsel %vm105, %v1792, 0
    %v1804 = vsel %vm105, %v1794, 0
    %v1807 = vsel %vm105, %v1796, 0
    %1809 = vmatprep.subr.bf16.mxu0 %v90
    %1810 = vmatpush1.bf16.msra.mxu0 %v89
    %1811 = vmatprep.subr.bf16.mxu0 %v92
    %1812 = vmatpush1.bf16.msra.mxu0 %v91
    %1813 = vmatprep.subr.bf16.mxu0 %v94
    %1814 = vmatpush1.bf16.msra.mxu0 %v93
    %1815 = vmatprep.subr.bf16.mxu0 %v96
    %1816 = vmatpush1.bf16.msra.mxu0 %v95
    %1817 = vmatprep.subr.bf16.mxu0 0
    %1818 = vmatpush1.bf16.msra.mxu0 0
    %1819 = vmatprep.subr.bf16.mxu0 0
    %1820 = vmatpush1.bf16.msra.mxu0 0
    %1821 = vmatprep.subr.bf16.mxu0 0
    %1822 = vmatpush1.bf16.msra.mxu0 0
    %1823 = vmatprep.subr.bf16.mxu0 0
    %1824 = vmatpush1.bf16.msra.mxu0 0
    %1825 = vmatprep.subr.bf16.mxu0 0
    %1826 = vmatpush1.bf16.msra.mxu0 0
    %1827 = vmatprep.subr.bf16.mxu0 0
    %1828 = vmatpush1.bf16.msra.mxu0 0
    %1829 = vmatprep.subr.bf16.mxu0 0
    %1830 = vmatpush1.bf16.msra.mxu0 0
    %1831 = vmatprep.subr.bf16.mxu0 0
    %1832 = vmatpush1.bf16.msra.mxu0 0
    %1833 = vmatprep.subr.bf16.mxu0 0
    %1834 = vmatpush1.bf16.msra.mxu0 0
    %1835 = vmatprep.subr.bf16.mxu0 0
    %1836 = vmatpush1.bf16.msra.mxu0 0
    %1837 = vmatprep.subr.bf16.mxu0 0
    %1838 = vmatpush1.bf16.msra.mxu0 0
    %1839 = vmatprep.subr.bf16.mxu0 0
    %1840 = vmatpush1.bf16.msra.mxu0 0
    %1841 = vmatprep.mubr.bf16.mxu0 0
    %1842 = vmatmul.mubr.bf16.gmra.mrb[0].mxu0 %v1798
    %v1843 = vpop.f32.mrb[0].mxu0
    %v1844 = vadd.f32 0.0, %v1843
    %v1845 = vpop.f32.mrb[0].mxu0
    %v1846 = vadd.f32 0.0, %v1845
    %v1847 = vpop.f32.mrb[0].mxu0
    %v1848 = vadd.f32 0.0, %v1847
    %v1849 = vpop.f32.mrb[0].mxu0
    %v1850 = vadd.f32 0.0, %v1849
    %1851 = vmatprep.mubr.bf16.mxu0 0
    %1852 = vmatmul.mubr.bf16.gmra.mrb[0].mxu0 %v1801
    %v1853 = vpop.f32.mrb[0].mxu0
    %v1854 = vadd.f32 0.0, %v1853
    %v1855 = vpop.f32.mrb[0].mxu0
    %v1856 = vadd.f32 0.0, %v1855
    %v1857 = vpop.f32.mrb[0].mxu0
    %v1858 = vadd.f32 0.0, %v1857
    %v1859 = vpop.f32.mrb[0].mxu0
    %v1860 = vadd.f32 0.0, %v1859
    %1861 = vmatprep.mubr.bf16.mxu0 0
    %1862 = vmatmul.mubr.bf16.gmra.mrb[0].mxu0 %v1804
    %v1863 = vpop.f32.mrb[0].mxu0
    %v1864 = vadd.f32 0.0, %v1863
    %v1865 = vpop.f32.mrb[0].mxu0
    %v1866 = vadd.f32 0.0, %v1865
    %v1867 = vpop.f32.mrb[0].mxu0
    %v1868 = vadd.f32 0.0, %v1867
    %v1869 = vpop.f32.mrb[0].mxu0
    %v1870 = vadd.f32 0.0, %v1869
    %1871 = vmatprep.mubr.bf16.mxu0 0
    %1872 = vmatmul.mubr.bf16.gmra.mrb[0].mxu0 %v1807
    %v1873 = vpop.f32.mrb[0].mxu0
    %v1874 = vadd.f32 0.0, %v1873
    %v1875 = vpop.f32.mrb[0].mxu0
    %v1876 = vadd.f32 0.0, %v1875
    %v1877 = vpop.f32.mrb[0].mxu0
    %v1878 = vadd.f32 0.0, %v1877
    %v1879 = vpop.f32.mrb[0].mxu0
    %v1880 = vadd.f32 0.0, %v1879
    %1881 = vdwg.mxu0
    %v1882 = vunpack.c.l.bf16 %v1765
    %v1883 = vunpack.c.l.bf16 %v1766
    %v1884 = vunpack.c.l.bf16 %v1767
    %v1885 = vunpack.c.l.bf16 %v1768
    %v1886 = vunpack.c.l.bf16 %v1769
    %v1887 = vunpack.c.l.bf16 %v1770
    %v1888 = vunpack.c.l.bf16 %v1771
    %v1889 = vunpack.c.l.bf16 %v1772
    %v1890 = vadd.f32 %v1882, %v1844
    %v1891 = vadd.f32 %v1883, %v1848
    %v1892 = vadd.f32 %v1884, %v1854
    %v1893 = vadd.f32 %v1885, %v1858
    %v1894 = vadd.f32 %v1886, %v1864
    %v1895 = vadd.f32 %v1887, %v1868
    %v1896 = vadd.f32 %v1888, %v1874
    %v1897 = vadd.f32 %v1889, %v1878
    %v1898 = vxor.u32 %v1890, 2147483648
    %v1899 = vxor.u32 %v1891, 2147483648
    %v1900 = vxor.u32 %v1892, 2147483648
    %v1901 = vxor.u32 %v1893, 2147483648
    %v1902 = vxor.u32 %v1894, 2147483648
    %v1903 = vxor.u32 %v1895, 2147483648
    %v1904 = vxor.u32 %v1896, 2147483648
    %v1905 = vxor.u32 %v1897, 2147483648
    %v1906 = vmul.f32 %v1898, 1.442695
    %v1907 = vpow.pop %v1906
    %v1908 = vmul.f32 %v1899, 1.442695
    %v1909 = vpow.pop %v1908
    %v1910 = vmul.f32 %v1900, 1.442695
    %v1911 = vpow.pop %v1910
    %v1912 = vmul.f32 %v1901, 1.442695
    %v1913 = vpow.pop %v1912
    %v1914 = vmul.f32 %v1902, 1.442695
    %v1915 = vpow.pop %v1914
    %v1916 = vmul.f32 %v1903, 1.442695
    %v1917 = vpow.pop %v1916
    %v1918 = vmul.f32 %v1904, 1.442695
    %v1919 = vpow.pop %v1918
    %v1920 = vmul.f32 %v1905, 1.442695
    %v1921 = vpow.pop %v1920
    %v1922 = vadd.f32 %v1907, 1.0
    %v1923 = vadd.f32 %v1909, 1.0
    %v1924 = vadd.f32 %v1911, 1.0
    %v1925 = vadd.f32 %v1913, 1.0
    %v1926 = vadd.f32 %v1915, 1.0
    %v1927 = vadd.f32 %v1917, 1.0
    %v1928 = vadd.f32 %v1919, 1.0
    %v1929 = vadd.f32 %v1921, 1.0
    %v1930 = vrcp.pop %v1922
    %v1931 = vmul.f32 1.0, %v1930
    %v1932 = vrcp.pop %v1923
    %v1933 = vmul.f32 1.0, %v1932
    %v1934 = vrcp.pop %v1924
    %v1935 = vmul.f32 1.0, %v1934
    %v1936 = vrcp.pop %v1925
    %v1937 = vmul.f32 1.0, %v1936
    %v1938 = vrcp.pop %v1926
    %v1939 = vmul.f32 1.0, %v1938
    %v1940 = vrcp.pop %v1927
    %v1941 = vmul.f32 1.0, %v1940
    %v1942 = vrcp.pop %v1928
    %v1943 = vmul.f32 1.0, %v1942
    %v1944 = vrcp.pop %v1929
    %v1945 = vmul.f32 1.0, %v1944
    %v1954 = vrot.slane %v1765, 4
    %v1955 = vrot.slane %v1766, 4
    %v1956 = vrot.slane %v1767, 4
    %v1957 = vrot.slane %v1768, 4
    %v1958 = vrot.slane %v1769, 4
    %v1959 = vrot.slane %v1770, 4
    %v1960 = vrot.slane %v1771, 4
    %v1961 = vrot.slane %v1772, 4
    %v1970 = vunpack.c.l.bf16 %v1954
    %v1971 = vunpack.c.l.bf16 %v1955
    %v1972 = vunpack.c.l.bf16 %v1956
    %v1973 = vunpack.c.l.bf16 %v1957
    %v1974 = vunpack.c.l.bf16 %v1958
    %v1975 = vunpack.c.l.bf16 %v1959
    %v1976 = vunpack.c.l.bf16 %v1960
    %v1977 = vunpack.c.l.bf16 %v1961
    %v1978 = vadd.f32 %v1846, %v47
    %v1979 = vadd.f32 %v1850, %v47
    %v1980 = vadd.f32 %v1856, %v47
    %v1981 = vadd.f32 %v1860, %v47
    %v1982 = vadd.f32 %v1866, %v47
    %v1983 = vadd.f32 %v1870, %v47
    %v1984 = vadd.f32 %v1876, %v47
    %v1985 = vadd.f32 %v1880, %v47
    %v1986 = vmul.f32 %v1931, %v1978
    %v1987 = vmul.f32 %v1933, %v1979
    %v1988 = vmul.f32 %v1935, %v1980
    %v1989 = vmul.f32 %v1937, %v1981
    %v1990 = vmul.f32 %v1939, %v1982
    %v1991 = vmul.f32 %v1941, %v1983
    %v1992 = vmul.f32 %v1943, %v1984
    %v1993 = vmul.f32 %v1945, %v1985
    %v1994 = vadd.f32 %v1970, %v1986
    %v1995 = vadd.f32 %v1971, %v1987
    %v1996 = vadd.f32 %v1972, %v1988
    %v1997 = vadd.f32 %v1973, %v1989
    %v1998 = vadd.f32 %v1974, %v1990
    %v1999 = vadd.f32 %v1975, %v1991
    %v2000 = vadd.f32 %v1976, %v1992
    %v2001 = vadd.f32 %v1977, %v1993
    %v2002 = vtanh.pop %v1994
    %v2003 = vtanh.pop %v1995
    %v2004 = vtanh.pop %v1996
    %v2005 = vtanh.pop %v1997
    %v2006 = vtanh.pop %v1998
    %v2007 = vtanh.pop %v1999
    %v2008 = vtanh.pop %v2000
    %v2009 = vtanh.pop %v2001
    %v2010 = vsub.f32 1.0, %v1931
    %v2011 = vsub.f32 1.0, %v1933
    %v2012 = vsub.f32 1.0, %v1935
    %v2013 = vsub.f32 1.0, %v1937
    %v2014 = vsub.f32 1.0, %v1939
    %v2015 = vsub.f32 1.0, %v1941
    %v2016 = vsub.f32 1.0, %v1943
    %v2017 = vsub.f32 1.0, %v1945
    %2026 = vrot.lane.b32.xlu0 %v2002, 64
    %v2027 = vpop.permute.xlu0 %2026
    %2028 = vrot.lane.b32.xlu0 %v2003, 64
    %v2029 = vpop.permute.xlu0 %2028
    %2030 = vrot.lane.b32.xlu0 %v2004, 64
    %v2031 = vpop.permute.xlu0 %2030
    %2032 = vrot.lane.b32.xlu0 %v2005, 64
    %v2033 = vpop.permute.xlu0 %2032
    %2034 = vrot.lane.b32.xlu0 %v2006, 64
    %v2035 = vpop.permute.xlu0 %2034
    %2036 = vrot.lane.b32.xlu0 %v2007, 64
    %v2037 = vpop.permute.xlu0 %2036
    %2038 = vrot.lane.b32.xlu0 %v2008, 64
    %v2039 = vpop.permute.xlu0 %2038
    %2040 = vrot.lane.b32.xlu0 %v2009, 64
    %v2041 = vpop.permute.xlu0 %2040
    %v2050 = vmul.f32 %v2010, %v2027
    %v2051 = vmul.f32 %v2011, %v2029
    %v2052 = vmul.f32 %v2012, %v2031
    %v2053 = vmul.f32 %v2013, %v2033
    %v2054 = vmul.f32 %v2014, %v2035
    %v2055 = vmul.f32 %v2015, %v2037
    %v2056 = vmul.f32 %v2016, %v2039
    %v2057 = vmul.f32 %v2017, %v2041
    %v2058 = vmul.f32 %v1931, %v1463
    %v2059 = vmul.f32 %v1933, %v1464
    %v2060 = vmul.f32 %v1935, %v1465
    %v2061 = vmul.f32 %v1937, %v1466
    %v2062 = vmul.f32 %v1939, %v1467
    %v2063 = vmul.f32 %v1941, %v1468
    %v2064 = vmul.f32 %v1943, %v1469
    %v2065 = vmul.f32 %v1945, %v1470
    %v2066 = vadd.f32 %v2050, %v2058
    %v2067 = vadd.f32 %v2051, %v2059
    %v2068 = vadd.f32 %v2052, %v2060
    %v2069 = vadd.f32 %v2053, %v2061
    %v2070 = vadd.f32 %v2054, %v2062
    %v2071 = vadd.f32 %v2055, %v2063
    %v2072 = vadd.f32 %v2056, %v2064
    %v2073 = vadd.f32 %v2057, %v2065
    %v2074 = vpack.c.bf16 %v1757, %v1756
    %v2075 = vpack.c.bf16 %v1759, %v1758
    %v2076 = vpack.c.bf16 %v1761, %v1760
    %v2077 = vpack.c.bf16 %v1763, %v1762
    %2082 = vrot.lane.b32.xlu0 %v2074, 64
    %v2083 = vpop.permute.xlu0 %2082
    %2084 = vrot.lane.b32.xlu0 %v2075, 64
    %v2085 = vpop.permute.xlu0 %2084
    %2086 = vrot.lane.b32.xlu0 %v2076, 64
    %v2087 = vpop.permute.xlu0 %2086
    %2088 = vrot.lane.b32.xlu0 %v2077, 64
    %v2089 = vpop.permute.xlu0 %2088
    %v2091 = vsel %vm105, %v2083, 0
    %v2094 = vsel %vm105, %v2085, 0
    %v2097 = vsel %vm105, %v2087, 0
    %v2100 = vsel %vm105, %v2089, 0
    %2102 = vmatprep.subr.bf16.mxu0 %v90
    %2103 = vmatpush1.bf16.msra.mxu0 %v89
    %2104 = vmatprep.subr.bf16.mxu0 %v92
    %2105 = vmatpush1.bf16.msra.mxu0 %v91
    %2106 = vmatprep.subr.bf16.mxu0 %v94
    %2107 = vmatpush1.bf16.msra.mxu0 %v93
    %2108 = vmatprep.subr.bf16.mxu0 %v96
    %2109 = vmatpush1.bf16.msra.mxu0 %v95
    %2110 = vmatprep.subr.bf16.mxu0 0
    %2111 = vmatpush1.bf16.msra.mxu0 0
    %2112 = vmatprep.subr.bf16.mxu0 0
    %2113 = vmatpush1.bf16.msra.mxu0 0
    %2114 = vmatprep.subr.bf16.mxu0 0
    %2115 = vmatpush1.bf16.msra.mxu0 0
    %2116 = vmatprep.subr.bf16.mxu0 0
    %2117 = vmatpush1.bf16.msra.mxu0 0
    %2118 = vmatprep.subr.bf16.mxu0 0
    %2119 = vmatpush1.bf16.msra.mxu0 0
    %2120 = vmatprep.subr.bf16.mxu0 0
    %2121 = vmatpush1.bf16.msra.mxu0 0
    %2122 = vmatprep.subr.bf16.mxu0 0
    %2123 = vmatpush1.bf16.msra.mxu0 0
    %2124 = vmatprep.subr.bf16.mxu0 0
    %2125 = vmatpush1.bf16.msra.mxu0 0
    %2126 = vmatprep.subr.bf16.mxu0 0
    %2127 = vmatpush1.bf16.msra.mxu0 0
    %2128 = vmatprep.subr.bf16.mxu0 0
    %2129 = vmatpush1.bf16.msra.mxu0 0
    %2130 = vmatprep.subr.bf16.mxu0 0
    %2131 = vmatpush1.bf16.msra.mxu0 0
    %2132 = vmatprep.subr.bf16.mxu0 0
    %2133 = vmatpush1.bf16.msra.mxu0 0
    %2134 = vmatprep.mubr.bf16.mxu0 0
    %2135 = vmatmul.mubr.bf16.gmra.mrb[0].mxu0 %v2091
    %v2136 = vpop.f32.mrb[0].mxu0
    %v2137 = vadd.f32 0.0, %v2136
    %v2138 = vpop.f32.mrb[0].mxu0
    %v2139 = vadd.f32 0.0, %v2138
    %v2140 = vpop.f32.mrb[0].mxu0
    %v2141 = vadd.f32 0.0, %v2140
    %v2142 = vpop.f32.mrb[0].mxu0
    %v2143 = vadd.f32 0.0, %v2142
    %2144 = vmatprep.mubr.bf16.mxu0 0
    %2145 = vmatmul.mubr.bf16.gmra.mrb[0].mxu0 %v2094
    %v2146 = vpop.f32.mrb[0].mxu0
    %v2147 = vadd.f32 0.0, %v2146
    %v2148 = vpop.f32.mrb[0].mxu0
    %v2149 = vadd.f32 0.0, %v2148
    %v2150 = vpop.f32.mrb[0].mxu0
    %v2151 = vadd.f32 0.0, %v2150
    %v2152 = vpop.f32.mrb[0].mxu0
    %v2153 = vadd.f32 0.0, %v2152
    %2154 = vmatprep.mubr.bf16.mxu0 0
    %2155 = vmatmul.mubr.bf16.gmra.mrb[0].mxu0 %v2097
    %v2156 = vpop.f32.mrb[0].mxu0
    %v2157 = vadd.f32 0.0, %v2156
    %v2158 = vpop.f32.mrb[0].mxu0
    %v2159 = vadd.f32 0.0, %v2158
    %v2160 = vpop.f32.mrb[0].mxu0
    %v2161 = vadd.f32 0.0, %v2160
    %v2162 = vpop.f32.mrb[0].mxu0
    %v2163 = vadd.f32 0.0, %v2162
    %2164 = vmatprep.mubr.bf16.mxu0 0
    %2165 = vmatmul.mubr.bf16.gmra.mrb[0].mxu0 %v2100
    %v2166 = vpop.f32.mrb[0].mxu0
    %v2167 = vadd.f32 0.0, %v2166
    %v2168 = vpop.f32.mrb[0].mxu0
    %v2169 = vadd.f32 0.0, %v2168
    %v2170 = vpop.f32.mrb[0].mxu0
    %v2171 = vadd.f32 0.0, %v2170
    %v2172 = vpop.f32.mrb[0].mxu0
    %v2173 = vadd.f32 0.0, %v2172
    %2174 = vdwg.mxu0
    %v2175 = vunpack.c.l.bf16 %v1773
    %v2176 = vunpack.c.l.bf16 %v1774
    %v2177 = vunpack.c.l.bf16 %v1775
    %v2178 = vunpack.c.l.bf16 %v1776
    %v2179 = vunpack.c.l.bf16 %v1777
    %v2180 = vunpack.c.l.bf16 %v1778
    %v2181 = vunpack.c.l.bf16 %v1779
    %v2182 = vunpack.c.l.bf16 %v1780
    %v2183 = vadd.f32 %v2175, %v2137
    %v2184 = vadd.f32 %v2176, %v2141
    %v2185 = vadd.f32 %v2177, %v2147
    %v2186 = vadd.f32 %v2178, %v2151
    %v2187 = vadd.f32 %v2179, %v2157
    %v2188 = vadd.f32 %v2180, %v2161
    %v2189 = vadd.f32 %v2181, %v2167
    %v2190 = vadd.f32 %v2182, %v2171
    %v2191 = vxor.u32 %v2183, 2147483648
    %v2192 = vxor.u32 %v2184, 2147483648
    %v2193 = vxor.u32 %v2185, 2147483648
    %v2194 = vxor.u32 %v2186, 2147483648
    %v2195 = vxor.u32 %v2187, 2147483648
    %v2196 = vxor.u32 %v2188, 2147483648
    %v2197 = vxor.u32 %v2189, 2147483648
    %v2198 = vxor.u32 %v2190, 2147483648
    %v2199 = vmul.f32 %v2191, 1.442695
    %v2200 = vpow.pop %v2199
    %v2201 = vmul.f32 %v2192, 1.442695
    %v2202 = vpow.pop %v2201
    %v2203 = vmul.f32 %v2193, 1.442695
    %v2204 = vpow.pop %v2203
    %v2205 = vmul.f32 %v2194, 1.442695
    %v2206 = vpow.pop %v2205
    %v2207 = vmul.f32 %v2195, 1.442695
    %v2208 = vpow.pop %v2207
    %v2209 = vmul.f32 %v2196, 1.442695
    %v2210 = vpow.pop %v2209
    %v2211 = vmul.f32 %v2197, 1.442695
    %v2212 = vpow.pop %v2211
    %v2213 = vmul.f32 %v2198, 1.442695
    %v2214 = vpow.pop %v2213
    %v2215 = vadd.f32 %v2200, 1.0
    %v2216 = vadd.f32 %v2202, 1.0
    %v2217 = vadd.f32 %v2204, 1.0
    %v2218 = vadd.f32 %v2206, 1.0
    %v2219 = vadd.f32 %v2208, 1.0
    %v2220 = vadd.f32 %v2210, 1.0
    %v2221 = vadd.f32 %v2212, 1.0
    %v2222 = vadd.f32 %v2214, 1.0
    %v2223 = vrcp.pop %v2215
    %v2224 = vmul.f32 1.0, %v2223
    %v2225 = vrcp.pop %v2216
    %v2226 = vmul.f32 1.0, %v2225
    %v2227 = vrcp.pop %v2217
    %v2228 = vmul.f32 1.0, %v2227
    %v2229 = vrcp.pop %v2218
    %v2230 = vmul.f32 1.0, %v2229
    %v2231 = vrcp.pop %v2219
    %v2232 = vmul.f32 1.0, %v2231
    %v2233 = vrcp.pop %v2220
    %v2234 = vmul.f32 1.0, %v2233
    %v2235 = vrcp.pop %v2221
    %v2236 = vmul.f32 1.0, %v2235
    %v2237 = vrcp.pop %v2222
    %v2238 = vmul.f32 1.0, %v2237
    %v2247 = vrot.slane %v1773, 4
    %v2248 = vrot.slane %v1774, 4
    %v2249 = vrot.slane %v1775, 4
    %v2250 = vrot.slane %v1776, 4
    %v2251 = vrot.slane %v1777, 4
    %v2252 = vrot.slane %v1778, 4
    %v2253 = vrot.slane %v1779, 4
    %v2254 = vrot.slane %v1780, 4
    %v2263 = vunpack.c.l.bf16 %v2247
    %v2264 = vunpack.c.l.bf16 %v2248
    %v2265 = vunpack.c.l.bf16 %v2249
    %v2266 = vunpack.c.l.bf16 %v2250
    %v2267 = vunpack.c.l.bf16 %v2251
    %v2268 = vunpack.c.l.bf16 %v2252
    %v2269 = vunpack.c.l.bf16 %v2253
    %v2270 = vunpack.c.l.bf16 %v2254
    %v2271 = vadd.f32 %v2139, %v47
    %v2272 = vadd.f32 %v2143, %v47
    %v2273 = vadd.f32 %v2149, %v47
    %v2274 = vadd.f32 %v2153, %v47
    %v2275 = vadd.f32 %v2159, %v47
    %v2276 = vadd.f32 %v2163, %v47
    %v2277 = vadd.f32 %v2169, %v47
    %v2278 = vadd.f32 %v2173, %v47
    %v2279 = vmul.f32 %v2224, %v2271
    %v2280 = vmul.f32 %v2226, %v2272
    %v2281 = vmul.f32 %v2228, %v2273
    %v2282 = vmul.f32 %v2230, %v2274
    %v2283 = vmul.f32 %v2232, %v2275
    %v2284 = vmul.f32 %v2234, %v2276
    %v2285 = vmul.f32 %v2236, %v2277
    %v2286 = vmul.f32 %v2238, %v2278
    %v2287 = vadd.f32 %v2263, %v2279
    %v2288 = vadd.f32 %v2264, %v2280
    %v2289 = vadd.f32 %v2265, %v2281
    %v2290 = vadd.f32 %v2266, %v2282
    %v2291 = vadd.f32 %v2267, %v2283
    %v2292 = vadd.f32 %v2268, %v2284
    %v2293 = vadd.f32 %v2269, %v2285
    %v2294 = vadd.f32 %v2270, %v2286
    %v2295 = vtanh.pop %v2287
    %v2296 = vtanh.pop %v2288
    %v2297 = vtanh.pop %v2289
    %v2298 = vtanh.pop %v2290
    %v2299 = vtanh.pop %v2291
    %v2300 = vtanh.pop %v2292
    %v2301 = vtanh.pop %v2293
    %v2302 = vtanh.pop %v2294
    %v2303 = vsub.f32 1.0, %v2224
    %v2304 = vsub.f32 1.0, %v2226
    %v2305 = vsub.f32 1.0, %v2228
    %v2306 = vsub.f32 1.0, %v2230
    %v2307 = vsub.f32 1.0, %v2232
    %v2308 = vsub.f32 1.0, %v2234
    %v2309 = vsub.f32 1.0, %v2236
    %v2310 = vsub.f32 1.0, %v2238
    %2319 = vrot.lane.b32.xlu0 %v2295, 64
    %v2320 = vpop.permute.xlu0 %2319
    %2321 = vrot.lane.b32.xlu0 %v2296, 64
    %v2322 = vpop.permute.xlu0 %2321
    %2323 = vrot.lane.b32.xlu0 %v2297, 64
    %v2324 = vpop.permute.xlu0 %2323
    %2325 = vrot.lane.b32.xlu0 %v2298, 64
    %v2326 = vpop.permute.xlu0 %2325
    %2327 = vrot.lane.b32.xlu0 %v2299, 64
    %v2328 = vpop.permute.xlu0 %2327
    %2329 = vrot.lane.b32.xlu0 %v2300, 64
    %v2330 = vpop.permute.xlu0 %2329
    %2331 = vrot.lane.b32.xlu0 %v2301, 64
    %v2332 = vpop.permute.xlu0 %2331
    %2333 = vrot.lane.b32.xlu0 %v2302, 64
    %v2334 = vpop.permute.xlu0 %2333
    %v2343 = vmul.f32 %v2303, %v2320
    %v2344 = vmul.f32 %v2304, %v2322
    %v2345 = vmul.f32 %v2305, %v2324
    %v2346 = vmul.f32 %v2306, %v2326
    %v2347 = vmul.f32 %v2307, %v2328
    %v2348 = vmul.f32 %v2308, %v2330
    %v2349 = vmul.f32 %v2309, %v2332
    %v2350 = vmul.f32 %v2310, %v2334
    %v2351 = vmul.f32 %v2224, %v1756
    %v2352 = vmul.f32 %v2226, %v1757
    %v2353 = vmul.f32 %v2228, %v1758
    %v2354 = vmul.f32 %v2230, %v1759
    %v2355 = vmul.f32 %v2232, %v1760
    %v2356 = vmul.f32 %v2234, %v1761
    %v2357 = vmul.f32 %v2236, %v1762
    %v2358 = vmul.f32 %v2238, %v1763
    %v2359 = vadd.f32 %v2343, %v2351
    %v2360 = vadd.f32 %v2344, %v2352
    %v2361 = vadd.f32 %v2345, %v2353
    %v2362 = vadd.f32 %v2346, %v2354
    %v2363 = vadd.f32 %v2347, %v2355
    %v2364 = vadd.f32 %v2348, %v2356
    %v2365 = vadd.f32 %v2349, %v2357
    %v2366 = vadd.f32 %v2350, %v2358
    %s2367 = scalar_lea.vmem %s0, 512
    %v2368 = vld [vmem:[%s2367] sm:$0xff]
    %v2369 = vld [vmem:[%s2367 + $0x8] sm:$0xff]
    %v2370 = vld [vmem:[%s2367 + $0x10] sm:$0xff]
    %v2371 = vld [vmem:[%s2367 + $0x18] sm:$0xff]
    %v2372 = vld [vmem:[%s2367 + $0x20] sm:$0xff]
    %v2373 = vld [vmem:[%s2367 + $0x28] sm:$0xff]
    %v2374 = vld [vmem:[%s2367 + $0x30] sm:$0xff]
    %v2375 = vld [vmem:[%s2367 + $0x38] sm:$0xff]
    %v2376 = vld [vmem:[%s2367 + $0x40] sm:$0xff]
    %v2377 = vld [vmem:[%s2367 + $0x48] sm:$0xff]
    %v2378 = vld [vmem:[%s2367 + $0x50] sm:$0xff]
    %v2379 = vld [vmem:[%s2367 + $0x58] sm:$0xff]
    %v2380 = vld [vmem:[%s2367 + $0x60] sm:$0xff]
    %v2381 = vld [vmem:[%s2367 + $0x68] sm:$0xff]
    %v2382 = vld [vmem:[%s2367 + $0x70] sm:$0xff]
    %v2383 = vld [vmem:[%s2367 + $0x78] sm:$0xff]
    %v2384 = vpack.c.bf16 %v2067, %v2066
    %v2385 = vpack.c.bf16 %v2069, %v2068
    %v2386 = vpack.c.bf16 %v2071, %v2070
    %v2387 = vpack.c.bf16 %v2073, %v2072
    %2392 = vrot.lane.b32.xlu0 %v2384, 64
    %v2393 = vpop.permute.xlu0 %2392
    %2394 = vrot.lane.b32.xlu0 %v2385, 64
    %v2395 = vpop.permute.xlu0 %2394
    %2396 = vrot.lane.b32.xlu0 %v2386, 64
    %v2397 = vpop.permute.xlu0 %2396
    %2398 = vrot.lane.b32.xlu0 %v2387, 64
    %v2399 = vpop.permute.xlu0 %2398
    %v2401 = vsel %vm105, %v2393, 0
    %v2404 = vsel %vm105, %v2395, 0
    %v2407 = vsel %vm105, %v2397, 0
    %v2410 = vsel %vm105, %v2399, 0
    %2412 = vmatprep.subr.bf16.mxu0 %v90
    %2413 = vmatpush1.bf16.msra.mxu0 %v89
    %2414 = vmatprep.subr.bf16.mxu0 %v92
    %2415 = vmatpush1.bf16.msra.mxu0 %v91
    %2416 = vmatprep.subr.bf16.mxu0 %v94
    %2417 = vmatpush1.bf16.msra.mxu0 %v93
    %2418 = vmatprep.subr.bf16.mxu0 %v96
    %2419 = vmatpush1.bf16.msra.mxu0 %v95
    %2420 = vmatprep.subr.bf16.mxu0 0
    %2421 = vmatpush1.bf16.msra.mxu0 0
    %2422 = vmatprep.subr.bf16.mxu0 0
    %2423 = vmatpush1.bf16.msra.mxu0 0
    %2424 = vmatprep.subr.bf16.mxu0 0
    %2425 = vmatpush1.bf16.msra.mxu0 0
    %2426 = vmatprep.subr.bf16.mxu0 0
    %2427 = vmatpush1.bf16.msra.mxu0 0
    %2428 = vmatprep.subr.bf16.mxu0 0
    %2429 = vmatpush1.bf16.msra.mxu0 0
    %2430 = vmatprep.subr.bf16.mxu0 0
    %2431 = vmatpush1.bf16.msra.mxu0 0
    %2432 = vmatprep.subr.bf16.mxu0 0
    %2433 = vmatpush1.bf16.msra.mxu0 0
    %2434 = vmatprep.subr.bf16.mxu0 0
    %2435 = vmatpush1.bf16.msra.mxu0 0
    %2436 = vmatprep.subr.bf16.mxu0 0
    %2437 = vmatpush1.bf16.msra.mxu0 0
    %2438 = vmatprep.subr.bf16.mxu0 0
    %2439 = vmatpush1.bf16.msra.mxu0 0
    %2440 = vmatprep.subr.bf16.mxu0 0
    %2441 = vmatpush1.bf16.msra.mxu0 0
    %2442 = vmatprep.subr.bf16.mxu0 0
    %2443 = vmatpush1.bf16.msra.mxu0 0
    %2444 = vmatprep.mubr.bf16.mxu0 0
    %2445 = vmatmul.mubr.bf16.gmra.mrb[0].mxu0 %v2401
    %v2446 = vpop.f32.mrb[0].mxu0
    %v2447 = vadd.f32 0.0, %v2446
    %v2448 = vpop.f32.mrb[0].mxu0
    %v2449 = vadd.f32 0.0, %v2448
    %v2450 = vpop.f32.mrb[0].mxu0
    %v2451 = vadd.f32 0.0, %v2450
    %v2452 = vpop.f32.mrb[0].mxu0
    %v2453 = vadd.f32 0.0, %v2452
    %2454 = vmatprep.mubr.bf16.mxu0 0
    %2455 = vmatmul.mubr.bf16.gmra.mrb[0].mxu0 %v2404
    %v2456 = vpop.f32.mrb[0].mxu0
    %v2457 = vadd.f32 0.0, %v2456
    %v2458 = vpop.f32.mrb[0].mxu0
    %v2459 = vadd.f32 0.0, %v2458
    %v2460 = vpop.f32.mrb[0].mxu0
    %v2461 = vadd.f32 0.0, %v2460
    %v2462 = vpop.f32.mrb[0].mxu0
    %v2463 = vadd.f32 0.0, %v2462
    %2464 = vmatprep.mubr.bf16.mxu0 0
    %2465 = vmatmul.mubr.bf16.gmra.mrb[0].mxu0 %v2407
    %v2466 = vpop.f32.mrb[0].mxu0
    %v2467 = vadd.f32 0.0, %v2466
    %v2468 = vpop.f32.mrb[0].mxu0
    %v2469 = vadd.f32 0.0, %v2468
    %v2470 = vpop.f32.mrb[0].mxu0
    %v2471 = vadd.f32 0.0, %v2470
    %v2472 = vpop.f32.mrb[0].mxu0
    %v2473 = vadd.f32 0.0, %v2472
    %2474 = vmatprep.mubr.bf16.mxu0 0
    %2475 = vmatmul.mubr.bf16.gmra.mrb[0].mxu0 %v2410
    %v2476 = vpop.f32.mrb[0].mxu0
    %v2477 = vadd.f32 0.0, %v2476
    %v2478 = vpop.f32.mrb[0].mxu0
    %v2479 = vadd.f32 0.0, %v2478
    %v2480 = vpop.f32.mrb[0].mxu0
    %v2481 = vadd.f32 0.0, %v2480
    %v2482 = vpop.f32.mrb[0].mxu0
    %v2483 = vadd.f32 0.0, %v2482
    %2484 = vdwg.mxu0
    %v2485 = vunpack.c.l.bf16 %v2368
    %v2486 = vunpack.c.l.bf16 %v2369
    %v2487 = vunpack.c.l.bf16 %v2370
    %v2488 = vunpack.c.l.bf16 %v2371
    %v2489 = vunpack.c.l.bf16 %v2372
    %v2490 = vunpack.c.l.bf16 %v2373
    %v2491 = vunpack.c.l.bf16 %v2374
    %v2492 = vunpack.c.l.bf16 %v2375
    %v2493 = vadd.f32 %v2485, %v2447
    %v2494 = vadd.f32 %v2486, %v2451
    %v2495 = vadd.f32 %v2487, %v2457
    %v2496 = vadd.f32 %v2488, %v2461
    %v2497 = vadd.f32 %v2489, %v2467
    %v2498 = vadd.f32 %v2490, %v2471
    %v2499 = vadd.f32 %v2491, %v2477
    %v2500 = vadd.f32 %v2492, %v2481
    %v2501 = vxor.u32 %v2493, 2147483648
    %v2502 = vxor.u32 %v2494, 2147483648
    %v2503 = vxor.u32 %v2495, 2147483648
    %v2504 = vxor.u32 %v2496, 2147483648
    %v2505 = vxor.u32 %v2497, 2147483648
    %v2506 = vxor.u32 %v2498, 2147483648
    %v2507 = vxor.u32 %v2499, 2147483648
    %v2508 = vxor.u32 %v2500, 2147483648
    %v2509 = vmul.f32 %v2501, 1.442695
    %v2510 = vpow.pop %v2509
    %v2511 = vmul.f32 %v2502, 1.442695
    %v2512 = vpow.pop %v2511
    %v2513 = vmul.f32 %v2503, 1.442695
    %v2514 = vpow.pop %v2513
    %v2515 = vmul.f32 %v2504, 1.442695
    %v2516 = vpow.pop %v2515
    %v2517 = vmul.f32 %v2505, 1.442695
    %v2518 = vpow.pop %v2517
    %v2519 = vmul.f32 %v2506, 1.442695
    %v2520 = vpow.pop %v2519
    %v2521 = vmul.f32 %v2507, 1.442695
    %v2522 = vpow.pop %v2521
    %v2523 = vmul.f32 %v2508, 1.442695
    %v2524 = vpow.pop %v2523
    %v2525 = vadd.f32 %v2510, 1.0
    %v2526 = vadd.f32 %v2512, 1.0
    %v2527 = vadd.f32 %v2514, 1.0
    %v2528 = vadd.f32 %v2516, 1.0
    %v2529 = vadd.f32 %v2518, 1.0
    %v2530 = vadd.f32 %v2520, 1.0
    %v2531 = vadd.f32 %v2522, 1.0
    %v2532 = vadd.f32 %v2524, 1.0
    %v2533 = vrcp.pop %v2525
    %v2534 = vmul.f32 1.0, %v2533
    %v2535 = vrcp.pop %v2526
    %v2536 = vmul.f32 1.0, %v2535
    %v2537 = vrcp.pop %v2527
    %v2538 = vmul.f32 1.0, %v2537
    %v2539 = vrcp.pop %v2528
    %v2540 = vmul.f32 1.0, %v2539
    %v2541 = vrcp.pop %v2529
    %v2542 = vmul.f32 1.0, %v2541
    %v2543 = vrcp.pop %v2530
    %v2544 = vmul.f32 1.0, %v2543
    %v2545 = vrcp.pop %v2531
    %v2546 = vmul.f32 1.0, %v2545
    %v2547 = vrcp.pop %v2532
    %v2548 = vmul.f32 1.0, %v2547
    %v2557 = vrot.slane %v2368, 4
    %v2558 = vrot.slane %v2369, 4
    %v2559 = vrot.slane %v2370, 4
    %v2560 = vrot.slane %v2371, 4
    %v2561 = vrot.slane %v2372, 4
    %v2562 = vrot.slane %v2373, 4
    %v2563 = vrot.slane %v2374, 4
    %v2564 = vrot.slane %v2375, 4
    %v2573 = vunpack.c.l.bf16 %v2557
    %v2574 = vunpack.c.l.bf16 %v2558
    %v2575 = vunpack.c.l.bf16 %v2559
    %v2576 = vunpack.c.l.bf16 %v2560
    %v2577 = vunpack.c.l.bf16 %v2561
    %v2578 = vunpack.c.l.bf16 %v2562
    %v2579 = vunpack.c.l.bf16 %v2563
    %v2580 = vunpack.c.l.bf16 %v2564
    %v2581 = vadd.f32 %v2449, %v47
    %v2582 = vadd.f32 %v2453, %v47
    %v2583 = vadd.f32 %v2459, %v47
    %v2584 = vadd.f32 %v2463, %v47
    %v2585 = vadd.f32 %v2469, %v47
    %v2586 = vadd.f32 %v2473, %v47
    %v2587 = vadd.f32 %v2479, %v47
    %v2588 = vadd.f32 %v2483, %v47
    %v2589 = vmul.f32 %v2534, %v2581
    %v2590 = vmul.f32 %v2536, %v2582
    %v2591 = vmul.f32 %v2538, %v2583
    %v2592 = vmul.f32 %v2540, %v2584
    %v2593 = vmul.f32 %v2542, %v2585
    %v2594 = vmul.f32 %v2544, %v2586
    %v2595 = vmul.f32 %v2546, %v2587
    %v2596 = vmul.f32 %v2548, %v2588
    %v2597 = vadd.f32 %v2573, %v2589
    %v2598 = vadd.f32 %v2574, %v2590
    %v2599 = vadd.f32 %v2575, %v2591
    %v2600 = vadd.f32 %v2576, %v2592
    %v2601 = vadd.f32 %v2577, %v2593
    %v2602 = vadd.f32 %v2578, %v2594
    %v2603 = vadd.f32 %v2579, %v2595
    %v2604 = vadd.f32 %v2580, %v2596
    %v2605 = vtanh.pop %v2597
    %v2606 = vtanh.pop %v2598
    %v2607 = vtanh.pop %v2599
    %v2608 = vtanh.pop %v2600
    %v2609 = vtanh.pop %v2601
    %v2610 = vtanh.pop %v2602
    %v2611 = vtanh.pop %v2603
    %v2612 = vtanh.pop %v2604
    %v2613 = vsub.f32 1.0, %v2534
    %v2614 = vsub.f32 1.0, %v2536
    %v2615 = vsub.f32 1.0, %v2538
    %v2616 = vsub.f32 1.0, %v2540
    %v2617 = vsub.f32 1.0, %v2542
    %v2618 = vsub.f32 1.0, %v2544
    %v2619 = vsub.f32 1.0, %v2546
    %v2620 = vsub.f32 1.0, %v2548
    %2629 = vrot.lane.b32.xlu0 %v2605, 64
    %v2630 = vpop.permute.xlu0 %2629
    %2631 = vrot.lane.b32.xlu0 %v2606, 64
    %v2632 = vpop.permute.xlu0 %2631
    %2633 = vrot.lane.b32.xlu0 %v2607, 64
    %v2634 = vpop.permute.xlu0 %2633
    %2635 = vrot.lane.b32.xlu0 %v2608, 64
    %v2636 = vpop.permute.xlu0 %2635
    %2637 = vrot.lane.b32.xlu0 %v2609, 64
    %v2638 = vpop.permute.xlu0 %2637
    %2639 = vrot.lane.b32.xlu0 %v2610, 64
    %v2640 = vpop.permute.xlu0 %2639
    %2641 = vrot.lane.b32.xlu0 %v2611, 64
    %v2642 = vpop.permute.xlu0 %2641
    %2643 = vrot.lane.b32.xlu0 %v2612, 64
    %v2644 = vpop.permute.xlu0 %2643
    %v2653 = vmul.f32 %v2613, %v2630
    %v2654 = vmul.f32 %v2614, %v2632
    %v2655 = vmul.f32 %v2615, %v2634
    %v2656 = vmul.f32 %v2616, %v2636
    %v2657 = vmul.f32 %v2617, %v2638
    %v2658 = vmul.f32 %v2618, %v2640
    %v2659 = vmul.f32 %v2619, %v2642
    %v2660 = vmul.f32 %v2620, %v2644
    %v2661 = vmul.f32 %v2534, %v2066
    %v2662 = vmul.f32 %v2536, %v2067
    %v2663 = vmul.f32 %v2538, %v2068
    %v2664 = vmul.f32 %v2540, %v2069
    %v2665 = vmul.f32 %v2542, %v2070
    %v2666 = vmul.f32 %v2544, %v2071
    %v2667 = vmul.f32 %v2546, %v2072
    %v2668 = vmul.f32 %v2548, %v2073
    %v2669 = vadd.f32 %v2653, %v2661
    %v2670 = vadd.f32 %v2654, %v2662
    %v2671 = vadd.f32 %v2655, %v2663
    %v2672 = vadd.f32 %v2656, %v2664
    %v2673 = vadd.f32 %v2657, %v2665
    %v2674 = vadd.f32 %v2658, %v2666
    %v2675 = vadd.f32 %v2659, %v2667
    %v2676 = vadd.f32 %v2660, %v2668
    %v2677 = vpack.c.bf16 %v2360, %v2359
    %v2678 = vpack.c.bf16 %v2362, %v2361
    %v2679 = vpack.c.bf16 %v2364, %v2363
    %v2680 = vpack.c.bf16 %v2366, %v2365
    %2685 = vrot.lane.b32.xlu0 %v2677, 64
    %v2686 = vpop.permute.xlu0 %2685
    %2687 = vrot.lane.b32.xlu0 %v2678, 64
    %v2688 = vpop.permute.xlu0 %2687
    %2689 = vrot.lane.b32.xlu0 %v2679, 64
    %v2690 = vpop.permute.xlu0 %2689
    %2691 = vrot.lane.b32.xlu0 %v2680, 64
    %v2692 = vpop.permute.xlu0 %2691
    %v2694 = vsel %vm105, %v2686, 0
    %v2697 = vsel %vm105, %v2688, 0
    %v2700 = vsel %vm105, %v2690, 0
    %v2703 = vsel %vm105, %v2692, 0
    %2705 = vmatprep.subr.bf16.mxu0 %v90
    %2706 = vmatpush1.bf16.msra.mxu0 %v89
    %2707 = vmatprep.subr.bf16.mxu0 %v92
    %2708 = vmatpush1.bf16.msra.mxu0 %v91
    %2709 = vmatprep.subr.bf16.mxu0 %v94
    %2710 = vmatpush1.bf16.msra.mxu0 %v93
    %2711 = vmatprep.subr.bf16.mxu0 %v96
    %2712 = vmatpush1.bf16.msra.mxu0 %v95
    %2713 = vmatprep.subr.bf16.mxu0 0
    %2714 = vmatpush1.bf16.msra.mxu0 0
    %2715 = vmatprep.subr.bf16.mxu0 0
    %2716 = vmatpush1.bf16.msra.mxu0 0
    %2717 = vmatprep.subr.bf16.mxu0 0
    %2718 = vmatpush1.bf16.msra.mxu0 0
    %2719 = vmatprep.subr.bf16.mxu0 0
    %2720 = vmatpush1.bf16.msra.mxu0 0
    %2721 = vmatprep.subr.bf16.mxu0 0
    %2722 = vmatpush1.bf16.msra.mxu0 0
    %2723 = vmatprep.subr.bf16.mxu0 0
    %2724 = vmatpush1.bf16.msra.mxu0 0
    %2725 = vmatprep.subr.bf16.mxu0 0
    %2726 = vmatpush1.bf16.msra.mxu0 0
    %2727 = vmatprep.subr.bf16.mxu0 0
    %2728 = vmatpush1.bf16.msra.mxu0 0
    %2729 = vmatprep.subr.bf16.mxu0 0
    %2730 = vmatpush1.bf16.msra.mxu0 0
    %2731 = vmatprep.subr.bf16.mxu0 0
    %2732 = vmatpush1.bf16.msra.mxu0 0
    %2733 = vmatprep.subr.bf16.mxu0 0
    %2734 = vmatpush1.bf16.msra.mxu0 0
    %2735 = vmatprep.subr.bf16.mxu0 0
    %2736 = vmatpush1.bf16.msra.mxu0 0
    %2737 = vmatprep.mubr.bf16.mxu0 0
    %2738 = vmatmul.mubr.bf16.gmra.mrb[0].mxu0 %v2694
    %v2739 = vpop.f32.mrb[0].mxu0
    %v2740 = vadd.f32 0.0, %v2739
    %v2741 = vpop.f32.mrb[0].mxu0
    %v2742 = vadd.f32 0.0, %v2741
    %v2743 = vpop.f32.mrb[0].mxu0
    %v2744 = vadd.f32 0.0, %v2743
    %v2745 = vpop.f32.mrb[0].mxu0
    %v2746 = vadd.f32 0.0, %v2745
    %2747 = vmatprep.mubr.bf16.mxu0 0
    %2748 = vmatmul.mubr.bf16.gmra.mrb[0].mxu0 %v2697
    %v2749 = vpop.f32.mrb[0].mxu0
    %v2750 = vadd.f32 0.0, %v2749
    %v2751 = vpop.f32.mrb[0].mxu0
    %v2752 = vadd.f32 0.0, %v2751
    %v2753 = vpop.f32.mrb[0].mxu0
    %v2754 = vadd.f32 0.0, %v2753
    %v2755 = vpop.f32.mrb[0].mxu0
    %v2756 = vadd.f32 0.0, %v2755
    %2757 = vmatprep.mubr.bf16.mxu0 0
    %2758 = vmatmul.mubr.bf16.gmra.mrb[0].mxu0 %v2700
    %v2759 = vpop.f32.mrb[0].mxu0
    %v2760 = vadd.f32 0.0, %v2759
    %v2761 = vpop.f32.mrb[0].mxu0
    %v2762 = vadd.f32 0.0, %v2761
    %v2763 = vpop.f32.mrb[0].mxu0
    %v2764 = vadd.f32 0.0, %v2763
    %v2765 = vpop.f32.mrb[0].mxu0
    %v2766 = vadd.f32 0.0, %v2765
    %2767 = vmatprep.mubr.bf16.mxu0 0
    %2768 = vmatmul.mubr.bf16.gmra.mrb[0].mxu0 %v2703
    %v2769 = vpop.f32.mrb[0].mxu0
    %v2770 = vadd.f32 0.0, %v2769
    %v2771 = vpop.f32.mrb[0].mxu0
    %v2772 = vadd.f32 0.0, %v2771
    %v2773 = vpop.f32.mrb[0].mxu0
    %v2774 = vadd.f32 0.0, %v2773
    %v2775 = vpop.f32.mrb[0].mxu0
    %v2776 = vadd.f32 0.0, %v2775
    %2777 = vdwg.mxu0
    %v2778 = vunpack.c.l.bf16 %v2376
    %v2779 = vunpack.c.l.bf16 %v2377
    %v2780 = vunpack.c.l.bf16 %v2378
    %v2781 = vunpack.c.l.bf16 %v2379
    %v2782 = vunpack.c.l.bf16 %v2380
    %v2783 = vunpack.c.l.bf16 %v2381
    %v2784 = vunpack.c.l.bf16 %v2382
    %v2785 = vunpack.c.l.bf16 %v2383
    %v2786 = vadd.f32 %v2778, %v2740
    %v2787 = vadd.f32 %v2779, %v2744
    %v2788 = vadd.f32 %v2780, %v2750
    %v2789 = vadd.f32 %v2781, %v2754
    %v2790 = vadd.f32 %v2782, %v2760
    %v2791 = vadd.f32 %v2783, %v2764
    %v2792 = vadd.f32 %v2784, %v2770
    %v2793 = vadd.f32 %v2785, %v2774
    %v2794 = vxor.u32 %v2786, 2147483648
    %v2795 = vxor.u32 %v2787, 2147483648
    %v2796 = vxor.u32 %v2788, 2147483648
    %v2797 = vxor.u32 %v2789, 2147483648
    %v2798 = vxor.u32 %v2790, 2147483648
    %v2799 = vxor.u32 %v2791, 2147483648
    %v2800 = vxor.u32 %v2792, 2147483648
    %v2801 = vxor.u32 %v2793, 2147483648
    %v2802 = vmul.f32 %v2794, 1.442695
    %v2803 = vpow.pop %v2802
    %v2804 = vmul.f32 %v2795, 1.442695
    %v2805 = vpow.pop %v2804
    %v2806 = vmul.f32 %v2796, 1.442695
    %v2807 = vpow.pop %v2806
    %v2808 = vmul.f32 %v2797, 1.442695
    %v2809 = vpow.pop %v2808
    %v2810 = vmul.f32 %v2798, 1.442695
    %v2811 = vpow.pop %v2810
    %v2812 = vmul.f32 %v2799, 1.442695
    %v2813 = vpow.pop %v2812
    %v2814 = vmul.f32 %v2800, 1.442695
    %v2815 = vpow.pop %v2814
    %v2816 = vmul.f32 %v2801, 1.442695
    %v2817 = vpow.pop %v2816
    %v2818 = vadd.f32 %v2803, 1.0
    %v2819 = vadd.f32 %v2805, 1.0
    %v2820 = vadd.f32 %v2807, 1.0
    %v2821 = vadd.f32 %v2809, 1.0
    %v2822 = vadd.f32 %v2811, 1.0
    %v2823 = vadd.f32 %v2813, 1.0
    %v2824 = vadd.f32 %v2815, 1.0
    %v2825 = vadd.f32 %v2817, 1.0
    %v2826 = vrcp.pop %v2818
    %v2827 = vmul.f32 1.0, %v2826
    %v2828 = vrcp.pop %v2819
    %v2829 = vmul.f32 1.0, %v2828
    %v2830 = vrcp.pop %v2820
    %v2831 = vmul.f32 1.0, %v2830
    %v2832 = vrcp.pop %v2821
    %v2833 = vmul.f32 1.0, %v2832
    %v2834 = vrcp.pop %v2822
    %v2835 = vmul.f32 1.0, %v2834
    %v2836 = vrcp.pop %v2823
    %v2837 = vmul.f32 1.0, %v2836
    %v2838 = vrcp.pop %v2824
    %v2839 = vmul.f32 1.0, %v2838
    %v2840 = vrcp.pop %v2825
    %v2841 = vmul.f32 1.0, %v2840
    %v2850 = vrot.slane %v2376, 4
    %v2851 = vrot.slane %v2377, 4
    %v2852 = vrot.slane %v2378, 4
    %v2853 = vrot.slane %v2379, 4
    %v2854 = vrot.slane %v2380, 4
    %v2855 = vrot.slane %v2381, 4
    %v2856 = vrot.slane %v2382, 4
    %v2857 = vrot.slane %v2383, 4
    %v2866 = vunpack.c.l.bf16 %v2850
    %v2867 = vunpack.c.l.bf16 %v2851
    %v2868 = vunpack.c.l.bf16 %v2852
    %v2869 = vunpack.c.l.bf16 %v2853
    %v2870 = vunpack.c.l.bf16 %v2854
    %v2871 = vunpack.c.l.bf16 %v2855
    %v2872 = vunpack.c.l.bf16 %v2856
    %v2873 = vunpack.c.l.bf16 %v2857
    %v2874 = vadd.f32 %v2742, %v47
    %v2875 = vadd.f32 %v2746, %v47
    %v2876 = vadd.f32 %v2752, %v47
    %v2877 = vadd.f32 %v2756, %v47
    %v2878 = vadd.f32 %v2762, %v47
    %v2879 = vadd.f32 %v2766, %v47
    %v2880 = vadd.f32 %v2772, %v47
    %v2881 = vadd.f32 %v2776, %v47
    %v2882 = vmul.f32 %v2827, %v2874
    %v2883 = vmul.f32 %v2829, %v2875
    %v2884 = vmul.f32 %v2831, %v2876
    %v2885 = vmul.f32 %v2833, %v2877
    %v2886 = vmul.f32 %v2835, %v2878
    %v2887 = vmul.f32 %v2837, %v2879
    %v2888 = vmul.f32 %v2839, %v2880
    %v2889 = vmul.f32 %v2841, %v2881
    %v2890 = vadd.f32 %v2866, %v2882
    %v2891 = vadd.f32 %v2867, %v2883
    %v2892 = vadd.f32 %v2868, %v2884
    %v2893 = vadd.f32 %v2869, %v2885
    %v2894 = vadd.f32 %v2870, %v2886
    %v2895 = vadd.f32 %v2871, %v2887
    %v2896 = vadd.f32 %v2872, %v2888
    %v2897 = vadd.f32 %v2873, %v2889
    %v2898 = vtanh.pop %v2890
    %v2899 = vtanh.pop %v2891
    %v2900 = vtanh.pop %v2892
    %v2901 = vtanh.pop %v2893
    %v2902 = vtanh.pop %v2894
    %v2903 = vtanh.pop %v2895
    %v2904 = vtanh.pop %v2896
    %v2905 = vtanh.pop %v2897
    %v2906 = vsub.f32 1.0, %v2827
    %v2907 = vsub.f32 1.0, %v2829
    %v2908 = vsub.f32 1.0, %v2831
    %v2909 = vsub.f32 1.0, %v2833
    %v2910 = vsub.f32 1.0, %v2835
    %v2911 = vsub.f32 1.0, %v2837
    %v2912 = vsub.f32 1.0, %v2839
    %v2913 = vsub.f32 1.0, %v2841
    %2922 = vrot.lane.b32.xlu0 %v2898, 64
    %v2923 = vpop.permute.xlu0 %2922
    %2924 = vrot.lane.b32.xlu0 %v2899, 64
    %v2925 = vpop.permute.xlu0 %2924
    %2926 = vrot.lane.b32.xlu0 %v2900, 64
    %v2927 = vpop.permute.xlu0 %2926
    %2928 = vrot.lane.b32.xlu0 %v2901, 64
    %v2929 = vpop.permute.xlu0 %2928
    %2930 = vrot.lane.b32.xlu0 %v2902, 64
    %v2931 = vpop.permute.xlu0 %2930
    %2932 = vrot.lane.b32.xlu0 %v2903, 64
    %v2933 = vpop.permute.xlu0 %2932
    %2934 = vrot.lane.b32.xlu0 %v2904, 64
    %v2935 = vpop.permute.xlu0 %2934
    %2936 = vrot.lane.b32.xlu0 %v2905, 64
    %v2937 = vpop.permute.xlu0 %2936
    %v2946 = vmul.f32 %v2906, %v2923
    %v2947 = vmul.f32 %v2907, %v2925
    %v2948 = vmul.f32 %v2908, %v2927
    %v2949 = vmul.f32 %v2909, %v2929
    %v2950 = vmul.f32 %v2910, %v2931
    %v2951 = vmul.f32 %v2911, %v2933
    %v2952 = vmul.f32 %v2912, %v2935
    %v2953 = vmul.f32 %v2913, %v2937
    %v2954 = vmul.f32 %v2827, %v2359
    %v2955 = vmul.f32 %v2829, %v2360
    %v2956 = vmul.f32 %v2831, %v2361
    %v2957 = vmul.f32 %v2833, %v2362
    %v2958 = vmul.f32 %v2835, %v2363
    %v2959 = vmul.f32 %v2837, %v2364
    %v2960 = vmul.f32 %v2839, %v2365
    %v2961 = vmul.f32 %v2841, %v2366
    %v2962 = vadd.f32 %v2946, %v2954
    %v2963 = vadd.f32 %v2947, %v2955
    %v2964 = vadd.f32 %v2948, %v2956
    %v2965 = vadd.f32 %v2949, %v2957
    %v2966 = vadd.f32 %v2950, %v2958
    %v2967 = vadd.f32 %v2951, %v2959
    %v2968 = vadd.f32 %v2952, %v2960
    %v2969 = vadd.f32 %v2953, %v2961
    %s2970 = scalar_lea.vmem %s0, 640
    %v2971 = vld [vmem:[%s2970] sm:$0xff]
    %v2972 = vld [vmem:[%s2970 + $0x8] sm:$0xff]
    %v2973 = vld [vmem:[%s2970 + $0x10] sm:$0xff]
    %v2974 = vld [vmem:[%s2970 + $0x18] sm:$0xff]
    %v2975 = vld [vmem:[%s2970 + $0x20] sm:$0xff]
    %v2976 = vld [vmem:[%s2970 + $0x28] sm:$0xff]
    %v2977 = vld [vmem:[%s2970 + $0x30] sm:$0xff]
    %v2978 = vld [vmem:[%s2970 + $0x38] sm:$0xff]
    %v2979 = vld [vmem:[%s2970 + $0x40] sm:$0xff]
    %v2980 = vld [vmem:[%s2970 + $0x48] sm:$0xff]
    %v2981 = vld [vmem:[%s2970 + $0x50] sm:$0xff]
    %v2982 = vld [vmem:[%s2970 + $0x58] sm:$0xff]
    %v2983 = vld [vmem:[%s2970 + $0x60] sm:$0xff]
    %v2984 = vld [vmem:[%s2970 + $0x68] sm:$0xff]
    %v2985 = vld [vmem:[%s2970 + $0x70] sm:$0xff]
    %v2986 = vld [vmem:[%s2970 + $0x78] sm:$0xff]
    %v2987 = vpack.c.bf16 %v2670, %v2669
    %v2988 = vpack.c.bf16 %v2672, %v2671
    %v2989 = vpack.c.bf16 %v2674, %v2673
    %v2990 = vpack.c.bf16 %v2676, %v2675
    %2995 = vrot.lane.b32.xlu0 %v2987, 64
    %v2996 = vpop.permute.xlu0 %2995
    %2997 = vrot.lane.b32.xlu0 %v2988, 64
    %v2998 = vpop.permute.xlu0 %2997
    %2999 = vrot.lane.b32.xlu0 %v2989, 64
    %v3000 = vpop.permute.xlu0 %2999
    %3001 = vrot.lane.b32.xlu0 %v2990, 64
    %v3002 = vpop.permute.xlu0 %3001
    %v3004 = vsel %vm105, %v2996, 0
    %v3007 = vsel %vm105, %v2998, 0
    %v3010 = vsel %vm105, %v3000, 0
    %v3013 = vsel %vm105, %v3002, 0
    %3015 = vmatprep.subr.bf16.mxu0 %v90
    %3016 = vmatpush1.bf16.msra.mxu0 %v89
    %3017 = vmatprep.subr.bf16.mxu0 %v92
    %3018 = vmatpush1.bf16.msra.mxu0 %v91
    %3019 = vmatprep.subr.bf16.mxu0 %v94
    %3020 = vmatpush1.bf16.msra.mxu0 %v93
    %3021 = vmatprep.subr.bf16.mxu0 %v96
    %3022 = vmatpush1.bf16.msra.mxu0 %v95
    %3023 = vmatprep.subr.bf16.mxu0 0
    %3024 = vmatpush1.bf16.msra.mxu0 0
    %3025 = vmatprep.subr.bf16.mxu0 0
    %3026 = vmatpush1.bf16.msra.mxu0 0
    %3027 = vmatprep.subr.bf16.mxu0 0
    %3028 = vmatpush1.bf16.msra.mxu0 0
    %3029 = vmatprep.subr.bf16.mxu0 0
    %3030 = vmatpush1.bf16.msra.mxu0 0
    %3031 = vmatprep.subr.bf16.mxu0 0
    %3032 = vmatpush1.bf16.msra.mxu0 0
    %3033 = vmatprep.subr.bf16.mxu0 0
    %3034 = vmatpush1.bf16.msra.mxu0 0
    %3035 = vmatprep.subr.bf16.mxu0 0
    %3036 = vmatpush1.bf16.msra.mxu0 0
    %3037 = vmatprep.subr.bf16.mxu0 0
    %3038 = vmatpush1.bf16.msra.mxu0 0
    %3039 = vmatprep.subr.bf16.mxu0 0
    %3040 = vmatpush1.bf16.msra.mxu0 0
    %3041 = vmatprep.subr.bf16.mxu0 0
    %3042 = vmatpush1.bf16.msra.mxu0 0
    %3043 = vmatprep.subr.bf16.mxu0 0
    %3044 = vmatpush1.bf16.msra.mxu0 0
    %3045 = vmatprep.subr.bf16.mxu0 0
    %3046 = vmatpush1.bf16.msra.mxu0 0
    %3047 = vmatprep.mubr.bf16.mxu0 0
    %3048 = vmatmul.mubr.bf16.gmra.mrb[0].mxu0 %v3004
    %v3049 = vpop.f32.mrb[0].mxu0
    %v3050 = vadd.f32 0.0, %v3049
    %v3051 = vpop.f32.mrb[0].mxu0
    %v3052 = vadd.f32 0.0, %v3051
    %v3053 = vpop.f32.mrb[0].mxu0
    %v3054 = vadd.f32 0.0, %v3053
    %v3055 = vpop.f32.mrb[0].mxu0
    %v3056 = vadd.f32 0.0, %v3055
    %3057 = vmatprep.mubr.bf16.mxu0 0
    %3058 = vmatmul.mubr.bf16.gmra.mrb[0].mxu0 %v3007
    %v3059 = vpop.f32.mrb[0].mxu0
    %v3060 = vadd.f32 0.0, %v3059
    %v3061 = vpop.f32.mrb[0].mxu0
    %v3062 = vadd.f32 0.0, %v3061
    %v3063 = vpop.f32.mrb[0].mxu0
    %v3064 = vadd.f32 0.0, %v3063
    %v3065 = vpop.f32.mrb[0].mxu0
    %v3066 = vadd.f32 0.0, %v3065
    %3067 = vmatprep.mubr.bf16.mxu0 0
    %3068 = vmatmul.mubr.bf16.gmra.mrb[0].mxu0 %v3010
    %v3069 = vpop.f32.mrb[0].mxu0
    %v3070 = vadd.f32 0.0, %v3069
    %v3071 = vpop.f32.mrb[0].mxu0
    %v3072 = vadd.f32 0.0, %v3071
    %v3073 = vpop.f32.mrb[0].mxu0
    %v3074 = vadd.f32 0.0, %v3073
    %v3075 = vpop.f32.mrb[0].mxu0
    %v3076 = vadd.f32 0.0, %v3075
    %3077 = vmatprep.mubr.bf16.mxu0 0
    %3078 = vmatmul.mubr.bf16.gmra.mrb[0].mxu0 %v3013
    %v3079 = vpop.f32.mrb[0].mxu0
    %v3080 = vadd.f32 0.0, %v3079
    %v3081 = vpop.f32.mrb[0].mxu0
    %v3082 = vadd.f32 0.0, %v3081
    %v3083 = vpop.f32.mrb[0].mxu0
    %v3084 = vadd.f32 0.0, %v3083
    %v3085 = vpop.f32.mrb[0].mxu0
    %v3086 = vadd.f32 0.0, %v3085
    %3087 = vdwg.mxu0
    %v3088 = vunpack.c.l.bf16 %v2971
    %v3089 = vunpack.c.l.bf16 %v2972
    %v3090 = vunpack.c.l.bf16 %v2973
    %v3091 = vunpack.c.l.bf16 %v2974
    %v3092 = vunpack.c.l.bf16 %v2975
    %v3093 = vunpack.c.l.bf16 %v2976
    %v3094 = vunpack.c.l.bf16 %v2977
    %v3095 = vunpack.c.l.bf16 %v2978
    %v3096 = vadd.f32 %v3088, %v3050
    %v3097 = vadd.f32 %v3089, %v3054
    %v3098 = vadd.f32 %v3090, %v3060
    %v3099 = vadd.f32 %v3091, %v3064
    %v3100 = vadd.f32 %v3092, %v3070
    %v3101 = vadd.f32 %v3093, %v3074
    %v3102 = vadd.f32 %v3094, %v3080
    %v3103 = vadd.f32 %v3095, %v3084
    %v3104 = vxor.u32 %v3096, 2147483648
    %v3105 = vxor.u32 %v3097, 2147483648
    %v3106 = vxor.u32 %v3098, 2147483648
    %v3107 = vxor.u32 %v3099, 2147483648
    %v3108 = vxor.u32 %v3100, 2147483648
    %v3109 = vxor.u32 %v3101, 2147483648
    %v3110 = vxor.u32 %v3102, 2147483648
    %v3111 = vxor.u32 %v3103, 2147483648
    %v3112 = vmul.f32 %v3104, 1.442695
    %v3113 = vpow.pop %v3112
    %v3114 = vmul.f32 %v3105, 1.442695
    %v3115 = vpow.pop %v3114
    %v3116 = vmul.f32 %v3106, 1.442695
    %v3117 = vpow.pop %v3116
    %v3118 = vmul.f32 %v3107, 1.442695
    %v3119 = vpow.pop %v3118
    %v3120 = vmul.f32 %v3108, 1.442695
    %v3121 = vpow.pop %v3120
    %v3122 = vmul.f32 %v3109, 1.442695
    %v3123 = vpow.pop %v3122
    %v3124 = vmul.f32 %v3110, 1.442695
    %v3125 = vpow.pop %v3124
    %v3126 = vmul.f32 %v3111, 1.442695
    %v3127 = vpow.pop %v3126
    %v3128 = vadd.f32 %v3113, 1.0
    %v3129 = vadd.f32 %v3115, 1.0
    %v3130 = vadd.f32 %v3117, 1.0
    %v3131 = vadd.f32 %v3119, 1.0
    %v3132 = vadd.f32 %v3121, 1.0
    %v3133 = vadd.f32 %v3123, 1.0
    %v3134 = vadd.f32 %v3125, 1.0
    %v3135 = vadd.f32 %v3127, 1.0
    %v3136 = vrcp.pop %v3128
    %v3137 = vmul.f32 1.0, %v3136
    %v3138 = vrcp.pop %v3129
    %v3139 = vmul.f32 1.0, %v3138
    %v3140 = vrcp.pop %v3130
    %v3141 = vmul.f32 1.0, %v3140
    %v3142 = vrcp.pop %v3131
    %v3143 = vmul.f32 1.0, %v3142
    %v3144 = vrcp.pop %v3132
    %v3145 = vmul.f32 1.0, %v3144
    %v3146 = vrcp.pop %v3133
    %v3147 = vmul.f32 1.0, %v3146
    %v3148 = vrcp.pop %v3134
    %v3149 = vmul.f32 1.0, %v3148
    %v3150 = vrcp.pop %v3135
    %v3151 = vmul.f32 1.0, %v3150
    %v3160 = vrot.slane %v2971, 4
    %v3161 = vrot.slane %v2972, 4
    %v3162 = vrot.slane %v2973, 4
    %v3163 = vrot.slane %v2974, 4
    %v3164 = vrot.slane %v2975, 4
    %v3165 = vrot.slane %v2976, 4
    %v3166 = vrot.slane %v2977, 4
    %v3167 = vrot.slane %v2978, 4
    %v3176 = vunpack.c.l.bf16 %v3160
    %v3177 = vunpack.c.l.bf16 %v3161
    %v3178 = vunpack.c.l.bf16 %v3162
    %v3179 = vunpack.c.l.bf16 %v3163
    %v3180 = vunpack.c.l.bf16 %v3164
    %v3181 = vunpack.c.l.bf16 %v3165
    %v3182 = vunpack.c.l.bf16 %v3166
    %v3183 = vunpack.c.l.bf16 %v3167
    %v3184 = vadd.f32 %v3052, %v47
    %v3185 = vadd.f32 %v3056, %v47
    %v3186 = vadd.f32 %v3062, %v47
    %v3187 = vadd.f32 %v3066, %v47
    %v3188 = vadd.f32 %v3072, %v47
    %v3189 = vadd.f32 %v3076, %v47
    %v3190 = vadd.f32 %v3082, %v47
    %v3191 = vadd.f32 %v3086, %v47
    %v3192 = vmul.f32 %v3137, %v3184
    %v3193 = vmul.f32 %v3139, %v3185
    %v3194 = vmul.f32 %v3141, %v3186
    %v3195 = vmul.f32 %v3143, %v3187
    %v3196 = vmul.f32 %v3145, %v3188
    %v3197 = vmul.f32 %v3147, %v3189
    %v3198 = vmul.f32 %v3149, %v3190
    %v3199 = vmul.f32 %v3151, %v3191
    %v3200 = vadd.f32 %v3176, %v3192
    %v3201 = vadd.f32 %v3177, %v3193
    %v3202 = vadd.f32 %v3178, %v3194
    %v3203 = vadd.f32 %v3179, %v3195
    %v3204 = vadd.f32 %v3180, %v3196
    %v3205 = vadd.f32 %v3181, %v3197
    %v3206 = vadd.f32 %v3182, %v3198
    %v3207 = vadd.f32 %v3183, %v3199
    %v3208 = vtanh.pop %v3200
    %v3209 = vtanh.pop %v3201
    %v3210 = vtanh.pop %v3202
    %v3211 = vtanh.pop %v3203
    %v3212 = vtanh.pop %v3204
    %v3213 = vtanh.pop %v3205
    %v3214 = vtanh.pop %v3206
    %v3215 = vtanh.pop %v3207
    %v3216 = vsub.f32 1.0, %v3137
    %v3217 = vsub.f32 1.0, %v3139
    %v3218 = vsub.f32 1.0, %v3141
    %v3219 = vsub.f32 1.0, %v3143
    %v3220 = vsub.f32 1.0, %v3145
    %v3221 = vsub.f32 1.0, %v3147
    %v3222 = vsub.f32 1.0, %v3149
    %v3223 = vsub.f32 1.0, %v3151
    %3232 = vrot.lane.b32.xlu0 %v3208, 64
    %v3233 = vpop.permute.xlu0 %3232
    %3234 = vrot.lane.b32.xlu0 %v3209, 64
    %v3235 = vpop.permute.xlu0 %3234
    %3236 = vrot.lane.b32.xlu0 %v3210, 64
    %v3237 = vpop.permute.xlu0 %3236
    %3238 = vrot.lane.b32.xlu0 %v3211, 64
    %v3239 = vpop.permute.xlu0 %3238
    %3240 = vrot.lane.b32.xlu0 %v3212, 64
    %v3241 = vpop.permute.xlu0 %3240
    %3242 = vrot.lane.b32.xlu0 %v3213, 64
    %v3243 = vpop.permute.xlu0 %3242
    %3244 = vrot.lane.b32.xlu0 %v3214, 64
    %v3245 = vpop.permute.xlu0 %3244
    %3246 = vrot.lane.b32.xlu0 %v3215, 64
    %v3247 = vpop.permute.xlu0 %3246
    %v3256 = vmul.f32 %v3216, %v3233
    %v3257 = vmul.f32 %v3217, %v3235
    %v3258 = vmul.f32 %v3218, %v3237
    %v3259 = vmul.f32 %v3219, %v3239
    %v3260 = vmul.f32 %v3220, %v3241
    %v3261 = vmul.f32 %v3221, %v3243
    %v3262 = vmul.f32 %v3222, %v3245
    %v3263 = vmul.f32 %v3223, %v3247
    %v3264 = vmul.f32 %v3137, %v2669
    %v3265 = vmul.f32 %v3139, %v2670
    %v3266 = vmul.f32 %v3141, %v2671
    %v3267 = vmul.f32 %v3143, %v2672
    %v3268 = vmul.f32 %v3145, %v2673
    %v3269 = vmul.f32 %v3147, %v2674
    %v3270 = vmul.f32 %v3149, %v2675
    %v3271 = vmul.f32 %v3151, %v2676
    %v3272 = vadd.f32 %v3256, %v3264
    %v3273 = vadd.f32 %v3257, %v3265
    %v3274 = vadd.f32 %v3258, %v3266
    %v3275 = vadd.f32 %v3259, %v3267
    %v3276 = vadd.f32 %v3260, %v3268
    %v3277 = vadd.f32 %v3261, %v3269
    %v3278 = vadd.f32 %v3262, %v3270
    %v3279 = vadd.f32 %v3263, %v3271
    %v3280 = vpack.c.bf16 %v2963, %v2962
    %v3281 = vpack.c.bf16 %v2965, %v2964
    %v3282 = vpack.c.bf16 %v2967, %v2966
    %v3283 = vpack.c.bf16 %v2969, %v2968
    %3288 = vrot.lane.b32.xlu0 %v3280, 64
    %v3289 = vpop.permute.xlu0 %3288
    %3290 = vrot.lane.b32.xlu0 %v3281, 64
    %v3291 = vpop.permute.xlu0 %3290
    %3292 = vrot.lane.b32.xlu0 %v3282, 64
    %v3293 = vpop.permute.xlu0 %3292
    %3294 = vrot.lane.b32.xlu0 %v3283, 64
    %v3295 = vpop.permute.xlu0 %3294
    %v3297 = vsel %vm105, %v3289, 0
    %v3300 = vsel %vm105, %v3291, 0
    %v3303 = vsel %vm105, %v3293, 0
    %v3306 = vsel %vm105, %v3295, 0
    %3308 = vmatprep.subr.bf16.mxu0 %v90
    %3309 = vmatpush1.bf16.msra.mxu0 %v89
    %3310 = vmatprep.subr.bf16.mxu0 %v92
    %3311 = vmatpush1.bf16.msra.mxu0 %v91
    %3312 = vmatprep.subr.bf16.mxu0 %v94
    %3313 = vmatpush1.bf16.msra.mxu0 %v93
    %3314 = vmatprep.subr.bf16.mxu0 %v96
    %3315 = vmatpush1.bf16.msra.mxu0 %v95
    %3316 = vmatprep.subr.bf16.mxu0 0
    %3317 = vmatpush1.bf16.msra.mxu0 0
    %3318 = vmatprep.subr.bf16.mxu0 0
    %3319 = vmatpush1.bf16.msra.mxu0 0
    %3320 = vmatprep.subr.bf16.mxu0 0
    %3321 = vmatpush1.bf16.msra.mxu0 0
    %3322 = vmatprep.subr.bf16.mxu0 0
    %3323 = vmatpush1.bf16.msra.mxu0 0
    %3324 = vmatprep.subr.bf16.mxu0 0
    %3325 = vmatpush1.bf16.msra.mxu0 0
    %3326 = vmatprep.subr.bf16.mxu0 0
    %3327 = vmatpush1.bf16.msra.mxu0 0
    %3328 = vmatprep.subr.bf16.mxu0 0
    %3329 = vmatpush1.bf16.msra.mxu0 0
    %3330 = vmatprep.subr.bf16.mxu0 0
    %3331 = vmatpush1.bf16.msra.mxu0 0
    %3332 = vmatprep.subr.bf16.mxu0 0
    %3333 = vmatpush1.bf16.msra.mxu0 0
    %3334 = vmatprep.subr.bf16.mxu0 0
    %3335 = vmatpush1.bf16.msra.mxu0 0
    %3336 = vmatprep.subr.bf16.mxu0 0
    %3337 = vmatpush1.bf16.msra.mxu0 0
    %3338 = vmatprep.subr.bf16.mxu0 0
    %3339 = vmatpush1.bf16.msra.mxu0 0
    %3340 = vmatprep.mubr.bf16.mxu0 0
    %3341 = vmatmul.mubr.bf16.gmra.mrb[0].mxu0 %v3297
    %v3342 = vpop.f32.mrb[0].mxu0
    %v3343 = vadd.f32 0.0, %v3342
    %v3344 = vpop.f32.mrb[0].mxu0
    %v3345 = vadd.f32 0.0, %v3344
    %v3346 = vpop.f32.mrb[0].mxu0
    %v3347 = vadd.f32 0.0, %v3346
    %v3348 = vpop.f32.mrb[0].mxu0
    %v3349 = vadd.f32 0.0, %v3348
    %3350 = vmatprep.mubr.bf16.mxu0 0
    %3351 = vmatmul.mubr.bf16.gmra.mrb[0].mxu0 %v3300
    %v3352 = vpop.f32.mrb[0].mxu0
    %v3353 = vadd.f32 0.0, %v3352
    %v3354 = vpop.f32.mrb[0].mxu0
    %v3355 = vadd.f32 0.0, %v3354
    %v3356 = vpop.f32.mrb[0].mxu0
    %v3357 = vadd.f32 0.0, %v3356
    %v3358 = vpop.f32.mrb[0].mxu0
    %v3359 = vadd.f32 0.0, %v3358
    %3360 = vmatprep.mubr.bf16.mxu0 0
    %3361 = vmatmul.mubr.bf16.gmra.mrb[0].mxu0 %v3303
    %v3362 = vpop.f32.mrb[0].mxu0
    %v3363 = vadd.f32 0.0, %v3362
    %v3364 = vpop.f32.mrb[0].mxu0
    %v3365 = vadd.f32 0.0, %v3364
    %v3366 = vpop.f32.mrb[0].mxu0
    %v3367 = vadd.f32 0.0, %v3366
    %v3368 = vpop.f32.mrb[0].mxu0
    %v3369 = vadd.f32 0.0, %v3368
    %3370 = vmatprep.mubr.bf16.mxu0 0
    %3371 = vmatmul.mubr.bf16.gmra.mrb[0].mxu0 %v3306
    %v3372 = vpop.f32.mrb[0].mxu0
    %v3373 = vadd.f32 0.0, %v3372
    %v3374 = vpop.f32.mrb[0].mxu0
    %v3375 = vadd.f32 0.0, %v3374
    %v3376 = vpop.f32.mrb[0].mxu0
    %v3377 = vadd.f32 0.0, %v3376
    %v3378 = vpop.f32.mrb[0].mxu0
    %v3379 = vadd.f32 0.0, %v3378
    %3380 = vdwg.mxu0
    %v3381 = vunpack.c.l.bf16 %v2979
    %v3382 = vunpack.c.l.bf16 %v2980
    %v3383 = vunpack.c.l.bf16 %v2981
    %v3384 = vunpack.c.l.bf16 %v2982
    %v3385 = vunpack.c.l.bf16 %v2983
    %v3386 = vunpack.c.l.bf16 %v2984
    %v3387 = vunpack.c.l.bf16 %v2985
    %v3388 = vunpack.c.l.bf16 %v2986
    %v3389 = vadd.f32 %v3381, %v3343
    %v3390 = vadd.f32 %v3382, %v3347
    %v3391 = vadd.f32 %v3383, %v3353
    %v3392 = vadd.f32 %v3384, %v3357
    %v3393 = vadd.f32 %v3385, %v3363
    %v3394 = vadd.f32 %v3386, %v3367
    %v3395 = vadd.f32 %v3387, %v3373
    %v3396 = vadd.f32 %v3388, %v3377
    %v3397 = vxor.u32 %v3389, 2147483648
    %v3398 = vxor.u32 %v3390, 2147483648
    %v3399 = vxor.u32 %v3391, 2147483648
    %v3400 = vxor.u32 %v3392, 2147483648
    %v3401 = vxor.u32 %v3393, 2147483648
    %v3402 = vxor.u32 %v3394, 2147483648
    %v3403 = vxor.u32 %v3395, 2147483648
    %v3404 = vxor.u32 %v3396, 2147483648
    %v3405 = vmul.f32 %v3397, 1.442695
    %v3406 = vpow.pop %v3405
    %v3407 = vmul.f32 %v3398, 1.442695
    %v3408 = vpow.pop %v3407
    %v3409 = vmul.f32 %v3399, 1.442695
    %v3410 = vpow.pop %v3409
    %v3411 = vmul.f32 %v3400, 1.442695
    %v3412 = vpow.pop %v3411
    %v3413 = vmul.f32 %v3401, 1.442695
    %v3414 = vpow.pop %v3413
    %v3415 = vmul.f32 %v3402, 1.442695
    %v3416 = vpow.pop %v3415
    %v3417 = vmul.f32 %v3403, 1.442695
    %v3418 = vpow.pop %v3417
    %v3419 = vmul.f32 %v3404, 1.442695
    %v3420 = vpow.pop %v3419
    %v3421 = vadd.f32 %v3406, 1.0
    %v3422 = vadd.f32 %v3408, 1.0
    %v3423 = vadd.f32 %v3410, 1.0
    %v3424 = vadd.f32 %v3412, 1.0
    %v3425 = vadd.f32 %v3414, 1.0
    %v3426 = vadd.f32 %v3416, 1.0
    %v3427 = vadd.f32 %v3418, 1.0
    %v3428 = vadd.f32 %v3420, 1.0
    %v3429 = vrcp.pop %v3421
    %v3430 = vmul.f32 1.0, %v3429
    %v3431 = vrcp.pop %v3422
    %v3432 = vmul.f32 1.0, %v3431
    %v3433 = vrcp.pop %v3423
    %v3434 = vmul.f32 1.0, %v3433
    %v3435 = vrcp.pop %v3424
    %v3436 = vmul.f32 1.0, %v3435
    %v3437 = vrcp.pop %v3425
    %v3438 = vmul.f32 1.0, %v3437
    %v3439 = vrcp.pop %v3426
    %v3440 = vmul.f32 1.0, %v3439
    %v3441 = vrcp.pop %v3427
    %v3442 = vmul.f32 1.0, %v3441
    %v3443 = vrcp.pop %v3428
    %v3444 = vmul.f32 1.0, %v3443
    %v3453 = vrot.slane %v2979, 4
    %v3454 = vrot.slane %v2980, 4
    %v3455 = vrot.slane %v2981, 4
    %v3456 = vrot.slane %v2982, 4
    %v3457 = vrot.slane %v2983, 4
    %v3458 = vrot.slane %v2984, 4
    %v3459 = vrot.slane %v2985, 4
    %v3460 = vrot.slane %v2986, 4
    %v3469 = vunpack.c.l.bf16 %v3453
    %v3470 = vunpack.c.l.bf16 %v3454
    %v3471 = vunpack.c.l.bf16 %v3455
    %v3472 = vunpack.c.l.bf16 %v3456
    %v3473 = vunpack.c.l.bf16 %v3457
    %v3474 = vunpack.c.l.bf16 %v3458
    %v3475 = vunpack.c.l.bf16 %v3459
    %v3476 = vunpack.c.l.bf16 %v3460
    %v3477 = vadd.f32 %v3345, %v47
    %v3478 = vadd.f32 %v3349, %v47
    %v3479 = vadd.f32 %v3355, %v47
    %v3480 = vadd.f32 %v3359, %v47
    %v3481 = vadd.f32 %v3365, %v47
    %v3482 = vadd.f32 %v3369, %v47
    %v3483 = vadd.f32 %v3375, %v47
    %v3484 = vadd.f32 %v3379, %v47
    %v3485 = vmul.f32 %v3430, %v3477
    %v3486 = vmul.f32 %v3432, %v3478
    %v3487 = vmul.f32 %v3434, %v3479
    %v3488 = vmul.f32 %v3436, %v3480
    %v3489 = vmul.f32 %v3438, %v3481
    %v3490 = vmul.f32 %v3440, %v3482
    %v3491 = vmul.f32 %v3442, %v3483
    %v3492 = vmul.f32 %v3444, %v3484
    %v3493 = vadd.f32 %v3469, %v3485
    %v3494 = vadd.f32 %v3470, %v3486
    %v3495 = vadd.f32 %v3471, %v3487
    %v3496 = vadd.f32 %v3472, %v3488
    %v3497 = vadd.f32 %v3473, %v3489
    %v3498 = vadd.f32 %v3474, %v3490
    %v3499 = vadd.f32 %v3475, %v3491
    %v3500 = vadd.f32 %v3476, %v3492
    %v3501 = vtanh.pop %v3493
    %v3502 = vtanh.pop %v3494
    %v3503 = vtanh.pop %v3495
    %v3504 = vtanh.pop %v3496
    %v3505 = vtanh.pop %v3497
    %v3506 = vtanh.pop %v3498
    %v3507 = vtanh.pop %v3499
    %v3508 = vtanh.pop %v3500
    %v3509 = vsub.f32 1.0, %v3430
    %v3510 = vsub.f32 1.0, %v3432
    %v3511 = vsub.f32 1.0, %v3434
    %v3512 = vsub.f32 1.0, %v3436
    %v3513 = vsub.f32 1.0, %v3438
    %v3514 = vsub.f32 1.0, %v3440
    %v3515 = vsub.f32 1.0, %v3442
    %v3516 = vsub.f32 1.0, %v3444
    %3525 = vrot.lane.b32.xlu0 %v3501, 64
    %v3526 = vpop.permute.xlu0 %3525
    %3527 = vrot.lane.b32.xlu0 %v3502, 64
    %v3528 = vpop.permute.xlu0 %3527
    %3529 = vrot.lane.b32.xlu0 %v3503, 64
    %v3530 = vpop.permute.xlu0 %3529
    %3531 = vrot.lane.b32.xlu0 %v3504, 64
    %v3532 = vpop.permute.xlu0 %3531
    %3533 = vrot.lane.b32.xlu0 %v3505, 64
    %v3534 = vpop.permute.xlu0 %3533
    %3535 = vrot.lane.b32.xlu0 %v3506, 64
    %v3536 = vpop.permute.xlu0 %3535
    %3537 = vrot.lane.b32.xlu0 %v3507, 64
    %v3538 = vpop.permute.xlu0 %3537
    %3539 = vrot.lane.b32.xlu0 %v3508, 64
    %v3540 = vpop.permute.xlu0 %3539
    %v3549 = vmul.f32 %v3509, %v3526
    %v3550 = vmul.f32 %v3510, %v3528
    %v3551 = vmul.f32 %v3511, %v3530
    %v3552 = vmul.f32 %v3512, %v3532
    %v3553 = vmul.f32 %v3513, %v3534
    %v3554 = vmul.f32 %v3514, %v3536
    %v3555 = vmul.f32 %v3515, %v3538
    %v3556 = vmul.f32 %v3516, %v3540
    %v3557 = vmul.f32 %v3430, %v2962
    %v3558 = vmul.f32 %v3432, %v2963
    %v3559 = vmul.f32 %v3434, %v2964
    %v3560 = vmul.f32 %v3436, %v2965
    %v3561 = vmul.f32 %v3438, %v2966
    %v3562 = vmul.f32 %v3440, %v2967
    %v3563 = vmul.f32 %v3442, %v2968
    %v3564 = vmul.f32 %v3444, %v2969
    %v3565 = vadd.f32 %v3549, %v3557
    %v3566 = vadd.f32 %v3550, %v3558
    %v3567 = vadd.f32 %v3551, %v3559
    %v3568 = vadd.f32 %v3552, %v3560
    %v3569 = vadd.f32 %v3553, %v3561
    %v3570 = vadd.f32 %v3554, %v3562
    %v3571 = vadd.f32 %v3555, %v3563
    %v3572 = vadd.f32 %v3556, %v3564
    %s3573 = scalar_lea.vmem %s0, 768
    %v3574 = vld [vmem:[%s3573] sm:$0xff]
    %v3575 = vld [vmem:[%s3573 + $0x8] sm:$0xff]
    %v3576 = vld [vmem:[%s3573 + $0x10] sm:$0xff]
    %v3577 = vld [vmem:[%s3573 + $0x18] sm:$0xff]
    %v3578 = vld [vmem:[%s3573 + $0x20] sm:$0xff]
    %v3579 = vld [vmem:[%s3573 + $0x28] sm:$0xff]
    %v3580 = vld [vmem:[%s3573 + $0x30] sm:$0xff]
    %v3581 = vld [vmem:[%s3573 + $0x38] sm:$0xff]
    %v3582 = vld [vmem:[%s3573 + $0x40] sm:$0xff]
    %v3583 = vld [vmem:[%s3573 + $0x48] sm:$0xff]
    %v3584 = vld [vmem:[%s3573 + $0x50] sm:$0xff]
    %v3585 = vld [vmem:[%s3573 + $0x58] sm:$0xff]
    %v3586 = vld [vmem:[%s3573 + $0x60] sm:$0xff]
    %v3587 = vld [vmem:[%s3573 + $0x68] sm:$0xff]
    %v3588 = vld [vmem:[%s3573 + $0x70] sm:$0xff]
    %v3589 = vld [vmem:[%s3573 + $0x78] sm:$0xff]
    %v3590 = vpack.c.bf16 %v3273, %v3272
    %v3591 = vpack.c.bf16 %v3275, %v3274
    %v3592 = vpack.c.bf16 %v3277, %v3276
    %v3593 = vpack.c.bf16 %v3279, %v3278
    %3598 = vrot.lane.b32.xlu0 %v3590, 64
    %v3599 = vpop.permute.xlu0 %3598
    %3600 = vrot.lane.b32.xlu0 %v3591, 64
    %v3601 = vpop.permute.xlu0 %3600
    %3602 = vrot.lane.b32.xlu0 %v3592, 64
    %v3603 = vpop.permute.xlu0 %3602
    %3604 = vrot.lane.b32.xlu0 %v3593, 64
    %v3605 = vpop.permute.xlu0 %3604
    %v3607 = vsel %vm105, %v3599, 0
    %v3610 = vsel %vm105, %v3601, 0
    %v3613 = vsel %vm105, %v3603, 0
    %v3616 = vsel %vm105, %v3605, 0
    %3618 = vmatprep.subr.bf16.mxu0 %v90
    %3619 = vmatpush1.bf16.msra.mxu0 %v89
    %3620 = vmatprep.subr.bf16.mxu0 %v92
    %3621 = vmatpush1.bf16.msra.mxu0 %v91
    %3622 = vmatprep.subr.bf16.mxu0 %v94
    %3623 = vmatpush1.bf16.msra.mxu0 %v93
    %3624 = vmatprep.subr.bf16.mxu0 %v96
    %3625 = vmatpush1.bf16.msra.mxu0 %v95
    %3626 = vmatprep.subr.bf16.mxu0 0
    %3627 = vmatpush1.bf16.msra.mxu0 0
    %3628 = vmatprep.subr.bf16.mxu0 0
    %3629 = vmatpush1.bf16.msra.mxu0 0
    %3630 = vmatprep.subr.bf16.mxu0 0
    %3631 = vmatpush1.bf16.msra.mxu0 0
    %3632 = vmatprep.subr.bf16.mxu0 0
    %3633 = vmatpush1.bf16.msra.mxu0 0
    %3634 = vmatprep.subr.bf16.mxu0 0
    %3635 = vmatpush1.bf16.msra.mxu0 0
    %3636 = vmatprep.subr.bf16.mxu0 0
    %3637 = vmatpush1.bf16.msra.mxu0 0
    %3638 = vmatprep.subr.bf16.mxu0 0
    %3639 = vmatpush1.bf16.msra.mxu0 0
    %3640 = vmatprep.subr.bf16.mxu0 0
    %3641 = vmatpush1.bf16.msra.mxu0 0
    %3642 = vmatprep.subr.bf16.mxu0 0
    %3643 = vmatpush1.bf16.msra.mxu0 0
    %3644 = vmatprep.subr.bf16.mxu0 0
    %3645 = vmatpush1.bf16.msra.mxu0 0
    %3646 = vmatprep.subr.bf16.mxu0 0
    %3647 = vmatpush1.bf16.msra.mxu0 0
    %3648 = vmatprep.subr.bf16.mxu0 0
    %3649 = vmatpush1.bf16.msra.mxu0 0
    %3650 = vmatprep.mubr.bf16.mxu0 0
    %3651 = vmatmul.mubr.bf16.gmra.mrb[0].mxu0 %v3607
    %v3652 = vpop.f32.mrb[0].mxu0
    %v3653 = vadd.f32 0.0, %v3652
    %v3654 = vpop.f32.mrb[0].mxu0
    %v3655 = vadd.f32 0.0, %v3654
    %v3656 = vpop.f32.mrb[0].mxu0
    %v3657 = vadd.f32 0.0, %v3656
    %v3658 = vpop.f32.mrb[0].mxu0
    %v3659 = vadd.f32 0.0, %v3658
    %3660 = vmatprep.mubr.bf16.mxu0 0
    %3661 = vmatmul.mubr.bf16.gmra.mrb[0].mxu0 %v3610
    %v3662 = vpop.f32.mrb[0].mxu0
    %v3663 = vadd.f32 0.0, %v3662
    %v3664 = vpop.f32.mrb[0].mxu0
    %v3665 = vadd.f32 0.0, %v3664
    %v3666 = vpop.f32.mrb[0].mxu0
    %v3667 = vadd.f32 0.0, %v3666
    %v3668 = vpop.f32.mrb[0].mxu0
    %v3669 = vadd.f32 0.0, %v3668
    %3670 = vmatprep.mubr.bf16.mxu0 0
    %3671 = vmatmul.mubr.bf16.gmra.mrb[0].mxu0 %v3613
    %v3672 = vpop.f32.mrb[0].mxu0
    %v3673 = vadd.f32 0.0, %v3672
    %v3674 = vpop.f32.mrb[0].mxu0
    %v3675 = vadd.f32 0.0, %v3674
    %v3676 = vpop.f32.mrb[0].mxu0
    %v3677 = vadd.f32 0.0, %v3676
    %v3678 = vpop.f32.mrb[0].mxu0
    %v3679 = vadd.f32 0.0, %v3678
    %3680 = vmatprep.mubr.bf16.mxu0 0
    %3681 = vmatmul.mubr.bf16.gmra.mrb[0].mxu0 %v3616
    %v3682 = vpop.f32.mrb[0].mxu0
    %v3683 = vadd.f32 0.0, %v3682
    %v3684 = vpop.f32.mrb[0].mxu0
    %v3685 = vadd.f32 0.0, %v3684
    %v3686 = vpop.f32.mrb[0].mxu0
    %v3687 = vadd.f32 0.0, %v3686
    %v3688 = vpop.f32.mrb[0].mxu0
    %v3689 = vadd.f32 0.0, %v3688
    %3690 = vdwg.mxu0
    %v3691 = vunpack.c.l.bf16 %v3574
    %v3692 = vunpack.c.l.bf16 %v3575
    %v3693 = vunpack.c.l.bf16 %v3576
    %v3694 = vunpack.c.l.bf16 %v3577
    %v3695 = vunpack.c.l.bf16 %v3578
    %v3696 = vunpack.c.l.bf16 %v3579
    %v3697 = vunpack.c.l.bf16 %v3580
    %v3698 = vunpack.c.l.bf16 %v3581
    %v3699 = vadd.f32 %v3691, %v3653
    %v3700 = vadd.f32 %v3692, %v3657
    %v3701 = vadd.f32 %v3693, %v3663
    %v3702 = vadd.f32 %v3694, %v3667
    %v3703 = vadd.f32 %v3695, %v3673
    %v3704 = vadd.f32 %v3696, %v3677
    %v3705 = vadd.f32 %v3697, %v3683
    %v3706 = vadd.f32 %v3698, %v3687
    %v3707 = vxor.u32 %v3699, 2147483648
    %v3708 = vxor.u32 %v3700, 2147483648
    %v3709 = vxor.u32 %v3701, 2147483648
    %v3710 = vxor.u32 %v3702, 2147483648
    %v3711 = vxor.u32 %v3703, 2147483648
    %v3712 = vxor.u32 %v3704, 2147483648
    %v3713 = vxor.u32 %v3705, 2147483648
    %v3714 = vxor.u32 %v3706, 2147483648
    %v3715 = vmul.f32 %v3707, 1.442695
    %v3716 = vpow.pop %v3715
    %v3717 = vmul.f32 %v3708, 1.442695
    %v3718 = vpow.pop %v3717
    %v3719 = vmul.f32 %v3709, 1.442695
    %v3720 = vpow.pop %v3719
    %v3721 = vmul.f32 %v3710, 1.442695
    %v3722 = vpow.pop %v3721
    %v3723 = vmul.f32 %v3711, 1.442695
    %v3724 = vpow.pop %v3723
    %v3725 = vmul.f32 %v3712, 1.442695
    %v3726 = vpow.pop %v3725
    %v3727 = vmul.f32 %v3713, 1.442695
    %v3728 = vpow.pop %v3727
    %v3729 = vmul.f32 %v3714, 1.442695
    %v3730 = vpow.pop %v3729
    %v3731 = vadd.f32 %v3716, 1.0
    %v3732 = vadd.f32 %v3718, 1.0
    %v3733 = vadd.f32 %v3720, 1.0
    %v3734 = vadd.f32 %v3722, 1.0
    %v3735 = vadd.f32 %v3724, 1.0
    %v3736 = vadd.f32 %v3726, 1.0
    %v3737 = vadd.f32 %v3728, 1.0
    %v3738 = vadd.f32 %v3730, 1.0
    %v3739 = vrcp.pop %v3731
    %v3740 = vmul.f32 1.0, %v3739
    %v3741 = vrcp.pop %v3732
    %v3742 = vmul.f32 1.0, %v3741
    %v3743 = vrcp.pop %v3733
    %v3744 = vmul.f32 1.0, %v3743
    %v3745 = vrcp.pop %v3734
    %v3746 = vmul.f32 1.0, %v3745
    %v3747 = vrcp.pop %v3735
    %v3748 = vmul.f32 1.0, %v3747
    %v3749 = vrcp.pop %v3736
    %v3750 = vmul.f32 1.0, %v3749
    %v3751 = vrcp.pop %v3737
    %v3752 = vmul.f32 1.0, %v3751
    %v3753 = vrcp.pop %v3738
    %v3754 = vmul.f32 1.0, %v3753
    %v3763 = vrot.slane %v3574, 4
    %v3764 = vrot.slane %v3575, 4
    %v3765 = vrot.slane %v3576, 4
    %v3766 = vrot.slane %v3577, 4
    %v3767 = vrot.slane %v3578, 4
    %v3768 = vrot.slane %v3579, 4
    %v3769 = vrot.slane %v3580, 4
    %v3770 = vrot.slane %v3581, 4
    %v3779 = vunpack.c.l.bf16 %v3763
    %v3780 = vunpack.c.l.bf16 %v3764
    %v3781 = vunpack.c.l.bf16 %v3765
    %v3782 = vunpack.c.l.bf16 %v3766
    %v3783 = vunpack.c.l.bf16 %v3767
    %v3784 = vunpack.c.l.bf16 %v3768
    %v3785 = vunpack.c.l.bf16 %v3769
    %v3786 = vunpack.c.l.bf16 %v3770
    %v3787 = vadd.f32 %v3655, %v47
    %v3788 = vadd.f32 %v3659, %v47
    %v3789 = vadd.f32 %v3665, %v47
    %v3790 = vadd.f32 %v3669, %v47
    %v3791 = vadd.f32 %v3675, %v47
    %v3792 = vadd.f32 %v3679, %v47
    %v3793 = vadd.f32 %v3685, %v47
    %v3794 = vadd.f32 %v3689, %v47
    %v3795 = vmul.f32 %v3740, %v3787
    %v3796 = vmul.f32 %v3742, %v3788
    %v3797 = vmul.f32 %v3744, %v3789
    %v3798 = vmul.f32 %v3746, %v3790
    %v3799 = vmul.f32 %v3748, %v3791
    %v3800 = vmul.f32 %v3750, %v3792
    %v3801 = vmul.f32 %v3752, %v3793
    %v3802 = vmul.f32 %v3754, %v3794
    %v3803 = vadd.f32 %v3779, %v3795
    %v3804 = vadd.f32 %v3780, %v3796
    %v3805 = vadd.f32 %v3781, %v3797
    %v3806 = vadd.f32 %v3782, %v3798
    %v3807 = vadd.f32 %v3783, %v3799
    %v3808 = vadd.f32 %v3784, %v3800
    %v3809 = vadd.f32 %v3785, %v3801
    %v3810 = vadd.f32 %v3786, %v3802
    %v3811 = vtanh.pop %v3803
    %v3812 = vtanh.pop %v3804
    %v3813 = vtanh.pop %v3805
    %v3814 = vtanh.pop %v3806
    %v3815 = vtanh.pop %v3807
    %v3816 = vtanh.pop %v3808
    %v3817 = vtanh.pop %v3809
    %v3818 = vtanh.pop %v3810
    %v3819 = vsub.f32 1.0, %v3740
    %v3820 = vsub.f32 1.0, %v3742
    %v3821 = vsub.f32 1.0, %v3744
    %v3822 = vsub.f32 1.0, %v3746
    %v3823 = vsub.f32 1.0, %v3748
    %v3824 = vsub.f32 1.0, %v3750
    %v3825 = vsub.f32 1.0, %v3752
    %v3826 = vsub.f32 1.0, %v3754
    %3835 = vrot.lane.b32.xlu0 %v3811, 64
    %v3836 = vpop.permute.xlu0 %3835
    %3837 = vrot.lane.b32.xlu0 %v3812, 64
    %v3838 = vpop.permute.xlu0 %3837
    %3839 = vrot.lane.b32.xlu0 %v3813, 64
    %v3840 = vpop.permute.xlu0 %3839
    %3841 = vrot.lane.b32.xlu0 %v3814, 64
    %v3842 = vpop.permute.xlu0 %3841
    %3843 = vrot.lane.b32.xlu0 %v3815, 64
    %v3844 = vpop.permute.xlu0 %3843
    %3845 = vrot.lane.b32.xlu0 %v3816, 64
    %v3846 = vpop.permute.xlu0 %3845
    %3847 = vrot.lane.b32.xlu0 %v3817, 64
    %v3848 = vpop.permute.xlu0 %3847
    %3849 = vrot.lane.b32.xlu0 %v3818, 64
    %v3850 = vpop.permute.xlu0 %3849
    %v3859 = vmul.f32 %v3819, %v3836
    %v3860 = vmul.f32 %v3820, %v3838
    %v3861 = vmul.f32 %v3821, %v3840
    %v3862 = vmul.f32 %v3822, %v3842
    %v3863 = vmul.f32 %v3823, %v3844
    %v3864 = vmul.f32 %v3824, %v3846
    %v3865 = vmul.f32 %v3825, %v3848
    %v3866 = vmul.f32 %v3826, %v3850
    %v3867 = vmul.f32 %v3740, %v3272
    %v3868 = vmul.f32 %v3742, %v3273
    %v3869 = vmul.f32 %v3744, %v3274
    %v3870 = vmul.f32 %v3746, %v3275
    %v3871 = vmul.f32 %v3748, %v3276
    %v3872 = vmul.f32 %v3750, %v3277
    %v3873 = vmul.f32 %v3752, %v3278
    %v3874 = vmul.f32 %v3754, %v3279
    %v3875 = vadd.f32 %v3859, %v3867
    %v3876 = vadd.f32 %v3860, %v3868
    %v3877 = vadd.f32 %v3861, %v3869
    %v3878 = vadd.f32 %v3862, %v3870
    %v3879 = vadd.f32 %v3863, %v3871
    %v3880 = vadd.f32 %v3864, %v3872
    %v3881 = vadd.f32 %v3865, %v3873
    %v3882 = vadd.f32 %v3866, %v3874
    %v3883 = vpack.c.bf16 %v3566, %v3565
    %v3884 = vpack.c.bf16 %v3568, %v3567
    %v3885 = vpack.c.bf16 %v3570, %v3569
    %v3886 = vpack.c.bf16 %v3572, %v3571
    %3891 = vrot.lane.b32.xlu0 %v3883, 64
    %v3892 = vpop.permute.xlu0 %3891
    %3893 = vrot.lane.b32.xlu0 %v3884, 64
    %v3894 = vpop.permute.xlu0 %3893
    %3895 = vrot.lane.b32.xlu0 %v3885, 64
    %v3896 = vpop.permute.xlu0 %3895
    %3897 = vrot.lane.b32.xlu0 %v3886, 64
    %v3898 = vpop.permute.xlu0 %3897
    %v3900 = vsel %vm105, %v3892, 0
    %v3903 = vsel %vm105, %v3894, 0
    %v3906 = vsel %vm105, %v3896, 0
    %v3909 = vsel %vm105, %v3898, 0
    %3911 = vmatprep.subr.bf16.mxu0 %v90
    %3912 = vmatpush1.bf16.msra.mxu0 %v89
    %3913 = vmatprep.subr.bf16.mxu0 %v92
    %3914 = vmatpush1.bf16.msra.mxu0 %v91
    %3915 = vmatprep.subr.bf16.mxu0 %v94
    %3916 = vmatpush1.bf16.msra.mxu0 %v93
    %3917 = vmatprep.subr.bf16.mxu0 %v96
    %3918 = vmatpush1.bf16.msra.mxu0 %v95
    %3919 = vmatprep.subr.bf16.mxu0 0
    %3920 = vmatpush1.bf16.msra.mxu0 0
    %3921 = vmatprep.subr.bf16.mxu0 0
    %3922 = vmatpush1.bf16.msra.mxu0 0
    %3923 = vmatprep.subr.bf16.mxu0 0
    %3924 = vmatpush1.bf16.msra.mxu0 0
    %3925 = vmatprep.subr.bf16.mxu0 0
    %3926 = vmatpush1.bf16.msra.mxu0 0
    %3927 = vmatprep.subr.bf16.mxu0 0
    %3928 = vmatpush1.bf16.msra.mxu0 0
    %3929 = vmatprep.subr.bf16.mxu0 0
    %3930 = vmatpush1.bf16.msra.mxu0 0
    %3931 = vmatprep.subr.bf16.mxu0 0
    %3932 = vmatpush1.bf16.msra.mxu0 0
    %3933 = vmatprep.subr.bf16.mxu0 0
    %3934 = vmatpush1.bf16.msra.mxu0 0
    %3935 = vmatprep.subr.bf16.mxu0 0
    %3936 = vmatpush1.bf16.msra.mxu0 0
    %3937 = vmatprep.subr.bf16.mxu0 0
    %3938 = vmatpush1.bf16.msra.mxu0 0
    %3939 = vmatprep.subr.bf16.mxu0 0
    %3940 = vmatpush1.bf16.msra.mxu0 0
    %3941 = vmatprep.subr.bf16.mxu0 0
    %3942 = vmatpush1.bf16.msra.mxu0 0
    %3943 = vmatprep.mubr.bf16.mxu0 0
    %3944 = vmatmul.mubr.bf16.gmra.mrb[0].mxu0 %v3900
    %v3945 = vpop.f32.mrb[0].mxu0
    %v3946 = vadd.f32 0.0, %v3945
    %v3947 = vpop.f32.mrb[0].mxu0
    %v3948 = vadd.f32 0.0, %v3947
    %v3949 = vpop.f32.mrb[0].mxu0
    %v3950 = vadd.f32 0.0, %v3949
    %v3951 = vpop.f32.mrb[0].mxu0
    %v3952 = vadd.f32 0.0, %v3951
    %3953 = vmatprep.mubr.bf16.mxu0 0
    %3954 = vmatmul.mubr.bf16.gmra.mrb[0].mxu0 %v3903
    %v3955 = vpop.f32.mrb[0].mxu0
    %v3956 = vadd.f32 0.0, %v3955
    %v3957 = vpop.f32.mrb[0].mxu0
    %v3958 = vadd.f32 0.0, %v3957
    %v3959 = vpop.f32.mrb[0].mxu0
    %v3960 = vadd.f32 0.0, %v3959
    %v3961 = vpop.f32.mrb[0].mxu0
    %v3962 = vadd.f32 0.0, %v3961
    %3963 = vmatprep.mubr.bf16.mxu0 0
    %3964 = vmatmul.mubr.bf16.gmra.mrb[0].mxu0 %v3906
    %v3965 = vpop.f32.mrb[0].mxu0
    %v3966 = vadd.f32 0.0, %v3965
    %v3967 = vpop.f32.mrb[0].mxu0
    %v3968 = vadd.f32 0.0, %v3967
    %v3969 = vpop.f32.mrb[0].mxu0
    %v3970 = vadd.f32 0.0, %v3969
    %v3971 = vpop.f32.mrb[0].mxu0
    %v3972 = vadd.f32 0.0, %v3971
    %3973 = vmatprep.mubr.bf16.mxu0 0
    %3974 = vmatmul.mubr.bf16.gmra.mrb[0].mxu0 %v3909
    %v3975 = vpop.f32.mrb[0].mxu0
    %v3976 = vadd.f32 0.0, %v3975
    %v3977 = vpop.f32.mrb[0].mxu0
    %v3978 = vadd.f32 0.0, %v3977
    %v3979 = vpop.f32.mrb[0].mxu0
    %v3980 = vadd.f32 0.0, %v3979
    %v3981 = vpop.f32.mrb[0].mxu0
    %v3982 = vadd.f32 0.0, %v3981
    %3983 = vdwg.mxu0
    %v3984 = vunpack.c.l.bf16 %v3582
    %v3985 = vunpack.c.l.bf16 %v3583
    %v3986 = vunpack.c.l.bf16 %v3584
    %v3987 = vunpack.c.l.bf16 %v3585
    %v3988 = vunpack.c.l.bf16 %v3586
    %v3989 = vunpack.c.l.bf16 %v3587
    %v3990 = vunpack.c.l.bf16 %v3588
    %v3991 = vunpack.c.l.bf16 %v3589
    %v3992 = vadd.f32 %v3984, %v3946
    %v3993 = vadd.f32 %v3985, %v3950
    %v3994 = vadd.f32 %v3986, %v3956
    %v3995 = vadd.f32 %v3987, %v3960
    %v3996 = vadd.f32 %v3988, %v3966
    %v3997 = vadd.f32 %v3989, %v3970
    %v3998 = vadd.f32 %v3990, %v3976
    %v3999 = vadd.f32 %v3991, %v3980
    %v4000 = vxor.u32 %v3992, 2147483648
    %v4001 = vxor.u32 %v3993, 2147483648
    %v4002 = vxor.u32 %v3994, 2147483648
    %v4003 = vxor.u32 %v3995, 2147483648
    %v4004 = vxor.u32 %v3996, 2147483648
    %v4005 = vxor.u32 %v3997, 2147483648
    %v4006 = vxor.u32 %v3998, 2147483648
    %v4007 = vxor.u32 %v3999, 2147483648
    %v4008 = vmul.f32 %v4000, 1.442695
    %v4009 = vpow.pop %v4008
    %v4010 = vmul.f32 %v4001, 1.442695
    %v4011 = vpow.pop %v4010
    %v4012 = vmul.f32 %v4002, 1.442695
    %v4013 = vpow.pop %v4012
    %v4014 = vmul.f32 %v4003, 1.442695
    %v4015 = vpow.pop %v4014
    %v4016 = vmul.f32 %v4004, 1.442695
    %v4017 = vpow.pop %v4016
    %v4018 = vmul.f32 %v4005, 1.442695
    %v4019 = vpow.pop %v4018
    %v4020 = vmul.f32 %v4006, 1.442695
    %v4021 = vpow.pop %v4020
    %v4022 = vmul.f32 %v4007, 1.442695
    %v4023 = vpow.pop %v4022
    %v4024 = vadd.f32 %v4009, 1.0
    %v4025 = vadd.f32 %v4011, 1.0
    %v4026 = vadd.f32 %v4013, 1.0
    %v4027 = vadd.f32 %v4015, 1.0
    %v4028 = vadd.f32 %v4017, 1.0
    %v4029 = vadd.f32 %v4019, 1.0
    %v4030 = vadd.f32 %v4021, 1.0
    %v4031 = vadd.f32 %v4023, 1.0
    %v4032 = vrcp.pop %v4024
    %v4033 = vmul.f32 1.0, %v4032
    %v4034 = vrcp.pop %v4025
    %v4035 = vmul.f32 1.0, %v4034
    %v4036 = vrcp.pop %v4026
    %v4037 = vmul.f32 1.0, %v4036
    %v4038 = vrcp.pop %v4027
    %v4039 = vmul.f32 1.0, %v4038
    %v4040 = vrcp.pop %v4028
    %v4041 = vmul.f32 1.0, %v4040
    %v4042 = vrcp.pop %v4029
    %v4043 = vmul.f32 1.0, %v4042
    %v4044 = vrcp.pop %v4030
    %v4045 = vmul.f32 1.0, %v4044
    %v4046 = vrcp.pop %v4031
    %v4047 = vmul.f32 1.0, %v4046
    %v4056 = vrot.slane %v3582, 4
    %v4057 = vrot.slane %v3583, 4
    %v4058 = vrot.slane %v3584, 4
    %v4059 = vrot.slane %v3585, 4
    %v4060 = vrot.slane %v3586, 4
    %v4061 = vrot.slane %v3587, 4
    %v4062 = vrot.slane %v3588, 4
    %v4063 = vrot.slane %v3589, 4
    %v4072 = vunpack.c.l.bf16 %v4056
    %v4073 = vunpack.c.l.bf16 %v4057
    %v4074 = vunpack.c.l.bf16 %v4058
    %v4075 = vunpack.c.l.bf16 %v4059
    %v4076 = vunpack.c.l.bf16 %v4060
    %v4077 = vunpack.c.l.bf16 %v4061
    %v4078 = vunpack.c.l.bf16 %v4062
    %v4079 = vunpack.c.l.bf16 %v4063
    %v4080 = vadd.f32 %v3948, %v47
    %v4081 = vadd.f32 %v3952, %v47
    %v4082 = vadd.f32 %v3958, %v47
    %v4083 = vadd.f32 %v3962, %v47
    %v4084 = vadd.f32 %v3968, %v47
    %v4085 = vadd.f32 %v3972, %v47
    %v4086 = vadd.f32 %v3978, %v47
    %v4087 = vadd.f32 %v3982, %v47
    %v4088 = vmul.f32 %v4033, %v4080
    %v4089 = vmul.f32 %v4035, %v4081
    %v4090 = vmul.f32 %v4037, %v4082
    %v4091 = vmul.f32 %v4039, %v4083
    %v4092 = vmul.f32 %v4041, %v4084
    %v4093 = vmul.f32 %v4043, %v4085
    %v4094 = vmul.f32 %v4045, %v4086
    %v4095 = vmul.f32 %v4047, %v4087
    %v4096 = vadd.f32 %v4072, %v4088
    %v4097 = vadd.f32 %v4073, %v4089
    %v4098 = vadd.f32 %v4074, %v4090
    %v4099 = vadd.f32 %v4075, %v4091
    %v4100 = vadd.f32 %v4076, %v4092
    %v4101 = vadd.f32 %v4077, %v4093
    %v4102 = vadd.f32 %v4078, %v4094
    %v4103 = vadd.f32 %v4079, %v4095
    %v4104 = vtanh.pop %v4096
    %v4105 = vtanh.pop %v4097
    %v4106 = vtanh.pop %v4098
    %v4107 = vtanh.pop %v4099
    %v4108 = vtanh.pop %v4100
    %v4109 = vtanh.pop %v4101
    %v4110 = vtanh.pop %v4102
    %v4111 = vtanh.pop %v4103
    %v4112 = vsub.f32 1.0, %v4033
    %v4113 = vsub.f32 1.0, %v4035
    %v4114 = vsub.f32 1.0, %v4037
    %v4115 = vsub.f32 1.0, %v4039
    %v4116 = vsub.f32 1.0, %v4041
    %v4117 = vsub.f32 1.0, %v4043
    %v4118 = vsub.f32 1.0, %v4045
    %v4119 = vsub.f32 1.0, %v4047
    %4128 = vrot.lane.b32.xlu0 %v4104, 64
    %v4129 = vpop.permute.xlu0 %4128
    %4130 = vrot.lane.b32.xlu0 %v4105, 64
    %v4131 = vpop.permute.xlu0 %4130
    %4132 = vrot.lane.b32.xlu0 %v4106, 64
    %v4133 = vpop.permute.xlu0 %4132
    %4134 = vrot.lane.b32.xlu0 %v4107, 64
    %v4135 = vpop.permute.xlu0 %4134
    %4136 = vrot.lane.b32.xlu0 %v4108, 64
    %v4137 = vpop.permute.xlu0 %4136
    %4138 = vrot.lane.b32.xlu0 %v4109, 64
    %v4139 = vpop.permute.xlu0 %4138
    %4140 = vrot.lane.b32.xlu0 %v4110, 64
    %v4141 = vpop.permute.xlu0 %4140
    %4142 = vrot.lane.b32.xlu0 %v4111, 64
    %v4143 = vpop.permute.xlu0 %4142
    %v4152 = vmul.f32 %v4112, %v4129
    %v4153 = vmul.f32 %v4113, %v4131
    %v4154 = vmul.f32 %v4114, %v4133
    %v4155 = vmul.f32 %v4115, %v4135
    %v4156 = vmul.f32 %v4116, %v4137
    %v4157 = vmul.f32 %v4117, %v4139
    %v4158 = vmul.f32 %v4118, %v4141
    %v4159 = vmul.f32 %v4119, %v4143
    %v4160 = vmul.f32 %v4033, %v3565
    %v4161 = vmul.f32 %v4035, %v3566
    %v4162 = vmul.f32 %v4037, %v3567
    %v4163 = vmul.f32 %v4039, %v3568
    %v4164 = vmul.f32 %v4041, %v3569
    %v4165 = vmul.f32 %v4043, %v3570
    %v4166 = vmul.f32 %v4045, %v3571
    %v4167 = vmul.f32 %v4047, %v3572
    %v4168 = vadd.f32 %v4152, %v4160
    %v4169 = vadd.f32 %v4153, %v4161
    %v4170 = vadd.f32 %v4154, %v4162
    %v4171 = vadd.f32 %v4155, %v4163
    %v4172 = vadd.f32 %v4156, %v4164
    %v4173 = vadd.f32 %v4157, %v4165
    %v4174 = vadd.f32 %v4158, %v4166
    %v4175 = vadd.f32 %v4159, %v4167
    %s4176 = scalar_lea.vmem %s0, 896
    %v4177 = vld [vmem:[%s4176] sm:$0xff]
    %v4178 = vld [vmem:[%s4176 + $0x8] sm:$0xff]
    %v4179 = vld [vmem:[%s4176 + $0x10] sm:$0xff]
    %v4180 = vld [vmem:[%s4176 + $0x18] sm:$0xff]
    %v4181 = vld [vmem:[%s4176 + $0x20] sm:$0xff]
    %v4182 = vld [vmem:[%s4176 + $0x28] sm:$0xff]
    %v4183 = vld [vmem:[%s4176 + $0x30] sm:$0xff]
    %v4184 = vld [vmem:[%s4176 + $0x38] sm:$0xff]
    %v4185 = vld [vmem:[%s4176 + $0x40] sm:$0xff]
    %v4186 = vld [vmem:[%s4176 + $0x48] sm:$0xff]
    %v4187 = vld [vmem:[%s4176 + $0x50] sm:$0xff]
    %v4188 = vld [vmem:[%s4176 + $0x58] sm:$0xff]
    %v4189 = vld [vmem:[%s4176 + $0x60] sm:$0xff]
    %v4190 = vld [vmem:[%s4176 + $0x68] sm:$0xff]
    %v4191 = vld [vmem:[%s4176 + $0x70] sm:$0xff]
    %v4192 = vld [vmem:[%s4176 + $0x78] sm:$0xff]
    %v4193 = vpack.c.bf16 %v3876, %v3875
    %v4194 = vpack.c.bf16 %v3878, %v3877
    %v4195 = vpack.c.bf16 %v3880, %v3879
    %v4196 = vpack.c.bf16 %v3882, %v3881
    %4201 = vrot.lane.b32.xlu0 %v4193, 64
    %v4202 = vpop.permute.xlu0 %4201
    %4203 = vrot.lane.b32.xlu0 %v4194, 64
    %v4204 = vpop.permute.xlu0 %4203
    %4205 = vrot.lane.b32.xlu0 %v4195, 64
    %v4206 = vpop.permute.xlu0 %4205
    %4207 = vrot.lane.b32.xlu0 %v4196, 64
    %v4208 = vpop.permute.xlu0 %4207
    %v4210 = vsel %vm105, %v4202, 0
    %v4213 = vsel %vm105, %v4204, 0
    %v4216 = vsel %vm105, %v4206, 0
    %v4219 = vsel %vm105, %v4208, 0
    %4221 = vmatprep.subr.bf16.mxu0 %v90
    %4222 = vmatpush1.bf16.msra.mxu0 %v89
    %4223 = vmatprep.subr.bf16.mxu0 %v92
    %4224 = vmatpush1.bf16.msra.mxu0 %v91
    %4225 = vmatprep.subr.bf16.mxu0 %v94
    %4226 = vmatpush1.bf16.msra.mxu0 %v93
    %4227 = vmatprep.subr.bf16.mxu0 %v96
    %4228 = vmatpush1.bf16.msra.mxu0 %v95
    %4229 = vmatprep.subr.bf16.mxu0 0
    %4230 = vmatpush1.bf16.msra.mxu0 0
    %4231 = vmatprep.subr.bf16.mxu0 0
    %4232 = vmatpush1.bf16.msra.mxu0 0
    %4233 = vmatprep.subr.bf16.mxu0 0
    %4234 = vmatpush1.bf16.msra.mxu0 0
    %4235 = vmatprep.subr.bf16.mxu0 0
    %4236 = vmatpush1.bf16.msra.mxu0 0
    %4237 = vmatprep.subr.bf16.mxu0 0
    %4238 = vmatpush1.bf16.msra.mxu0 0
    %4239 = vmatprep.subr.bf16.mxu0 0
    %4240 = vmatpush1.bf16.msra.mxu0 0
    %4241 = vmatprep.subr.bf16.mxu0 0
    %4242 = vmatpush1.bf16.msra.mxu0 0
    %4243 = vmatprep.subr.bf16.mxu0 0
    %4244 = vmatpush1.bf16.msra.mxu0 0
    %4245 = vmatprep.subr.bf16.mxu0 0
    %4246 = vmatpush1.bf16.msra.mxu0 0
    %4247 = vmatprep.subr.bf16.mxu0 0
    %4248 = vmatpush1.bf16.msra.mxu0 0
    %4249 = vmatprep.subr.bf16.mxu0 0
    %4250 = vmatpush1.bf16.msra.mxu0 0
    %4251 = vmatprep.subr.bf16.mxu0 0
    %4252 = vmatpush1.bf16.msra.mxu0 0
    %4253 = vmatprep.mubr.bf16.mxu0 0
    %4254 = vmatmul.mubr.bf16.gmra.mrb[0].mxu0 %v4210
    %v4255 = vpop.f32.mrb[0].mxu0
    %v4256 = vadd.f32 0.0, %v4255
    %v4257 = vpop.f32.mrb[0].mxu0
    %v4258 = vadd.f32 0.0, %v4257
    %v4259 = vpop.f32.mrb[0].mxu0
    %v4260 = vadd.f32 0.0, %v4259
    %v4261 = vpop.f32.mrb[0].mxu0
    %v4262 = vadd.f32 0.0, %v4261
    %4263 = vmatprep.mubr.bf16.mxu0 0
    %4264 = vmatmul.mubr.bf16.gmra.mrb[0].mxu0 %v4213
    %v4265 = vpop.f32.mrb[0].mxu0
    %v4266 = vadd.f32 0.0, %v4265
    %v4267 = vpop.f32.mrb[0].mxu0
    %v4268 = vadd.f32 0.0, %v4267
    %v4269 = vpop.f32.mrb[0].mxu0
    %v4270 = vadd.f32 0.0, %v4269
    %v4271 = vpop.f32.mrb[0].mxu0
    %v4272 = vadd.f32 0.0, %v4271
    %4273 = vmatprep.mubr.bf16.mxu0 0
    %4274 = vmatmul.mubr.bf16.gmra.mrb[0].mxu0 %v4216
    %v4275 = vpop.f32.mrb[0].mxu0
    %v4276 = vadd.f32 0.0, %v4275
    %v4277 = vpop.f32.mrb[0].mxu0
    %v4278 = vadd.f32 0.0, %v4277
    %v4279 = vpop.f32.mrb[0].mxu0
    %v4280 = vadd.f32 0.0, %v4279
    %v4281 = vpop.f32.mrb[0].mxu0
    %v4282 = vadd.f32 0.0, %v4281
    %4283 = vmatprep.mubr.bf16.mxu0 0
    %4284 = vmatmul.mubr.bf16.gmra.mrb[0].mxu0 %v4219
    %v4285 = vpop.f32.mrb[0].mxu0
    %v4286 = vadd.f32 0.0, %v4285
    %v4287 = vpop.f32.mrb[0].mxu0
    %v4288 = vadd.f32 0.0, %v4287
    %v4289 = vpop.f32.mrb[0].mxu0
    %v4290 = vadd.f32 0.0, %v4289
    %v4291 = vpop.f32.mrb[0].mxu0
    %v4292 = vadd.f32 0.0, %v4291
    %4293 = vdwg.mxu0
    %v4294 = vunpack.c.l.bf16 %v4177
    %v4295 = vunpack.c.l.bf16 %v4178
    %v4296 = vunpack.c.l.bf16 %v4179
    %v4297 = vunpack.c.l.bf16 %v4180
    %v4298 = vunpack.c.l.bf16 %v4181
    %v4299 = vunpack.c.l.bf16 %v4182
    %v4300 = vunpack.c.l.bf16 %v4183
    %v4301 = vunpack.c.l.bf16 %v4184
    %v4302 = vadd.f32 %v4294, %v4256
    %v4303 = vadd.f32 %v4295, %v4260
    %v4304 = vadd.f32 %v4296, %v4266
    %v4305 = vadd.f32 %v4297, %v4270
    %v4306 = vadd.f32 %v4298, %v4276
    %v4307 = vadd.f32 %v4299, %v4280
    %v4308 = vadd.f32 %v4300, %v4286
    %v4309 = vadd.f32 %v4301, %v4290
    %v4310 = vxor.u32 %v4302, 2147483648
    %v4311 = vxor.u32 %v4303, 2147483648
    %v4312 = vxor.u32 %v4304, 2147483648
    %v4313 = vxor.u32 %v4305, 2147483648
    %v4314 = vxor.u32 %v4306, 2147483648
    %v4315 = vxor.u32 %v4307, 2147483648
    %v4316 = vxor.u32 %v4308, 2147483648
    %v4317 = vxor.u32 %v4309, 2147483648
    %v4318 = vmul.f32 %v4310, 1.442695
    %v4319 = vpow.pop %v4318
    %v4320 = vmul.f32 %v4311, 1.442695
    %v4321 = vpow.pop %v4320
    %v4322 = vmul.f32 %v4312, 1.442695
    %v4323 = vpow.pop %v4322
    %v4324 = vmul.f32 %v4313, 1.442695
    %v4325 = vpow.pop %v4324
    %v4326 = vmul.f32 %v4314, 1.442695
    %v4327 = vpow.pop %v4326
    %v4328 = vmul.f32 %v4315, 1.442695
    %v4329 = vpow.pop %v4328
    %v4330 = vmul.f32 %v4316, 1.442695
    %v4331 = vpow.pop %v4330
    %v4332 = vmul.f32 %v4317, 1.442695
    %v4333 = vpow.pop %v4332
    %v4334 = vadd.f32 %v4319, 1.0
    %v4335 = vadd.f32 %v4321, 1.0
    %v4336 = vadd.f32 %v4323, 1.0
    %v4337 = vadd.f32 %v4325, 1.0
    %v4338 = vadd.f32 %v4327, 1.0
    %v4339 = vadd.f32 %v4329, 1.0
    %v4340 = vadd.f32 %v4331, 1.0
    %v4341 = vadd.f32 %v4333, 1.0
    %v4342 = vrcp.pop %v4334
    %v4343 = vmul.f32 1.0, %v4342
    %v4344 = vrcp.pop %v4335
    %v4345 = vmul.f32 1.0, %v4344
    %v4346 = vrcp.pop %v4336
    %v4347 = vmul.f32 1.0, %v4346
    %v4348 = vrcp.pop %v4337
    %v4349 = vmul.f32 1.0, %v4348
    %v4350 = vrcp.pop %v4338
    %v4351 = vmul.f32 1.0, %v4350
    %v4352 = vrcp.pop %v4339
    %v4353 = vmul.f32 1.0, %v4352
    %v4354 = vrcp.pop %v4340
    %v4355 = vmul.f32 1.0, %v4354
    %v4356 = vrcp.pop %v4341
    %v4357 = vmul.f32 1.0, %v4356
    %v4366 = vrot.slane %v4177, 4
    %v4367 = vrot.slane %v4178, 4
    %v4368 = vrot.slane %v4179, 4
    %v4369 = vrot.slane %v4180, 4
    %v4370 = vrot.slane %v4181, 4
    %v4371 = vrot.slane %v4182, 4
    %v4372 = vrot.slane %v4183, 4
    %v4373 = vrot.slane %v4184, 4
    %v4382 = vunpack.c.l.bf16 %v4366
    %v4383 = vunpack.c.l.bf16 %v4367
    %v4384 = vunpack.c.l.bf16 %v4368
    %v4385 = vunpack.c.l.bf16 %v4369
    %v4386 = vunpack.c.l.bf16 %v4370
    %v4387 = vunpack.c.l.bf16 %v4371
    %v4388 = vunpack.c.l.bf16 %v4372
    %v4389 = vunpack.c.l.bf16 %v4373
    %v4390 = vadd.f32 %v4258, %v47
    %v4391 = vadd.f32 %v4262, %v47
    %v4392 = vadd.f32 %v4268, %v47
    %v4393 = vadd.f32 %v4272, %v47
    %v4394 = vadd.f32 %v4278, %v47
    %v4395 = vadd.f32 %v4282, %v47
    %v4396 = vadd.f32 %v4288, %v47
    %v4397 = vadd.f32 %v4292, %v47
    %v4398 = vmul.f32 %v4343, %v4390
    %v4399 = vmul.f32 %v4345, %v4391
    %v4400 = vmul.f32 %v4347, %v4392
    %v4401 = vmul.f32 %v4349, %v4393
    %v4402 = vmul.f32 %v4351, %v4394
    %v4403 = vmul.f32 %v4353, %v4395
    %v4404 = vmul.f32 %v4355, %v4396
    %v4405 = vmul.f32 %v4357, %v4397
    %v4406 = vadd.f32 %v4382, %v4398
    %v4407 = vadd.f32 %v4383, %v4399
    %v4408 = vadd.f32 %v4384, %v4400
    %v4409 = vadd.f32 %v4385, %v4401
    %v4410 = vadd.f32 %v4386, %v4402
    %v4411 = vadd.f32 %v4387, %v4403
    %v4412 = vadd.f32 %v4388, %v4404
    %v4413 = vadd.f32 %v4389, %v4405
    %v4414 = vtanh.pop %v4406
    %v4415 = vtanh.pop %v4407
    %v4416 = vtanh.pop %v4408
    %v4417 = vtanh.pop %v4409
    %v4418 = vtanh.pop %v4410
    %v4419 = vtanh.pop %v4411
    %v4420 = vtanh.pop %v4412
    %v4421 = vtanh.pop %v4413
    %v4422 = vsub.f32 1.0, %v4343
    %v4423 = vsub.f32 1.0, %v4345
    %v4424 = vsub.f32 1.0, %v4347
    %v4425 = vsub.f32 1.0, %v4349
    %v4426 = vsub.f32 1.0, %v4351
    %v4427 = vsub.f32 1.0, %v4353
    %v4428 = vsub.f32 1.0, %v4355
    %v4429 = vsub.f32 1.0, %v4357
    %4438 = vrot.lane.b32.xlu0 %v4414, 64
    %v4439 = vpop.permute.xlu0 %4438
    %4440 = vrot.lane.b32.xlu0 %v4415, 64
    %v4441 = vpop.permute.xlu0 %4440
    %4442 = vrot.lane.b32.xlu0 %v4416, 64
    %v4443 = vpop.permute.xlu0 %4442
    %4444 = vrot.lane.b32.xlu0 %v4417, 64
    %v4445 = vpop.permute.xlu0 %4444
    %4446 = vrot.lane.b32.xlu0 %v4418, 64
    %v4447 = vpop.permute.xlu0 %4446
    %4448 = vrot.lane.b32.xlu0 %v4419, 64
    %v4449 = vpop.permute.xlu0 %4448
    %4450 = vrot.lane.b32.xlu0 %v4420, 64
    %v4451 = vpop.permute.xlu0 %4450
    %4452 = vrot.lane.b32.xlu0 %v4421, 64
    %v4453 = vpop.permute.xlu0 %4452
    %v4462 = vmul.f32 %v4422, %v4439
    %v4463 = vmul.f32 %v4423, %v4441
    %v4464 = vmul.f32 %v4424, %v4443
    %v4465 = vmul.f32 %v4425, %v4445
    %v4466 = vmul.f32 %v4426, %v4447
    %v4467 = vmul.f32 %v4427, %v4449
    %v4468 = vmul.f32 %v4428, %v4451
    %v4469 = vmul.f32 %v4429, %v4453
    %v4470 = vmul.f32 %v4343, %v3875
    %v4471 = vmul.f32 %v4345, %v3876
    %v4472 = vmul.f32 %v4347, %v3877
    %v4473 = vmul.f32 %v4349, %v3878
    %v4474 = vmul.f32 %v4351, %v3879
    %v4475 = vmul.f32 %v4353, %v3880
    %v4476 = vmul.f32 %v4355, %v3881
    %v4477 = vmul.f32 %v4357, %v3882
    %v4478 = vadd.f32 %v4462, %v4470
    %v4479 = vadd.f32 %v4463, %v4471
    %v4480 = vadd.f32 %v4464, %v4472
    %v4481 = vadd.f32 %v4465, %v4473
    %v4482 = vadd.f32 %v4466, %v4474
    %v4483 = vadd.f32 %v4467, %v4475
    %v4484 = vadd.f32 %v4468, %v4476
    %v4485 = vadd.f32 %v4469, %v4477
    %v4486 = vpack.c.bf16 %v4169, %v4168
    %v4487 = vpack.c.bf16 %v4171, %v4170
    %v4488 = vpack.c.bf16 %v4173, %v4172
    %v4489 = vpack.c.bf16 %v4175, %v4174
    %4494 = vrot.lane.b32.xlu0 %v4486, 64
    %v4495 = vpop.permute.xlu0 %4494
    %4496 = vrot.lane.b32.xlu0 %v4487, 64
    %v4497 = vpop.permute.xlu0 %4496
    %4498 = vrot.lane.b32.xlu0 %v4488, 64
    %v4499 = vpop.permute.xlu0 %4498
    %4500 = vrot.lane.b32.xlu0 %v4489, 64
    %v4501 = vpop.permute.xlu0 %4500
    %v4503 = vsel %vm105, %v4495, 0
    %v4506 = vsel %vm105, %v4497, 0
    %v4509 = vsel %vm105, %v4499, 0
    %v4512 = vsel %vm105, %v4501, 0
    %4514 = vmatprep.subr.bf16.mxu0 %v90
    %4515 = vmatpush1.bf16.msra.mxu0 %v89
    %4516 = vmatprep.subr.bf16.mxu0 %v92
    %4517 = vmatpush1.bf16.msra.mxu0 %v91
    %4518 = vmatprep.subr.bf16.mxu0 %v94
    %4519 = vmatpush1.bf16.msra.mxu0 %v93
    %4520 = vmatprep.subr.bf16.mxu0 %v96
    %4521 = vmatpush1.bf16.msra.mxu0 %v95
    %4522 = vmatprep.subr.bf16.mxu0 0
    %4523 = vmatpush1.bf16.msra.mxu0 0
    %4524 = vmatprep.subr.bf16.mxu0 0
    %4525 = vmatpush1.bf16.msra.mxu0 0
    %4526 = vmatprep.subr.bf16.mxu0 0
    %4527 = vmatpush1.bf16.msra.mxu0 0
    %4528 = vmatprep.subr.bf16.mxu0 0
    %4529 = vmatpush1.bf16.msra.mxu0 0
    %4530 = vmatprep.subr.bf16.mxu0 0
    %4531 = vmatpush1.bf16.msra.mxu0 0
    %4532 = vmatprep.subr.bf16.mxu0 0
    %4533 = vmatpush1.bf16.msra.mxu0 0
    %4534 = vmatprep.subr.bf16.mxu0 0
    %4535 = vmatpush1.bf16.msra.mxu0 0
    %4536 = vmatprep.subr.bf16.mxu0 0
    %4537 = vmatpush1.bf16.msra.mxu0 0
    %4538 = vmatprep.subr.bf16.mxu0 0
    %4539 = vmatpush1.bf16.msra.mxu0 0
    %4540 = vmatprep.subr.bf16.mxu0 0
    %4541 = vmatpush1.bf16.msra.mxu0 0
    %4542 = vmatprep.subr.bf16.mxu0 0
    %4543 = vmatpush1.bf16.msra.mxu0 0
    %4544 = vmatprep.subr.bf16.mxu0 0
    %4545 = vmatpush1.bf16.msra.mxu0 0
    %4546 = vmatprep.mubr.bf16.mxu0 0
    %4547 = vmatmul.mubr.bf16.gmra.mrb[0].mxu0 %v4503
    %v4548 = vpop.f32.mrb[0].mxu0
    %v4549 = vadd.f32 0.0, %v4548
    %v4550 = vpop.f32.mrb[0].mxu0
    %v4551 = vadd.f32 0.0, %v4550
    %v4552 = vpop.f32.mrb[0].mxu0
    %v4553 = vadd.f32 0.0, %v4552
    %v4554 = vpop.f32.mrb[0].mxu0
    %v4555 = vadd.f32 0.0, %v4554
    %4556 = vmatprep.mubr.bf16.mxu0 0
    %4557 = vmatmul.mubr.bf16.gmra.mrb[0].mxu0 %v4506
    %v4558 = vpop.f32.mrb[0].mxu0
    %v4559 = vadd.f32 0.0, %v4558
    %v4560 = vpop.f32.mrb[0].mxu0
    %v4561 = vadd.f32 0.0, %v4560
    %v4562 = vpop.f32.mrb[0].mxu0
    %v4563 = vadd.f32 0.0, %v4562
    %v4564 = vpop.f32.mrb[0].mxu0
    %v4565 = vadd.f32 0.0, %v4564
    %4566 = vmatprep.mubr.bf16.mxu0 0
    %4567 = vmatmul.mubr.bf16.gmra.mrb[0].mxu0 %v4509
    %v4568 = vpop.f32.mrb[0].mxu0
    %v4569 = vadd.f32 0.0, %v4568
    %v4570 = vpop.f32.mrb[0].mxu0
    %v4571 = vadd.f32 0.0, %v4570
    %v4572 = vpop.f32.mrb[0].mxu0
    %v4573 = vadd.f32 0.0, %v4572
    %v4574 = vpop.f32.mrb[0].mxu0
    %v4575 = vadd.f32 0.0, %v4574
    %4576 = vmatprep.mubr.bf16.mxu0 0
    %4577 = vmatmul.mubr.bf16.gmra.mrb[0].mxu0 %v4512
    %v4578 = vpop.f32.mrb[0].mxu0
    %v4579 = vadd.f32 0.0, %v4578
    %v4580 = vpop.f32.mrb[0].mxu0
    %v4581 = vadd.f32 0.0, %v4580
    %v4582 = vpop.f32.mrb[0].mxu0
    %v4583 = vadd.f32 0.0, %v4582
    %v4584 = vpop.f32.mrb[0].mxu0
    %v4585 = vadd.f32 0.0, %v4584
    %4586 = vdwg.mxu0
    %v4587 = vunpack.c.l.bf16 %v4185
    %v4588 = vunpack.c.l.bf16 %v4186
    %v4589 = vunpack.c.l.bf16 %v4187
    %v4590 = vunpack.c.l.bf16 %v4188
    %v4591 = vunpack.c.l.bf16 %v4189
    %v4592 = vunpack.c.l.bf16 %v4190
    %v4593 = vunpack.c.l.bf16 %v4191
    %v4594 = vunpack.c.l.bf16 %v4192
    %v4595 = vadd.f32 %v4587, %v4549
    %v4596 = vadd.f32 %v4588, %v4553
    %v4597 = vadd.f32 %v4589, %v4559
    %v4598 = vadd.f32 %v4590, %v4563
    %v4599 = vadd.f32 %v4591, %v4569
    %v4600 = vadd.f32 %v4592, %v4573
    %v4601 = vadd.f32 %v4593, %v4579
    %v4602 = vadd.f32 %v4594, %v4583
    %v4603 = vxor.u32 %v4595, 2147483648
    %v4604 = vxor.u32 %v4596, 2147483648
    %v4605 = vxor.u32 %v4597, 2147483648
    %v4606 = vxor.u32 %v4598, 2147483648
    %v4607 = vxor.u32 %v4599, 2147483648
    %v4608 = vxor.u32 %v4600, 2147483648
    %v4609 = vxor.u32 %v4601, 2147483648
    %v4610 = vxor.u32 %v4602, 2147483648
    %v4611 = vmul.f32 %v4603, 1.442695
    %v4612 = vpow.pop %v4611
    %v4613 = vmul.f32 %v4604, 1.442695
    %v4614 = vpow.pop %v4613
    %v4615 = vmul.f32 %v4605, 1.442695
    %v4616 = vpow.pop %v4615
    %v4617 = vmul.f32 %v4606, 1.442695
    %v4618 = vpow.pop %v4617
    %v4619 = vmul.f32 %v4607, 1.442695
    %v4620 = vpow.pop %v4619
    %v4621 = vmul.f32 %v4608, 1.442695
    %v4622 = vpow.pop %v4621
    %v4623 = vmul.f32 %v4609, 1.442695
    %v4624 = vpow.pop %v4623
    %v4625 = vmul.f32 %v4610, 1.442695
    %v4626 = vpow.pop %v4625
    %v4627 = vadd.f32 %v4612, 1.0
    %v4628 = vadd.f32 %v4614, 1.0
    %v4629 = vadd.f32 %v4616, 1.0
    %v4630 = vadd.f32 %v4618, 1.0
    %v4631 = vadd.f32 %v4620, 1.0
    %v4632 = vadd.f32 %v4622, 1.0
    %v4633 = vadd.f32 %v4624, 1.0
    %v4634 = vadd.f32 %v4626, 1.0
    %v4635 = vrcp.pop %v4627
    %v4636 = vmul.f32 1.0, %v4635
    %v4637 = vrcp.pop %v4628
    %v4638 = vmul.f32 1.0, %v4637
    %v4639 = vrcp.pop %v4629
    %v4640 = vmul.f32 1.0, %v4639
    %v4641 = vrcp.pop %v4630
    %v4642 = vmul.f32 1.0, %v4641
    %v4643 = vrcp.pop %v4631
    %v4644 = vmul.f32 1.0, %v4643
    %v4645 = vrcp.pop %v4632
    %v4646 = vmul.f32 1.0, %v4645
    %v4647 = vrcp.pop %v4633
    %v4648 = vmul.f32 1.0, %v4647
    %v4649 = vrcp.pop %v4634
    %v4650 = vmul.f32 1.0, %v4649
    %v4659 = vrot.slane %v4185, 4
    %v4660 = vrot.slane %v4186, 4
    %v4661 = vrot.slane %v4187, 4
    %v4662 = vrot.slane %v4188, 4
    %v4663 = vrot.slane %v4189, 4
    %v4664 = vrot.slane %v4190, 4
    %v4665 = vrot.slane %v4191, 4
    %v4666 = vrot.slane %v4192, 4
    %v4675 = vunpack.c.l.bf16 %v4659
    %v4676 = vunpack.c.l.bf16 %v4660
    %v4677 = vunpack.c.l.bf16 %v4661
    %v4678 = vunpack.c.l.bf16 %v4662
    %v4679 = vunpack.c.l.bf16 %v4663
    %v4680 = vunpack.c.l.bf16 %v4664
    %v4681 = vunpack.c.l.bf16 %v4665
    %v4682 = vunpack.c.l.bf16 %v4666
    %v4683 = vadd.f32 %v4551, %v47
    %v4684 = vadd.f32 %v4555, %v47
    %v4685 = vadd.f32 %v4561, %v47
    %v4686 = vadd.f32 %v4565, %v47
    %v4687 = vadd.f32 %v4571, %v47
    %v4688 = vadd.f32 %v4575, %v47
    %v4689 = vadd.f32 %v4581, %v47
    %v4690 = vadd.f32 %v4585, %v47
    %v4691 = vmul.f32 %v4636, %v4683
    %v4692 = vmul.f32 %v4638, %v4684
    %v4693 = vmul.f32 %v4640, %v4685
    %v4694 = vmul.f32 %v4642, %v4686
    %v4695 = vmul.f32 %v4644, %v4687
    %v4696 = vmul.f32 %v4646, %v4688
    %v4697 = vmul.f32 %v4648, %v4689
    %v4698 = vmul.f32 %v4650, %v4690
    %v4699 = vadd.f32 %v4675, %v4691
    %v4700 = vadd.f32 %v4676, %v4692
    %v4701 = vadd.f32 %v4677, %v4693
    %v4702 = vadd.f32 %v4678, %v4694
    %v4703 = vadd.f32 %v4679, %v4695
    %v4704 = vadd.f32 %v4680, %v4696
    %v4705 = vadd.f32 %v4681, %v4697
    %v4706 = vadd.f32 %v4682, %v4698
    %v4707 = vtanh.pop %v4699
    %v4708 = vtanh.pop %v4700
    %v4709 = vtanh.pop %v4701
    %v4710 = vtanh.pop %v4702
    %v4711 = vtanh.pop %v4703
    %v4712 = vtanh.pop %v4704
    %v4713 = vtanh.pop %v4705
    %v4714 = vtanh.pop %v4706
    %v4715 = vsub.f32 1.0, %v4636
    %v4716 = vsub.f32 1.0, %v4638
    %v4717 = vsub.f32 1.0, %v4640
    %v4718 = vsub.f32 1.0, %v4642
    %v4719 = vsub.f32 1.0, %v4644
    %v4720 = vsub.f32 1.0, %v4646
    %v4721 = vsub.f32 1.0, %v4648
    %v4722 = vsub.f32 1.0, %v4650
    %4731 = vrot.lane.b32.xlu0 %v4707, 64
    %v4732 = vpop.permute.xlu0 %4731
    %4733 = vrot.lane.b32.xlu0 %v4708, 64
    %v4734 = vpop.permute.xlu0 %4733
    %4735 = vrot.lane.b32.xlu0 %v4709, 64
    %v4736 = vpop.permute.xlu0 %4735
    %4737 = vrot.lane.b32.xlu0 %v4710, 64
    %v4738 = vpop.permute.xlu0 %4737
    %4739 = vrot.lane.b32.xlu0 %v4711, 64
    %v4740 = vpop.permute.xlu0 %4739
    %4741 = vrot.lane.b32.xlu0 %v4712, 64
    %v4742 = vpop.permute.xlu0 %4741
    %4743 = vrot.lane.b32.xlu0 %v4713, 64
    %v4744 = vpop.permute.xlu0 %4743
    %4745 = vrot.lane.b32.xlu0 %v4714, 64
    %v4746 = vpop.permute.xlu0 %4745
    %v4755 = vmul.f32 %v4715, %v4732
    %v4756 = vmul.f32 %v4716, %v4734
    %v4757 = vmul.f32 %v4717, %v4736
    %v4758 = vmul.f32 %v4718, %v4738
    %v4759 = vmul.f32 %v4719, %v4740
    %v4760 = vmul.f32 %v4720, %v4742
    %v4761 = vmul.f32 %v4721, %v4744
    %v4762 = vmul.f32 %v4722, %v4746
    %v4763 = vmul.f32 %v4636, %v4168
    %v4764 = vmul.f32 %v4638, %v4169
    %v4765 = vmul.f32 %v4640, %v4170
    %v4766 = vmul.f32 %v4642, %v4171
    %v4767 = vmul.f32 %v4644, %v4172
    %v4768 = vmul.f32 %v4646, %v4173
    %v4769 = vmul.f32 %v4648, %v4174
    %v4770 = vmul.f32 %v4650, %v4175
    %v4771 = vadd.f32 %v4755, %v4763
    %v4772 = vadd.f32 %v4756, %v4764
    %v4773 = vadd.f32 %v4757, %v4765
    %v4774 = vadd.f32 %v4758, %v4766
    %v4775 = vadd.f32 %v4759, %v4767
    %v4776 = vadd.f32 %v4760, %v4768
    %v4777 = vadd.f32 %v4761, %v4769
    %v4778 = vadd.f32 %v4762, %v4770
    %v4779 = vld [vmem:[%s3] sm:$0xff]
    %v4780 = vld [vmem:[%s3 + $0x8] sm:$0xff]
    %v4781 = vld [vmem:[%s3 + $0x10] sm:$0xff]
    %v4782 = vld [vmem:[%s3 + $0x18] sm:$0xff]
    %v4783 = vld [vmem:[%s3 + $0x20] sm:$0xff]
    %v4784 = vld [vmem:[%s3 + $0x28] sm:$0xff]
    %v4785 = vld [vmem:[%s3 + $0x30] sm:$0xff]
    %v4786 = vld [vmem:[%s3 + $0x38] sm:$0xff]
    %v4787 = vld [vmem:[%s4] sm:$0x1]
    %v4789 = vlaneseq
    %v4790 = vshrl.u32 %v4789, 7
    %v4791 = vsub.s32 0, %v4790
    %v4792 = vrot.slane %v4787, %v4791
    %4810 = vrot.lane.b32.xlu0 %v4478, 64
    %v4811 = vpop.permute.xlu0 %4810
    %4812 = vrot.lane.b32.xlu0 %v4479, 64
    %v4813 = vpop.permute.xlu0 %4812
    %4814 = vrot.lane.b32.xlu0 %v4480, 64
    %v4815 = vpop.permute.xlu0 %4814
    %4816 = vrot.lane.b32.xlu0 %v4481, 64
    %v4817 = vpop.permute.xlu0 %4816
    %4818 = vrot.lane.b32.xlu0 %v4482, 64
    %v4819 = vpop.permute.xlu0 %4818
    %4820 = vrot.lane.b32.xlu0 %v4483, 64
    %v4821 = vpop.permute.xlu0 %4820
    %4822 = vrot.lane.b32.xlu0 %v4484, 64
    %v4823 = vpop.permute.xlu0 %4822
    %4824 = vrot.lane.b32.xlu0 %v4485, 64
    %v4825 = vpop.permute.xlu0 %4824
    %4826 = vrot.lane.b32.xlu0 %v4771, 64
    %v4827 = vpop.permute.xlu0 %4826
    %4828 = vrot.lane.b32.xlu0 %v4772, 64
    %v4829 = vpop.permute.xlu0 %4828
    %4830 = vrot.lane.b32.xlu0 %v4773, 64
    %v4831 = vpop.permute.xlu0 %4830
    %4832 = vrot.lane.b32.xlu0 %v4774, 64
    %v4833 = vpop.permute.xlu0 %4832
    %4834 = vrot.lane.b32.xlu0 %v4775, 64
    %v4835 = vpop.permute.xlu0 %4834
    %4836 = vrot.lane.b32.xlu0 %v4776, 64
    %v4837 = vpop.permute.xlu0 %4836
    %4838 = vrot.lane.b32.xlu0 %v4777, 64
    %v4839 = vpop.permute.xlu0 %4838
    %4840 = vrot.lane.b32.xlu0 %v4778, 64
    %v4841 = vpop.permute.xlu0 %4840
    %v4842 = vsel %vm105, %v4811, 0
    %v4844 = vsel %vm105, %v4813, 0
    %v4846 = vsel %vm105, %v4815, 0
    %v4848 = vsel %vm105, %v4817, 0
    %v4850 = vsel %vm105, %v4819, 0
    %v4852 = vsel %vm105, %v4821, 0
    %v4854 = vsel %vm105, %v4823, 0
    %v4856 = vsel %vm105, %v4825, 0
    %v4858 = vsel %vm105, %v4827, 0
    %v4860 = vsel %vm105, %v4829, 0
    %v4862 = vsel %vm105, %v4831, 0
    %v4864 = vsel %vm105, %v4833, 0
    %v4866 = vsel %vm105, %v4835, 0
    %v4868 = vsel %vm105, %v4837, 0
    %v4870 = vsel %vm105, %v4839, 0
    %v4872 = vsel %vm105, %v4841, 0
    %4874 = vmatprep.subr.mxu0 0.0
    %4875 = vmatpush1.msra.mxu0 %v4779
    %4876 = vmatprep.subr.mxu0 0.0
    %4877 = vmatpush1.msra.mxu0 %v4780
    %4878 = vmatprep.subr.mxu0 0.0
    %4879 = vmatpush1.msra.mxu0 %v4781
    %4880 = vmatprep.subr.mxu0 0.0
    %4881 = vmatpush1.msra.mxu0 %v4782
    %4882 = vmatprep.subr.mxu0 0.0
    %4883 = vmatpush1.msra.mxu0 %v4783
    %4884 = vmatprep.subr.mxu0 0.0
    %4885 = vmatpush1.msra.mxu0 %v4784
    %4886 = vmatprep.subr.mxu0 0.0
    %4887 = vmatpush1.msra.mxu0 %v4785
    %4888 = vmatprep.subr.mxu0 0.0
    %4889 = vmatpush1.msra.mxu0 %v4786
    %4890 = vmatprep.subr.mxu0 0.0
    %4891 = vmatpush1.msra.mxu0 0.0
    %4892 = vmatprep.subr.mxu0 0.0
    %4893 = vmatpush1.msra.mxu0 0.0
    %4894 = vmatprep.subr.mxu0 0.0
    %4895 = vmatpush1.msra.mxu0 0.0
    %4896 = vmatprep.subr.mxu0 0.0
    %4897 = vmatpush1.msra.mxu0 0.0
    %4898 = vmatprep.subr.mxu0 0.0
    %4899 = vmatpush1.msra.mxu0 0.0
    %4900 = vmatprep.subr.mxu0 0.0
    %4901 = vmatpush1.msra.mxu0 0.0
    %4902 = vmatprep.subr.mxu0 0.0
    %4903 = vmatpush1.msra.mxu0 0.0
    %4904 = vmatprep.subr.mxu0 0.0
    %4905 = vmatpush1.msra.mxu0 0.0
    %4906 = vmatprep.subr.mxu0 0.0
    %4907 = vmatpush1.msra.mxu0 0.0
    %4908 = vmatprep.subr.mxu0 0.0
    %4909 = vmatpush1.msra.mxu0 0.0
    %4910 = vmatprep.subr.mxu0 0.0
    %4911 = vmatpush1.msra.mxu0 0.0
    %4912 = vmatprep.subr.mxu0 0.0
    %4913 = vmatpush1.msra.mxu0 0.0
    %4914 = vmatprep.subr.mxu0 0.0
    %4915 = vmatpush1.msra.mxu0 0.0
    %4916 = vmatprep.subr.mxu0 0.0
    %4917 = vmatpush1.msra.mxu0 0.0
    %4918 = vmatprep.subr.mxu0 0.0
    %4919 = vmatpush1.msra.mxu0 0.0
    %4920 = vmatprep.subr.mxu0 0.0
    %4921 = vmatpush1.msra.mxu0 0.0
    %4922 = vmatprep.subr.mxu0 0.0
    %4923 = vmatpush1.msra.mxu0 0.0
    %4924 = vmatprep.subr.mxu0 0.0
    %4925 = vmatpush1.msra.mxu0 0.0
    %4926 = vmatprep.subr.mxu0 0.0
    %4927 = vmatpush1.msra.mxu0 0.0
    %4928 = vmatprep.subr.mxu0 0.0
    %4929 = vmatpush1.msra.mxu0 0.0
    %4930 = vmatprep.subr.mxu0 0.0
    %4931 = vmatpush1.msra.mxu0 0.0
    %4932 = vmatprep.subr.mxu0 0.0
    %4933 = vmatpush1.msra.mxu0 0.0
    %4934 = vmatprep.subr.mxu0 0.0
    %4935 = vmatpush1.msra.mxu0 0.0
    %4936 = vmatprep.subr.mxu0 0.0
    %4937 = vmatpush1.msra.mxu0 0.0
    %4938 = vmatprep.mubr.f32.mxu0 0.0
    %4939 = vmatmul.mubr.f32.gmra.mrb[0].mxu0 %v4842
    %v4940 = vpop.f32.mrb[0].mxu0
    %v4941 = vadd.f32 %v4792, %v4940
    %v4942 = vpop.f32.mrb[0].mxu0
    %4943 = vmatprep.mubr.f32.mxu0 0.0
    %4944 = vmatmul.mubr.f32.gmra.mrb[0].mxu0 %v4844
    %v4945 = vpop.f32.mrb[0].mxu0
    %v4946 = vadd.f32 %v4792, %v4945
    %v4947 = vpop.f32.mrb[0].mxu0
    %4948 = vmatprep.mubr.f32.mxu0 0.0
    %4949 = vmatmul.mubr.f32.gmra.mrb[0].mxu0 %v4846
    %v4950 = vpop.f32.mrb[0].mxu0
    %v4951 = vadd.f32 %v4792, %v4950
    %v4952 = vpop.f32.mrb[0].mxu0
    %4953 = vmatprep.mubr.f32.mxu0 0.0
    %4954 = vmatmul.mubr.f32.gmra.mrb[0].mxu0 %v4848
    %v4955 = vpop.f32.mrb[0].mxu0
    %v4956 = vadd.f32 %v4792, %v4955
    %v4957 = vpop.f32.mrb[0].mxu0
    %4958 = vmatprep.mubr.f32.mxu0 0.0
    %4959 = vmatmul.mubr.f32.gmra.mrb[0].mxu0 %v4850
    %v4960 = vpop.f32.mrb[0].mxu0
    %v4961 = vadd.f32 %v4792, %v4960
    %v4962 = vpop.f32.mrb[0].mxu0
    %4963 = vmatprep.mubr.f32.mxu0 0.0
    %4964 = vmatmul.mubr.f32.gmra.mrb[0].mxu0 %v4852
    %v4965 = vpop.f32.mrb[0].mxu0
    %v4966 = vadd.f32 %v4792, %v4965
    %v4967 = vpop.f32.mrb[0].mxu0
    %4968 = vmatprep.mubr.f32.mxu0 0.0
    %4969 = vmatmul.mubr.f32.gmra.mrb[0].mxu0 %v4854
    %v4970 = vpop.f32.mrb[0].mxu0
    %v4971 = vadd.f32 %v4792, %v4970
    %v4972 = vpop.f32.mrb[0].mxu0
    %4973 = vmatprep.mubr.f32.mxu0 0.0
    %4974 = vmatmul.mubr.f32.gmra.mrb[0].mxu0 %v4856
    %v4975 = vpop.f32.mrb[0].mxu0
    %v4976 = vadd.f32 %v4792, %v4975
    %v4977 = vpop.f32.mrb[0].mxu0
    %4978 = vmatprep.mubr.f32.mxu0 0.0
    %4979 = vmatmul.mubr.f32.gmra.mrb[0].mxu0 %v4858
    %v4980 = vpop.f32.mrb[0].mxu0
    %v4981 = vadd.f32 %v4792, %v4980
    %v4982 = vpop.f32.mrb[0].mxu0
    %4983 = vmatprep.mubr.f32.mxu0 0.0
    %4984 = vmatmul.mubr.f32.gmra.mrb[0].mxu0 %v4860
    %v4985 = vpop.f32.mrb[0].mxu0
    %v4986 = vadd.f32 %v4792, %v4985
    %v4987 = vpop.f32.mrb[0].mxu0
    %4988 = vmatprep.mubr.f32.mxu0 0.0
    %4989 = vmatmul.mubr.f32.gmra.mrb[0].mxu0 %v4862
    %v4990 = vpop.f32.mrb[0].mxu0
    %v4991 = vadd.f32 %v4792, %v4990
    %v4992 = vpop.f32.mrb[0].mxu0
    %4993 = vmatprep.mubr.f32.mxu0 0.0
    %4994 = vmatmul.mubr.f32.gmra.mrb[0].mxu0 %v4864
    %v4995 = vpop.f32.mrb[0].mxu0
    %v4996 = vadd.f32 %v4792, %v4995
    %v4997 = vpop.f32.mrb[0].mxu0
    %4998 = vmatprep.mubr.f32.mxu0 0.0
    %4999 = vmatmul.mubr.f32.gmra.mrb[0].mxu0 %v4866
    %v5000 = vpop.f32.mrb[0].mxu0
    %v5001 = vadd.f32 %v4792, %v5000
    %v5002 = vpop.f32.mrb[0].mxu0
    %5003 = vmatprep.mubr.f32.mxu0 0.0
    %5004 = vmatmul.mubr.f32.gmra.mrb[0].mxu0 %v4868
    %v5005 = vpop.f32.mrb[0].mxu0
    %v5006 = vadd.f32 %v4792, %v5005
    %v5007 = vpop.f32.mrb[0].mxu0
    %5008 = vmatprep.mubr.f32.mxu0 0.0
    %5009 = vmatmul.mubr.f32.gmra.mrb[0].mxu0 %v4870
    %v5010 = vpop.f32.mrb[0].mxu0
    %v5011 = vadd.f32 %v4792, %v5010
    %v5012 = vpop.f32.mrb[0].mxu0
    %5013 = vmatprep.mubr.f32.mxu0 0.0
    %5014 = vmatmul.mubr.f32.gmra.mrb[0].mxu0 %v4872
    %v5015 = vpop.f32.mrb[0].mxu0
    %v5016 = vadd.f32 %v4792, %v5015
    %v5017 = vpop.f32.mrb[0].mxu0
    %5018 = vdwg.mxu0
    %v5019 = vtanh.pop %v4941
    %v5020 = vtanh.pop %v4946
    %v5021 = vtanh.pop %v4951
    %v5022 = vtanh.pop %v4956
    %v5023 = vtanh.pop %v4961
    %v5024 = vtanh.pop %v4966
    %v5025 = vtanh.pop %v4971
    %v5026 = vtanh.pop %v4976
    %v5027 = vtanh.pop %v4981
    %v5028 = vtanh.pop %v4986
    %v5029 = vtanh.pop %v4991
    %v5030 = vtanh.pop %v4996
    %v5031 = vtanh.pop %v5001
    %v5032 = vtanh.pop %v5006
    %v5033 = vtanh.pop %v5011
    %v5034 = vtanh.pop %v5016
    %v5035 = vld [vmem:[%s5] sm:$0xff]
    %v5036 = vld [vmem:[%s5 + $0x8] sm:$0xff]
    %v5037 = vld [vmem:[%s5 + $0x10] sm:$0xff]
    %v5038 = vld [vmem:[%s5 + $0x18] sm:$0xff]
    %v5039 = vld [vmem:[%s5 + $0x20] sm:$0xff]
    %v5040 = vld [vmem:[%s5 + $0x28] sm:$0xff]
    %v5041 = vld [vmem:[%s5 + $0x30] sm:$0xff]
    %v5042 = vld [vmem:[%s5 + $0x38] sm:$0xff]
    %v5043 = vld [vmem:[%s5 + $0x40] sm:$0xff]
    %v5044 = vld [vmem:[%s5 + $0x48] sm:$0xff]
    %v5045 = vld [vmem:[%s5 + $0x50] sm:$0xff]
    %v5046 = vld [vmem:[%s5 + $0x58] sm:$0xff]
    %v5047 = vld [vmem:[%s5 + $0x60] sm:$0xff]
    %v5048 = vld [vmem:[%s5 + $0x68] sm:$0xff]
    %v5049 = vld [vmem:[%s5 + $0x70] sm:$0xff]
    %v5050 = vld [vmem:[%s5 + $0x78] sm:$0xff]
    %v5051 = vld [vmem:[%s6] sm:$0x1]
    %v5053 = vlaneseq
    %v5054 = vshrl.u32 %v5053, 7
    %v5055 = vsub.s32 0, %v5054
    %v5056 = vrot.slane %v5051, %v5055
    %5058 = vmatprep.subr.mxu0 0.0
    %5059 = vmatpush1.msra.mxu0 %v5035
    %5060 = vmatprep.subr.mxu0 0.0
    %5061 = vmatpush1.msra.mxu0 %v5036
    %5062 = vmatprep.subr.mxu0 0.0
    %5063 = vmatpush1.msra.mxu0 %v5037
    %5064 = vmatprep.subr.mxu0 0.0
    %5065 = vmatpush1.msra.mxu0 %v5038
    %5066 = vmatprep.subr.mxu0 0.0
    %5067 = vmatpush1.msra.mxu0 %v5039
    %5068 = vmatprep.subr.mxu0 0.0
    %5069 = vmatpush1.msra.mxu0 %v5040
    %5070 = vmatprep.subr.mxu0 0.0
    %5071 = vmatpush1.msra.mxu0 %v5041
    %5072 = vmatprep.subr.mxu0 0.0
    %5073 = vmatpush1.msra.mxu0 %v5042
    %5074 = vmatprep.subr.mxu0 0.0
    %5075 = vmatpush1.msra.mxu0 %v5043
    %5076 = vmatprep.subr.mxu0 0.0
    %5077 = vmatpush1.msra.mxu0 %v5044
    %5078 = vmatprep.subr.mxu0 0.0
    %5079 = vmatpush1.msra.mxu0 %v5045
    %5080 = vmatprep.subr.mxu0 0.0
    %5081 = vmatpush1.msra.mxu0 %v5046
    %5082 = vmatprep.subr.mxu0 0.0
    %5083 = vmatpush1.msra.mxu0 %v5047
    %5084 = vmatprep.subr.mxu0 0.0
    %5085 = vmatpush1.msra.mxu0 %v5048
    %5086 = vmatprep.subr.mxu0 0.0
    %5087 = vmatpush1.msra.mxu0 %v5049
    %5088 = vmatprep.subr.mxu0 0.0
    %5089 = vmatpush1.msra.mxu0 %v5050
    %5090 = vmatprep.subr.mxu0 0.0
    %5091 = vmatpush1.msra.mxu0 0.0
    %5092 = vmatprep.subr.mxu0 0.0
    %5093 = vmatpush1.msra.mxu0 0.0
    %5094 = vmatprep.subr.mxu0 0.0
    %5095 = vmatpush1.msra.mxu0 0.0
    %5096 = vmatprep.subr.mxu0 0.0
    %5097 = vmatpush1.msra.mxu0 0.0
    %5098 = vmatprep.subr.mxu0 0.0
    %5099 = vmatpush1.msra.mxu0 0.0
    %5100 = vmatprep.subr.mxu0 0.0
    %5101 = vmatpush1.msra.mxu0 0.0
    %5102 = vmatprep.subr.mxu0 0.0
    %5103 = vmatpush1.msra.mxu0 0.0
    %5104 = vmatprep.subr.mxu0 0.0
    %5105 = vmatpush1.msra.mxu0 0.0
    %5106 = vmatprep.subr.mxu0 0.0
    %5107 = vmatpush1.msra.mxu0 0.0
    %5108 = vmatprep.subr.mxu0 0.0
    %5109 = vmatpush1.msra.mxu0 0.0
    %5110 = vmatprep.subr.mxu0 0.0
    %5111 = vmatpush1.msra.mxu0 0.0
    %5112 = vmatprep.subr.mxu0 0.0
    %5113 = vmatpush1.msra.mxu0 0.0
    %5114 = vmatprep.subr.mxu0 0.0
    %5115 = vmatpush1.msra.mxu0 0.0
    %5116 = vmatprep.subr.mxu0 0.0
    %5117 = vmatpush1.msra.mxu0 0.0
    %5118 = vmatprep.subr.mxu0 0.0
    %5119 = vmatpush1.msra.mxu0 0.0
    %5120 = vmatprep.subr.mxu0 0.0
    %5121 = vmatpush1.msra.mxu0 0.0
    %5122 = vmatprep.mubr.f32.mxu0 0.0
    %5123 = vmatmul.mubr.f32.gmra.mrb[0].mxu0 %v5019
    %v5124 = vpop.f32.mrb[0].mxu0
    %v5125 = vadd.f32 %v5056, %v5124
    %v5126 = vpop.f32.mrb[0].mxu0
    %5127 = vmatprep.mubr.f32.mxu0 0.0
    %5128 = vmatmul.mubr.f32.gmra.mrb[0].mxu0 %v5020
    %v5129 = vpop.f32.mrb[0].mxu0
    %v5130 = vadd.f32 %v5056, %v5129
    %v5131 = vpop.f32.mrb[0].mxu0
    %5132 = vmatprep.mubr.f32.mxu0 0.0
    %5133 = vmatmul.mubr.f32.gmra.mrb[0].mxu0 %v5021
    %v5134 = vpop.f32.mrb[0].mxu0
    %v5135 = vadd.f32 %v5056, %v5134
    %v5136 = vpop.f32.mrb[0].mxu0
    %5137 = vmatprep.mubr.f32.mxu0 0.0
    %5138 = vmatmul.mubr.f32.gmra.mrb[0].mxu0 %v5022
    %v5139 = vpop.f32.mrb[0].mxu0
    %v5140 = vadd.f32 %v5056, %v5139
    %v5141 = vpop.f32.mrb[0].mxu0
    %5142 = vmatprep.mubr.f32.mxu0 0.0
    %5143 = vmatmul.mubr.f32.gmra.mrb[0].mxu0 %v5023
    %v5144 = vpop.f32.mrb[0].mxu0
    %v5145 = vadd.f32 %v5056, %v5144
    %v5146 = vpop.f32.mrb[0].mxu0
    %5147 = vmatprep.mubr.f32.mxu0 0.0
    %5148 = vmatmul.mubr.f32.gmra.mrb[0].mxu0 %v5024
    %v5149 = vpop.f32.mrb[0].mxu0
    %v5150 = vadd.f32 %v5056, %v5149
    %v5151 = vpop.f32.mrb[0].mxu0
    %5152 = vmatprep.mubr.f32.mxu0 0.0
    %5153 = vmatmul.mubr.f32.gmra.mrb[0].mxu0 %v5025
    %v5154 = vpop.f32.mrb[0].mxu0
    %v5155 = vadd.f32 %v5056, %v5154
    %v5156 = vpop.f32.mrb[0].mxu0
    %5157 = vmatprep.mubr.f32.mxu0 0.0
    %5158 = vmatmul.mubr.f32.gmra.mrb[0].mxu0 %v5026
    %v5159 = vpop.f32.mrb[0].mxu0
    %v5160 = vadd.f32 %v5056, %v5159
    %v5161 = vpop.f32.mrb[0].mxu0
    %5162 = vmatprep.mubr.f32.mxu0 0.0
    %5163 = vmatmul.mubr.f32.gmra.mrb[0].mxu0 %v5027
    %v5164 = vpop.f32.mrb[0].mxu0
    %v5165 = vadd.f32 %v5056, %v5164
    %v5166 = vpop.f32.mrb[0].mxu0
    %5167 = vmatprep.mubr.f32.mxu0 0.0
    %5168 = vmatmul.mubr.f32.gmra.mrb[0].mxu0 %v5028
    %v5169 = vpop.f32.mrb[0].mxu0
    %v5170 = vadd.f32 %v5056, %v5169
    %v5171 = vpop.f32.mrb[0].mxu0
    %5172 = vmatprep.mubr.f32.mxu0 0.0
    %5173 = vmatmul.mubr.f32.gmra.mrb[0].mxu0 %v5029
    %v5174 = vpop.f32.mrb[0].mxu0
    %v5175 = vadd.f32 %v5056, %v5174
    %v5176 = vpop.f32.mrb[0].mxu0
    %5177 = vmatprep.mubr.f32.mxu0 0.0
    %5178 = vmatmul.mubr.f32.gmra.mrb[0].mxu0 %v5030
    %v5179 = vpop.f32.mrb[0].mxu0
    %v5180 = vadd.f32 %v5056, %v5179
    %v5181 = vpop.f32.mrb[0].mxu0
    %5182 = vmatprep.mubr.f32.mxu0 0.0
    %5183 = vmatmul.mubr.f32.gmra.mrb[0].mxu0 %v5031
    %v5184 = vpop.f32.mrb[0].mxu0
    %v5185 = vadd.f32 %v5056, %v5184
    %v5186 = vpop.f32.mrb[0].mxu0
    %5187 = vmatprep.mubr.f32.mxu0 0.0
    %5188 = vmatmul.mubr.f32.gmra.mrb[0].mxu0 %v5032
    %v5189 = vpop.f32.mrb[0].mxu0
    %v5190 = vadd.f32 %v5056, %v5189
    %v5191 = vpop.f32.mrb[0].mxu0
    %5192 = vmatprep.mubr.f32.mxu0 0.0
    %5193 = vmatmul.mubr.f32.gmra.mrb[0].mxu0 %v5033
    %v5194 = vpop.f32.mrb[0].mxu0
    %v5195 = vadd.f32 %v5056, %v5194
    %v5196 = vpop.f32.mrb[0].mxu0
    %5197 = vmatprep.mubr.f32.mxu0 0.0
    %5198 = vmatmul.mubr.f32.gmra.mrb[0].mxu0 %v5034
    %v5199 = vpop.f32.mrb[0].mxu0
    %v5200 = vadd.f32 %v5056, %v5199
    %v5201 = vpop.f32.mrb[0].mxu0
    %5202 = vdwg.mxu0
    %v5203 = vtanh.pop %v5125
    %v5204 = vtanh.pop %v5130
    %v5205 = vtanh.pop %v5135
    %v5206 = vtanh.pop %v5140
    %v5207 = vtanh.pop %v5145
    %v5208 = vtanh.pop %v5150
    %v5209 = vtanh.pop %v5155
    %v5210 = vtanh.pop %v5160
    %v5211 = vtanh.pop %v5165
    %v5212 = vtanh.pop %v5170
    %v5213 = vtanh.pop %v5175
    %v5214 = vtanh.pop %v5180
    %v5215 = vtanh.pop %v5185
    %v5216 = vtanh.pop %v5190
    %v5217 = vtanh.pop %v5195
    %v5218 = vtanh.pop %v5200
    %v5219 = vld [vmem:[%s7] sm:$0xff]
    %v5220 = vld [vmem:[%s7 + $0x8] sm:$0xff]
    %v5221 = vld [vmem:[%s7 + $0x10] sm:$0xff]
    %v5222 = vld [vmem:[%s7 + $0x18] sm:$0xff]
    %v5223 = vld [vmem:[%s7 + $0x20] sm:$0xff]
    %v5224 = vld [vmem:[%s7 + $0x28] sm:$0xff]
    %v5225 = vld [vmem:[%s7 + $0x30] sm:$0xff]
    %v5226 = vld [vmem:[%s7 + $0x38] sm:$0xff]
    %v5227 = vld [vmem:[%s7 + $0x40] sm:$0xff]
    %v5228 = vld [vmem:[%s7 + $0x48] sm:$0xff]
    %v5229 = vld [vmem:[%s7 + $0x50] sm:$0xff]
    %v5230 = vld [vmem:[%s7 + $0x58] sm:$0xff]
    %v5231 = vld [vmem:[%s7 + $0x60] sm:$0xff]
    %v5232 = vld [vmem:[%s7 + $0x68] sm:$0xff]
    %v5233 = vld [vmem:[%s7 + $0x70] sm:$0xff]
    %v5234 = vld [vmem:[%s7 + $0x78] sm:$0xff]
    %v5235 = vld [vmem:[%s8] sm:$0x1]
    %v5237 = vlaneseq
    %v5238 = vshrl.u32 %v5237, 7
    %v5239 = vsub.s32 0, %v5238
    %v5240 = vrot.slane %v5235, %v5239
    %5242 = vmatprep.subr.mxu0 0.0
    %5243 = vmatpush1.msra.mxu0 %v5219
    %5244 = vmatprep.subr.mxu0 0.0
    %5245 = vmatpush1.msra.mxu0 %v5220
    %5246 = vmatprep.subr.mxu0 0.0
    %5247 = vmatpush1.msra.mxu0 %v5221
    %5248 = vmatprep.subr.mxu0 0.0
    %5249 = vmatpush1.msra.mxu0 %v5222
    %5250 = vmatprep.subr.mxu0 0.0
    %5251 = vmatpush1.msra.mxu0 %v5223
    %5252 = vmatprep.subr.mxu0 0.0
    %5253 = vmatpush1.msra.mxu0 %v5224
    %5254 = vmatprep.subr.mxu0 0.0
    %5255 = vmatpush1.msra.mxu0 %v5225
    %5256 = vmatprep.subr.mxu0 0.0
    %5257 = vmatpush1.msra.mxu0 %v5226
    %5258 = vmatprep.subr.mxu0 0.0
    %5259 = vmatpush1.msra.mxu0 %v5227
    %5260 = vmatprep.subr.mxu0 0.0
    %5261 = vmatpush1.msra.mxu0 %v5228
    %5262 = vmatprep.subr.mxu0 0.0
    %5263 = vmatpush1.msra.mxu0 %v5229
    %5264 = vmatprep.subr.mxu0 0.0
    %5265 = vmatpush1.msra.mxu0 %v5230
    %5266 = vmatprep.subr.mxu0 0.0
    %5267 = vmatpush1.msra.mxu0 %v5231
    %5268 = vmatprep.subr.mxu0 0.0
    %5269 = vmatpush1.msra.mxu0 %v5232
    %5270 = vmatprep.subr.mxu0 0.0
    %5271 = vmatpush1.msra.mxu0 %v5233
    %5272 = vmatprep.subr.mxu0 0.0
    %5273 = vmatpush1.msra.mxu0 %v5234
    %5274 = vmatprep.subr.mxu0 0.0
    %5275 = vmatpush1.msra.mxu0 0.0
    %5276 = vmatprep.subr.mxu0 0.0
    %5277 = vmatpush1.msra.mxu0 0.0
    %5278 = vmatprep.subr.mxu0 0.0
    %5279 = vmatpush1.msra.mxu0 0.0
    %5280 = vmatprep.subr.mxu0 0.0
    %5281 = vmatpush1.msra.mxu0 0.0
    %5282 = vmatprep.subr.mxu0 0.0
    %5283 = vmatpush1.msra.mxu0 0.0
    %5284 = vmatprep.subr.mxu0 0.0
    %5285 = vmatpush1.msra.mxu0 0.0
    %5286 = vmatprep.subr.mxu0 0.0
    %5287 = vmatpush1.msra.mxu0 0.0
    %5288 = vmatprep.subr.mxu0 0.0
    %5289 = vmatpush1.msra.mxu0 0.0
    %5290 = vmatprep.subr.mxu0 0.0
    %5291 = vmatpush1.msra.mxu0 0.0
    %5292 = vmatprep.subr.mxu0 0.0
    %5293 = vmatpush1.msra.mxu0 0.0
    %5294 = vmatprep.subr.mxu0 0.0
    %5295 = vmatpush1.msra.mxu0 0.0
    %5296 = vmatprep.subr.mxu0 0.0
    %5297 = vmatpush1.msra.mxu0 0.0
    %5298 = vmatprep.subr.mxu0 0.0
    %5299 = vmatpush1.msra.mxu0 0.0
    %5300 = vmatprep.subr.mxu0 0.0
    %5301 = vmatpush1.msra.mxu0 0.0
    %5302 = vmatprep.subr.mxu0 0.0
    %5303 = vmatpush1.msra.mxu0 0.0
    %5304 = vmatprep.subr.mxu0 0.0
    %5305 = vmatpush1.msra.mxu0 0.0
    %5306 = vmatprep.mubr.f32.mxu0 0.0
    %5307 = vmatmul.mubr.f32.gmra.mrb[0].mxu0 %v5203
    %v5308 = vpop.f32.mrb[0].mxu0
    %v5309 = vadd.f32 %v5240, %v5308
    %v5310 = vpop.f32.mrb[0].mxu0
    %5311 = vmatprep.mubr.f32.mxu0 0.0
    %5312 = vmatmul.mubr.f32.gmra.mrb[0].mxu0 %v5204
    %v5313 = vpop.f32.mrb[0].mxu0
    %v5314 = vadd.f32 %v5240, %v5313
    %v5315 = vpop.f32.mrb[0].mxu0
    %5316 = vmatprep.mubr.f32.mxu0 0.0
    %5317 = vmatmul.mubr.f32.gmra.mrb[0].mxu0 %v5205
    %v5318 = vpop.f32.mrb[0].mxu0
    %v5319 = vadd.f32 %v5240, %v5318
    %v5320 = vpop.f32.mrb[0].mxu0
    %5321 = vmatprep.mubr.f32.mxu0 0.0
    %5322 = vmatmul.mubr.f32.gmra.mrb[0].mxu0 %v5206
    %v5323 = vpop.f32.mrb[0].mxu0
    %v5324 = vadd.f32 %v5240, %v5323
    %v5325 = vpop.f32.mrb[0].mxu0
    %5326 = vmatprep.mubr.f32.mxu0 0.0
    %5327 = vmatmul.mubr.f32.gmra.mrb[0].mxu0 %v5207
    %v5328 = vpop.f32.mrb[0].mxu0
    %v5329 = vadd.f32 %v5240, %v5328
    %v5330 = vpop.f32.mrb[0].mxu0
    %5331 = vmatprep.mubr.f32.mxu0 0.0
    %5332 = vmatmul.mubr.f32.gmra.mrb[0].mxu0 %v5208
    %v5333 = vpop.f32.mrb[0].mxu0
    %v5334 = vadd.f32 %v5240, %v5333
    %v5335 = vpop.f32.mrb[0].mxu0
    %5336 = vmatprep.mubr.f32.mxu0 0.0
    %5337 = vmatmul.mubr.f32.gmra.mrb[0].mxu0 %v5209
    %v5338 = vpop.f32.mrb[0].mxu0
    %v5339 = vadd.f32 %v5240, %v5338
    %v5340 = vpop.f32.mrb[0].mxu0
    %5341 = vmatprep.mubr.f32.mxu0 0.0
    %5342 = vmatmul.mubr.f32.gmra.mrb[0].mxu0 %v5210
    %v5343 = vpop.f32.mrb[0].mxu0
    %v5344 = vadd.f32 %v5240, %v5343
    %v5345 = vpop.f32.mrb[0].mxu0
    %5346 = vmatprep.mubr.f32.mxu0 0.0
    %5347 = vmatmul.mubr.f32.gmra.mrb[0].mxu0 %v5211
    %v5348 = vpop.f32.mrb[0].mxu0
    %v5349 = vadd.f32 %v5240, %v5348
    %v5350 = vpop.f32.mrb[0].mxu0
    %5351 = vmatprep.mubr.f32.mxu0 0.0
    %5352 = vmatmul.mubr.f32.gmra.mrb[0].mxu0 %v5212
    %v5353 = vpop.f32.mrb[0].mxu0
    %v5354 = vadd.f32 %v5240, %v5353
    %v5355 = vpop.f32.mrb[0].mxu0
    %5356 = vmatprep.mubr.f32.mxu0 0.0
    %5357 = vmatmul.mubr.f32.gmra.mrb[0].mxu0 %v5213
    %v5358 = vpop.f32.mrb[0].mxu0
    %v5359 = vadd.f32 %v5240, %v5358
    %v5360 = vpop.f32.mrb[0].mxu0
    %5361 = vmatprep.mubr.f32.mxu0 0.0
    %5362 = vmatmul.mubr.f32.gmra.mrb[0].mxu0 %v5214
    %v5363 = vpop.f32.mrb[0].mxu0
    %v5364 = vadd.f32 %v5240, %v5363
    %v5365 = vpop.f32.mrb[0].mxu0
    %5366 = vmatprep.mubr.f32.mxu0 0.0
    %5367 = vmatmul.mubr.f32.gmra.mrb[0].mxu0 %v5215
    %v5368 = vpop.f32.mrb[0].mxu0
    %v5369 = vadd.f32 %v5240, %v5368
    %v5370 = vpop.f32.mrb[0].mxu0
    %5371 = vmatprep.mubr.f32.mxu0 0.0
    %5372 = vmatmul.mubr.f32.gmra.mrb[0].mxu0 %v5216
    %v5373 = vpop.f32.mrb[0].mxu0
    %v5374 = vadd.f32 %v5240, %v5373
    %v5375 = vpop.f32.mrb[0].mxu0
    %5376 = vmatprep.mubr.f32.mxu0 0.0
    %5377 = vmatmul.mubr.f32.gmra.mrb[0].mxu0 %v5217
    %v5378 = vpop.f32.mrb[0].mxu0
    %v5379 = vadd.f32 %v5240, %v5378
    %v5380 = vpop.f32.mrb[0].mxu0
    %5381 = vmatprep.mubr.f32.mxu0 0.0
    %5382 = vmatmul.mubr.f32.gmra.mrb[0].mxu0 %v5218
    %v5383 = vpop.f32.mrb[0].mxu0
    %v5384 = vadd.f32 %v5240, %v5383
    %v5385 = vpop.f32.mrb[0].mxu0
    %5386 = vdwg.mxu0
    %v5387 = vxor.u32 %v5309, 2147483648
    %v5388 = vxor.u32 %v5314, 2147483648
    %v5389 = vxor.u32 %v5319, 2147483648
    %v5390 = vxor.u32 %v5324, 2147483648
    %v5391 = vxor.u32 %v5329, 2147483648
    %v5392 = vxor.u32 %v5334, 2147483648
    %v5393 = vxor.u32 %v5339, 2147483648
    %v5394 = vxor.u32 %v5344, 2147483648
    %v5395 = vxor.u32 %v5349, 2147483648
    %v5396 = vxor.u32 %v5354, 2147483648
    %v5397 = vxor.u32 %v5359, 2147483648
    %v5398 = vxor.u32 %v5364, 2147483648
    %v5399 = vxor.u32 %v5369, 2147483648
    %v5400 = vxor.u32 %v5374, 2147483648
    %v5401 = vxor.u32 %v5379, 2147483648
    %v5402 = vxor.u32 %v5384, 2147483648
    %v5403 = vmul.f32 %v5387, 1.442695
    %v5404 = vpow.pop %v5403
    %v5405 = vmul.f32 %v5388, 1.442695
    %v5406 = vpow.pop %v5405
    %v5407 = vmul.f32 %v5389, 1.442695
    %v5408 = vpow.pop %v5407
    %v5409 = vmul.f32 %v5390, 1.442695
    %v5410 = vpow.pop %v5409
    %v5411 = vmul.f32 %v5391, 1.442695
    %v5412 = vpow.pop %v5411
    %v5413 = vmul.f32 %v5392, 1.442695
    %v5414 = vpow.pop %v5413
    %v5415 = vmul.f32 %v5393, 1.442695
    %v5416 = vpow.pop %v5415
    %v5417 = vmul.f32 %v5394, 1.442695
    %v5418 = vpow.pop %v5417
    %v5419 = vmul.f32 %v5395, 1.442695
    %v5420 = vpow.pop %v5419
    %v5421 = vmul.f32 %v5396, 1.442695
    %v5422 = vpow.pop %v5421
    %v5423 = vmul.f32 %v5397, 1.442695
    %v5424 = vpow.pop %v5423
    %v5425 = vmul.f32 %v5398, 1.442695
    %v5426 = vpow.pop %v5425
    %v5427 = vmul.f32 %v5399, 1.442695
    %v5428 = vpow.pop %v5427
    %v5429 = vmul.f32 %v5400, 1.442695
    %v5430 = vpow.pop %v5429
    %v5431 = vmul.f32 %v5401, 1.442695
    %v5432 = vpow.pop %v5431
    %v5433 = vmul.f32 %v5402, 1.442695
    %v5434 = vpow.pop %v5433
    %v5435 = vadd.f32 %v5404, 1.0
    %v5436 = vadd.f32 %v5406, 1.0
    %v5437 = vadd.f32 %v5408, 1.0
    %v5438 = vadd.f32 %v5410, 1.0
    %v5439 = vadd.f32 %v5412, 1.0
    %v5440 = vadd.f32 %v5414, 1.0
    %v5441 = vadd.f32 %v5416, 1.0
    %v5442 = vadd.f32 %v5418, 1.0
    %v5443 = vadd.f32 %v5420, 1.0
    %v5444 = vadd.f32 %v5422, 1.0
    %v5445 = vadd.f32 %v5424, 1.0
    %v5446 = vadd.f32 %v5426, 1.0
    %v5447 = vadd.f32 %v5428, 1.0
    %v5448 = vadd.f32 %v5430, 1.0
    %v5449 = vadd.f32 %v5432, 1.0
    %v5450 = vadd.f32 %v5434, 1.0
    %v5451 = vrcp.pop %v5435
    %v5452 = vmul.f32 1.0, %v5451
    %v5453 = vrcp.pop %v5436
    %v5454 = vmul.f32 1.0, %v5453
    %v5455 = vrcp.pop %v5437
    %v5456 = vmul.f32 1.0, %v5455
    %v5457 = vrcp.pop %v5438
    %v5458 = vmul.f32 1.0, %v5457
    %v5459 = vrcp.pop %v5439
    %v5460 = vmul.f32 1.0, %v5459
    %v5461 = vrcp.pop %v5440
    %v5462 = vmul.f32 1.0, %v5461
    %v5463 = vrcp.pop %v5441
    %v5464 = vmul.f32 1.0, %v5463
    %v5465 = vrcp.pop %v5442
    %v5466 = vmul.f32 1.0, %v5465
    %v5467 = vrcp.pop %v5443
    %v5468 = vmul.f32 1.0, %v5467
    %v5469 = vrcp.pop %v5444
    %v5470 = vmul.f32 1.0, %v5469
    %v5471 = vrcp.pop %v5445
    %v5472 = vmul.f32 1.0, %v5471
    %v5473 = vrcp.pop %v5446
    %v5474 = vmul.f32 1.0, %v5473
    %v5475 = vrcp.pop %v5447
    %v5476 = vmul.f32 1.0, %v5475
    %v5477 = vrcp.pop %v5448
    %v5478 = vmul.f32 1.0, %v5477
    %v5479 = vrcp.pop %v5449
    %v5480 = vmul.f32 1.0, %v5479
    %v5481 = vrcp.pop %v5450
    %v5482 = vmul.f32 1.0, %v5481
    %5483 = vst [vmem:[#allocation2] sm:$0xff] %v5452
    %5484 = vst [vmem:[#allocation2 + $0x8] sm:$0xff] %v5454
    %5485 = vst [vmem:[#allocation2 + $0x10] sm:$0xff] %v5456
    %5486 = vst [vmem:[#allocation2 + $0x18] sm:$0xff] %v5458
    %5487 = vst [vmem:[#allocation2 + $0x20] sm:$0xff] %v5460
    %5488 = vst [vmem:[#allocation2 + $0x28] sm:$0xff] %v5462
    %5489 = vst [vmem:[#allocation2 + $0x30] sm:$0xff] %v5464
    %5490 = vst [vmem:[#allocation2 + $0x38] sm:$0xff] %v5466
    %5491 = vst [vmem:[#allocation2 + $0x40] sm:$0xff] %v5468
    %5492 = vst [vmem:[#allocation2 + $0x48] sm:$0xff] %v5470
    %5493 = vst [vmem:[#allocation2 + $0x50] sm:$0xff] %v5472
    %5494 = vst [vmem:[#allocation2 + $0x58] sm:$0xff] %v5474
    %5495 = vst [vmem:[#allocation2 + $0x60] sm:$0xff] %v5476
    %5496 = vst [vmem:[#allocation2 + $0x68] sm:$0xff] %v5478
    %5497 = vst [vmem:[#allocation2 + $0x70] sm:$0xff] %v5480
    %5498 = vst [vmem:[#allocation2 + $0x78] sm:$0xff] %v5482
    // Predicated region
    $region38: #{tpu_custom_call.1} parent=1 // pred_check
      _
    $region39: #{tpu_custom_call.1} parent=1 // pred_check_branch
      %5500 = sbr.rel (0) target = $region41
    $region40: #{tpu_custom_call.1} parent=1 // pred_region
      %s5502 = ssub.s32 2048, 2048
      %5503 = vsyncadd [#allocation3], %s5502
      %s5504 = sshll.u32 [#allocation2], 4
      %s5505 = int_to_ptr.vmem [resolvable:$true] %s5504
      %5510 = dma.vmem_to_hbm [thread:$0]  %s5505, 2048, %s9, [#allocation3], 128, 128, 8
    $region41: #{tpu_custom_call.1} parent=1 // pred_fallthru
      _
    // Predicated region
    $region42: #{tpu_custom_call.1} parent=1 // pred_check
      _
    $region43: #{tpu_custom_call.1} parent=1 // pred_check_branch
      %5512 = sbr.rel (0) target = $region45
    $region44: #{tpu_custom_call.1} parent=1 // pred_region
      %5513 = dma.done [#allocation3], 2048
    $region45: #{tpu_custom_call.1} parent=1 // pred_fallthru
      _
    %5514 = vsyncpa [#allocation3], 1

</llo_original>
